<compile_context>
chip_gen: v7x
topology: tpu7x:2x2x1
jax: 0.10.0
libtpu: 0.0.40
codegen_flags: <defaults>
</compile_context>

<pallas_src>
from functools import partial

import jax
import jax.numpy as jnp
from jax.experimental import pallas as pl
from jax.experimental.pallas import tpu as pltpu


def hsae_kernel(x_ref, bout_ref,
                we0_ref, be0_ref, wd0_ref,
                we1_ref, be1_ref, wd1_ref, bd1_ref,
                out_ref, e_scr, *, nc, F):
    k = pl.program_id(1)
    bf16 = jnp.bfloat16

    @pl.when(k == 0)
    def _init():
        # constant output term (b_dec0 + b_dec), added exactly once per row
        out_ref[...] = jnp.broadcast_to(bout_ref[...], out_ref.shape)
        # 0/1 gate-expansion matrix E[n, n*F + f] = 1, built in VMEM (no HBM
        # DMA, single buffer); persists across the k (chunk) axis.
        row = jax.lax.broadcasted_iota(jnp.int32, (nc, nc * F), 0)
        col = jax.lax.broadcasted_iota(jnp.int32, (nc, nc * F), 1)
        d = col - row * F
        e_scr[...] = ((d >= 0) & (d < F)).astype(bf16)

    x = x_ref[...]                                   # (tb, D) f32

    # ---- sae_0 encoder (f32: the binary gate is sign-sensitive) ----
    pre0 = jnp.dot(x, we0_ref[0],
                   preferred_element_type=jnp.float32) + be0_ref[0]   # (tb, nc)
    acts0 = jnp.maximum(pre0, 0.0)
    gate = (acts0 > 0.0).astype(bf16)                # exact 0/1 in bf16

    acc = out_ref[...]                               # f32 accumulator (resident)

    # ---- sae_0 decoder contribution (bf16 weights, f32 accumulate) ----
    acc += jnp.dot(acts0.astype(bf16), wd0_ref[...],
                   preferred_element_type=jnp.float32)

    # ---- hierarchical sub-layer: flattened GEMMs over K = nc*F ----
    pre1 = jnp.dot(x.astype(bf16), we1_ref[0],
                   preferred_element_type=jnp.float32) + be1_ref[0]   # (tb, nc*F)
    gate_f = jnp.dot(gate, e_scr[...],
                     preferred_element_type=jnp.float32)              # exact 0/1
    a1 = jnp.maximum(pre1, 0.0) * gate_f             # f32 elementwise
    acc += jnp.dot(a1.astype(bf16), wd1_ref[...],
                   preferred_element_type=jnp.float32)
    acc += jnp.dot(gate, bd1_ref[...],
                   preferred_element_type=jnp.float32)

    out_ref[...] = acc


def hsae_forward(x, params, *, tb=256, nc=None, vmem_limit_bytes=None):
    B, D = x.shape
    N0 = params["W_enc0"].shape[1]
    F = params["W_enc1"].shape[2]
    f32, bf16 = jnp.float32, jnp.bfloat16

    # ---- batch tile: multiple of 8 dividing B; keep >=2 tiles (megacore) ----
    assert B % 8 == 0, "batch must be a multiple of 8"
    tb = max(8, (min(tb, B) // 8) * 8)
    while B % tb:
        tb -= 8
    if B // tb < 2 and B >= 16:
        tb = max(8, (B // 2 // 8) * 8)
        while B % tb:
            tb -= 8

    try:
        phys_vmem = pltpu.get_tpu_info().vmem_capacity_bytes
    except Exception:
        phys_vmem = 64 << 20                          # conservative (v7x per-TC)

    # ---- dictionary chunk size: lane-dense, VMEM-budgeted per generation ----
    def _chunk_bytes(c):
        w = 2 * (D * c * 4            # W_enc0 chunk (f32, double-buffered)
                 + c * D * 2          # W_dec0 chunk (bf16)
                 + D * c * F * 2      # W_enc1 chunk (bf16)
                 + c * F * D * 2      # W_dec1 chunk (bf16)
                 + c * D * 2)         # b_dec1 chunk (bf16)
        return (w + c * c * F * 2                       # E scratch (single)
                + 2 * tb * c * F * 4 + 3 * tb * c * 4)  # live intermediates

    if nc is None:
        budget = int(0.35 * phys_vmem)
        cap = min(N0, max(D, 128))    # keep gate expansion <= encoder GEMM
        cands = [c for c in range(cap, 7, -8) if N0 % c == 0]
        nc = next((c for c in cands if _chunk_bytes(c) <= budget),
                  cands[-1] if cands else N0)
    nc = min(nc, N0)
    assert N0 % nc == 0 and nc % 8 == 0
    nk = N0 // nc

    if vmem_limit_bytes is None:
        need = (2 * (2 * tb * D * 4) + 2 * D * 4 + _chunk_bytes(nc)
                + 2 * (nc * 4 + nc * F * 4))
        vmem_limit_bytes = min(max(int(need * 1.5) + (4 << 20), 32 << 20),
                               int(0.9 * phys_vmem))

    # ---- host-side algebra / layout (one-time, computed in f32) ----
    W_enc0 = params["W_enc0"].astype(f32)             # (D, N0)
    W_dec0 = params["W_dec0"].astype(f32)             # (N0, D)
    b_enc0 = params["b_enc0"].astype(f32)             # (N0,)
    b_dec0 = params["b_dec0"].astype(f32)             # (D,)
    b_dec = params["b_dec"].astype(f32)               # (D,)
    W_enc1 = params["W_enc1"].astype(f32)             # (N0, D, F)
    W_dec1 = params["W_dec1"].astype(f32)             # (N0, F, D)
    b_enc1 = params["b_enc1"].astype(f32)             # (N0, F)
    b_dec1 = params["b_dec1"].astype(f32)             # (N0, D)

    be0_eff = b_enc0 - b_dec0 @ W_enc0                                 # (N0,)
    b_eff1 = b_enc1 - jnp.einsum('nd,ndf->nf', b_dec[None, :] + b_dec1,
                                 W_enc1)                               # (N0, F)
    b_out = (b_dec0 + b_dec).reshape(1, D)                             # (1, D)

    We1f = jnp.transpose(W_enc1, (1, 0, 2)).reshape(D, N0 * F)         # (D, N0*F)
    Wd1f = W_dec1.reshape(N0 * F, D)                                   # (N0*F, D)

    # pre-chunk the N0 axis (leading chunk axis -> full last-two-dim blocks)
    We0c = jnp.transpose(W_enc0.reshape(D, nk, nc), (1, 0, 2))         # (nk,D,nc) f32
    be0c = be0_eff.reshape(nk, 1, nc)                                  # f32
    We1c = jnp.transpose(We1f.reshape(D, nk, nc * F), (1, 0, 2)).astype(bf16)
    beff1c = b_eff1.reshape(nk, 1, nc * F)                             # f32
    Wd0_b = W_dec0.astype(bf16)                                        # (N0, D)
    Wd1_b = Wd1f.astype(bf16)                                          # (N0*F, D)
    bd1_b = b_dec1.astype(bf16)                                        # (N0, D)

    grid = (B // tb, nk)

    out = pl.pallas_call(
        partial(hsae_kernel, nc=nc, F=F),
        out_shape=jax.ShapeDtypeStruct((B, D), jnp.float32),
        grid=grid,
        in_specs=[
            pl.BlockSpec((tb, D), lambda i, k: (i, 0)),             # x
            pl.BlockSpec((1, D), lambda i, k: (0, 0)),              # b_dec0 + b_dec
            pl.BlockSpec((1, D, nc), lambda i, k: (k, 0, 0)),       # W_enc0 chunk
            pl.BlockSpec((1, 1, nc), lambda i, k: (k, 0, 0)),       # be0_eff chunk
            pl.BlockSpec((nc, D), lambda i, k: (k, 0)),             # W_dec0 chunk
            pl.BlockSpec((1, D, nc * F), lambda i, k: (k, 0, 0)),   # W_enc1 chunk
            pl.BlockSpec((1, 1, nc * F), lambda i, k: (k, 0, 0)),   # b_eff1 chunk
            pl.BlockSpec((nc * F, D), lambda i, k: (k, 0)),         # W_dec1 chunk
            pl.BlockSpec((nc, D), lambda i, k: (k, 0)),             # b_dec1 chunk
        ],
        out_specs=pl.BlockSpec((tb, D), lambda i, k: (i, 0)),       # accumulator
        scratch_shapes=[pltpu.VMEM((nc, nc * F), bf16)],            # gate-expansion E
        compiler_params=pltpu.CompilerParams(
            dimension_semantics=("parallel", "arbitrary"),
            vmem_limit_bytes=vmem_limit_bytes),
    )(x.astype(f32), b_out,
      We0c, be0c, Wd0_b, We1c, beff1c, Wd1_b, bd1_b)

    return out


def hsae_reference(x, p):
    """Pure-JAX f32 reference mirroring the PyTorch forward."""
    acts0 = jax.nn.relu((x - p["b_dec0"]) @ p["W_enc0"] + p["b_enc0"])
    x_0 = acts0 @ p["W_dec0"] + p["b_dec0"]
    gate = (acts0 > 0).astype(jnp.float32)
    x_c = x - p["b_dec"]
    x_cent = x_c[:, None, :] - p["b_dec1"][None]
    pre1 = jnp.einsum('bnd,ndf->bnf', x_cent, p["W_enc1"]) + p["b_enc1"][None]
    acts1 = jax.nn.relu(pre1) * gate[:, :, None]
    outs = jnp.einsum('bnf,nfd->bnd', acts1, p["W_dec1"]) \
        + gate[:, :, None] * p["b_dec1"][None]
    return x_0 + outs.sum(axis=1) + p["b_dec"]


def init_params(key, d_data, d_dict0, d_dict1):
    ks = jax.random.split(key, 8)
    W_enc0 = 0.1 * jax.random.normal(ks[0], (d_data, d_dict0), jnp.float32)
    W_dec0 = 0.1 * jax.random.normal(ks[1], (d_dict0, d_data), jnp.float32)
    b_enc0 = 0.01 * jax.random.normal(ks[2], (d_dict0,), jnp.float32)
    b_dec0 = 0.01 * jax.random.normal(ks[3], (d_data,), jnp.float32)
    W_enc1 = 0.1 * jax.random.normal(ks[4], (d_dict0, d_data, d_dict1), jnp.float32)
    W_dec1 = 0.1 * jax.random.normal(ks[5], (d_dict0, d_dict1, d_data), jnp.float32)
    b_enc1 = 0.01 * jax.random.normal(ks[6], (d_dict0, d_dict1), jnp.float32)
    # init_with_sae0_feature: layer b_dec[i] = sae0.W_dec[i]; top b_dec = sae0.b_dec
    b_dec1 = W_dec0.copy()
    b_dec = b_dec0.copy()
    return dict(W_enc0=W_enc0, b_enc0=b_enc0, W_dec0=W_dec0, b_dec0=b_dec0,
                b_dec=b_dec, W_enc1=W_enc1, b_enc1=b_enc1, W_dec1=W_dec1,
                b_dec1=b_dec1)


if __name__ == "__main__":
    # batch, d_data, sae_0 d_dict (= n_sae), sub-SAE d_dict
    B, D, N0, F = 256, 128, 256, 8
    key = jax.random.PRNGKey(0)
    kx, kp = jax.random.split(key)
    x = jax.random.normal(kx, (B, D), jnp.float32)
    params = init_params(kp, D, N0, F)

    # tb=128 -> 2 'parallel' batch tiles; nc=128 (lane-dense) -> 2 dictionary
    # chunks, exercising the resident-output accumulation path.
    out = hsae_forward(x, params, tb=128, nc=128)
    out = jax.block_until_ready(out)
    assert out.shape == (B, D) and out.dtype == jnp.float32

    ref = hsae_reference(x, params)

    # The kernel stores the big weights in bf16, so the comparison vs the f32
    # reference uses a bf16-appropriate tolerance.  Rows whose binary gate sits
    # within 5e-4 of its ReLU threshold are excluded: the gate is a
    # discontinuity and bit-level matmul differences can legitimately flip it.
    pre0_ref = (x - params["b_dec0"]) @ params["W_enc0"] + params["b_enc0"]
    ok_rows = jnp.all(jnp.abs(pre0_ref) > 5e-4, axis=1)
    tol = 0.15 + 0.05 * jnp.abs(ref)
    bad = (jnp.abs(out - ref) > tol) & ok_rows[:, None]
    assert int(ok_rows.sum()) > 0
    assert not bool(bad.any()), \
        f"mismatch: max abs diff {float(jnp.max(jnp.abs(out - ref)))}"
    print("KERNEL_OK")
</pallas_src>

<mosaic_0001>
module attributes {stable_mosaic.version = 11 : i64} {
  func.func @hsae_kernel(%arg0: i32, %arg1: i32, %arg2: memref<128x128xf32, #tpu.memory_space<vmem>>, %arg3: memref<1x128xf32, #tpu.memory_space<vmem>>, %arg4: memref<1x128x128xf32, #tpu.memory_space<vmem>>, %arg5: memref<1x1x128xf32, #tpu.memory_space<vmem>>, %arg6: memref<128x128xbf16, #tpu.memory_space<vmem>>, %arg7: memref<1x128x1024xbf16, #tpu.memory_space<vmem>>, %arg8: memref<1x1x1024xf32, #tpu.memory_space<vmem>>, %arg9: memref<1024x128xbf16, #tpu.memory_space<vmem>>, %arg10: memref<128x128xbf16, #tpu.memory_space<vmem>>, %arg11: memref<128x128xf32, #tpu.memory_space<vmem>>, %arg12: memref<128x1024xbf16, #tpu.memory_space<vmem>>) attributes {dimension_semantics = [#tpu.dimension_semantics<parallel>, #tpu.dimension_semantics<arbitrary>], iteration_bounds = array<i64: 2, 2>, scalar_prefetch = 0 : i64, scratch_operands = 1 : i64, tpu.core_type = #tpu.core_type<tc>, window_params = [{transform_indices = @transform_0, window_bounds = array<i64: 128, 128>}, {pipeline_mode = #tpu.pipeline_mode<synchronous>, transform_indices = @transform_1, window_bounds = array<i64: 1, 128>}, {transform_indices = @transform_2, window_bounds = array<i64: 1, 128, 128>}, {transform_indices = @transform_3, window_bounds = array<i64: 1, 1, 128>}, {transform_indices = @transform_4, window_bounds = array<i64: 128, 128>}, {transform_indices = @transform_5, window_bounds = array<i64: 1, 128, 1024>}, {transform_indices = @transform_6, window_bounds = array<i64: 1, 1, 1024>}, {transform_indices = @transform_7, window_bounds = array<i64: 1024, 128>}, {transform_indices = @transform_8, window_bounds = array<i64: 128, 128>}, {transform_indices = @transform_9, window_bounds = array<i64: 128, 128>}]} {
    %c0_i32 = arith.constant 0 : i32
    %0 = arith.cmpi eq, %arg1, %c0_i32 : i32
    %1 = arith.extui %0 : i1 to i32
    %c0_i32_0 = arith.constant 0 : i32
    %2 = arith.cmpi ne, %1, %c0_i32_0 : i32
    scf.if %2 {
      %c0_34 = arith.constant 0 : index
      %c0_35 = arith.constant 0 : index
      %44 = vector.load %arg3[%c0_34, %c0_35] : memref<1x128xf32, #tpu.memory_space<vmem>>, vector<1x128xf32>
      %45 = vector.shape_cast %44 : vector<1x128xf32> to vector<1x128xf32>
      %46 = vector.broadcast %45 : vector<1x128xf32> to vector<128x128xf32>
      %c0_36 = arith.constant 0 : index
      %c0_37 = arith.constant 0 : index
      %47 = vector.load %arg11[%c0_36, %c0_37] : memref<128x128xf32, #tpu.memory_space<vmem>>, vector<128x128xf32>
      tpu.vector_store %arg11[%c0_36, %c0_37], %46 {strides = array<i32>} : memref<128x128xf32, #tpu.memory_space<vmem>>, vector<128x128xf32>,
      %48 = tpu.iota {dimensions = array<i32: 0>} : vector<128x1024xi32>
      %49 = tpu.iota {dimensions = array<i32: 1>} : vector<128x1024xi32>
      %c8_i32 = arith.constant 8 : i32
      %50 = vector.broadcast %c8_i32 : i32 to vector<128x1024xi32>
      %51 = arith.muli %48, %50 : vector<128x1024xi32>
      %52 = arith.subi %49, %51 : vector<128x1024xi32>
      %c0_i32_38 = arith.constant 0 : i32
      %53 = vector.broadcast %c0_i32_38 : i32 to vector<128x1024xi32>
      %54 = arith.cmpi sge, %52, %53 : vector<128x1024xi32>
      %c8_i32_39 = arith.constant 8 : i32
      %55 = vector.broadcast %c8_i32_39 : i32 to vector<128x1024xi32>
      %56 = arith.cmpi slt, %52, %55 : vector<128x1024xi32>
      %57 = arith.andi %54, %56 : vector<128x1024xi1>
      %58 = arith.extui %57 : vector<128x1024xi1> to vector<128x1024xi32>
      %59 = arith.sitofp %58 : vector<128x1024xi32> to vector<128x1024xf32>
      %60 = arith.truncf %59 : vector<128x1024xf32> to vector<128x1024xbf16>
      %c0_40 = arith.constant 0 : index
      %c0_41 = arith.constant 0 : index
      %61 = vector.load %arg12[%c0_40, %c0_41] : memref<128x1024xbf16, #tpu.memory_space<vmem>>, vector<128x1024xbf16>
      tpu.vector_store %arg12[%c0_40, %c0_41], %60 {strides = array<i32>} : memref<128x1024xbf16, #tpu.memory_space<vmem>>, vector<128x1024xbf16>,
    } else {
    }
    %c0 = arith.constant 0 : index
    %c0_1 = arith.constant 0 : index
    %3 = vector.load %arg2[%c0, %c0_1] : memref<128x128xf32, #tpu.memory_space<vmem>>, vector<128x128xf32>
    %c0_2 = arith.constant 0 : index
    %c0_3 = arith.constant 0 : index
    %c0_4 = arith.constant 0 : index
    %4 = vector.load %arg4[%c0_2, %c0_3, %c0_4] : memref<1x128x128xf32, #tpu.memory_space<vmem>>, vector<1x128x128xf32>
    %5 = vector.shape_cast %4 : vector<1x128x128xf32> to vector<128x128xf32>
    %cst = arith.constant dense<0.000000e+00> : vector<128x128xf32>
    %6 = tpu.matmul %3, %5, %cst {dimension_numbers = #tpu.dot_dimension_numbers<[1], [0], [0], [1], [0, 0, 1, 1], [], []>} : vector<128x128xf32>, vector<128x128xf32>, vector<128x128xf32> -> vector<128x128xf32>
    %c0_5 = arith.constant 0 : index
    %c0_6 = arith.constant 0 : index
    %c0_7 = arith.constant 0 : index
    %7 = vector.load %arg5[%c0_5, %c0_6, %c0_7] : memref<1x1x128xf32, #tpu.memory_space<vmem>>, vector<1x1x128xf32>
    %8 = vector.shape_cast %7 : vector<1x1x128xf32> to vector<1x128xf32>
    %9 = vector.broadcast %8 : vector<1x128xf32> to vector<128x128xf32>
    %10 = arith.addf %6, %9 : vector<128x128xf32>
    %cst_8 = arith.constant 0.000000e+00 : f32
    %11 = vector.broadcast %cst_8 : f32 to vector<128x128xf32>
    %12 = arith.maximumf %10, %11 : vector<128x128xf32>
    %cst_9 = arith.constant 0.000000e+00 : f32
    %13 = vector.broadcast %cst_9 : f32 to vector<128x128xf32>
    %14 = arith.cmpf ogt, %12, %13 : vector<128x128xf32>
    %15 = arith.extui %14 : vector<128x128xi1> to vector<128x128xi32>
    %16 = arith.sitofp %15 : vector<128x128xi32> to vector<128x128xf32>
    %17 = arith.truncf %16 : vector<128x128xf32> to vector<128x128xbf16>
    %c0_10 = arith.constant 0 : index
    %c0_11 = arith.constant 0 : index
    %18 = vector.load %arg11[%c0_10, %c0_11] : memref<128x128xf32, #tpu.memory_space<vmem>>, vector<128x128xf32>
    %19 = arith.truncf %12 : vector<128x128xf32> to vector<128x128xbf16>
    %c0_12 = arith.constant 0 : index
    %c0_13 = arith.constant 0 : index
    %20 = vector.load %arg6[%c0_12, %c0_13] : memref<128x128xbf16, #tpu.memory_space<vmem>>, vector<128x128xbf16>
    %cst_14 = arith.constant dense<0.000000e+00> : vector<128x128xf32>
    %21 = tpu.matmul %19, %20, %cst_14 {dimension_numbers = #tpu.dot_dimension_numbers<[1], [0], [0], [1], [0, 0, 1, 1], [], []>} : vector<128x128xbf16>, vector<128x128xbf16>, vector<128x128xf32> -> vector<128x128xf32>
    %22 = arith.addf %18, %21 : vector<128x128xf32>
    %23 = arith.truncf %3 : vector<128x128xf32> to vector<128x128xbf16>
    %c0_15 = arith.constant 0 : index
    %c0_16 = arith.constant 0 : index
    %c0_17 = arith.constant 0 : index
    %24 = vector.load %arg7[%c0_15, %c0_16, %c0_17] : memref<1x128x1024xbf16, #tpu.memory_space<vmem>>, vector<1x128x1024xbf16>
    %25 = vector.shape_cast %24 : vector<1x128x1024xbf16> to vector<128x1024xbf16>
    %cst_18 = arith.constant dense<0.000000e+00> : vector<128x1024xf32>
    %26 = tpu.matmul %23, %25, %cst_18 {dimension_numbers = #tpu.dot_dimension_numbers<[1], [0], [0], [1], [0, 0, 1, 1], [], []>} : vector<128x128xbf16>, vector<128x1024xbf16>, vector<128x1024xf32> -> vector<128x1024xf32>
    %c0_19 = arith.constant 0 : index
    %c0_20 = arith.constant 0 : index
    %c0_21 = arith.constant 0 : index
    %27 = vector.load %arg8[%c0_19, %c0_20, %c0_21] : memref<1x1x1024xf32, #tpu.memory_space<vmem>>, vector<1x1x1024xf32>
    %28 = vector.shape_cast %27 : vector<1x1x1024xf32> to vector<1x1024xf32>
    %29 = vector.broadcast %28 : vector<1x1024xf32> to vector<128x1024xf32>
    %30 = arith.addf %26, %29 : vector<128x1024xf32>
    %c0_22 = arith.constant 0 : index
    %c0_23 = arith.constant 0 : index
    %31 = vector.load %arg12[%c0_22, %c0_23] : memref<128x1024xbf16, #tpu.memory_space<vmem>>, vector<128x1024xbf16>
    %cst_24 = arith.constant dense<0.000000e+00> : vector<128x1024xf32>
    %32 = tpu.matmul %17, %31, %cst_24 {dimension_numbers = #tpu.dot_dimension_numbers<[1], [0], [0], [1], [0, 0, 1, 1], [], []>} : vector<128x128xbf16>, vector<128x1024xbf16>, vector<128x1024xf32> -> vector<128x1024xf32>
    %cst_25 = arith.constant 0.000000e+00 : f32
    %33 = vector.broadcast %cst_25 : f32 to vector<128x1024xf32>
    %34 = arith.maximumf %30, %33 : vector<128x1024xf32>
    %35 = arith.mulf %34, %32 : vector<128x1024xf32>
    %36 = arith.truncf %35 : vector<128x1024xf32> to vector<128x1024xbf16>
    %c0_26 = arith.constant 0 : index
    %c0_27 = arith.constant 0 : index
    %37 = vector.load %arg9[%c0_26, %c0_27] : memref<1024x128xbf16, #tpu.memory_space<vmem>>, vector<1024x128xbf16>
    %cst_28 = arith.constant dense<0.000000e+00> : vector<128x128xf32>
    %38 = tpu.matmul %36, %37, %cst_28 {dimension_numbers = #tpu.dot_dimension_numbers<[1], [0], [0], [1], [0, 0, 1, 1], [], []>} : vector<128x1024xbf16>, vector<1024x128xbf16>, vector<128x128xf32> -> vector<128x128xf32>
    %39 = arith.addf %22, %38 : vector<128x128xf32>
    %c0_29 = arith.constant 0 : index
    %c0_30 = arith.constant 0 : index
    %40 = vector.load %arg10[%c0_29, %c0_30] : memref<128x128xbf16, #tpu.memory_space<vmem>>, vector<128x128xbf16>
    %cst_31 = arith.constant dense<0.000000e+00> : vector<128x128xf32>
    %41 = tpu.matmul %17, %40, %cst_31 {dimension_numbers = #tpu.dot_dimension_numbers<[1], [0], [0], [1], [0, 0, 1, 1], [], []>} : vector<128x128xbf16>, vector<128x128xbf16>, vector<128x128xf32> -> vector<128x128xf32>
    %42 = arith.addf %39, %41 : vector<128x128xf32>
    %c0_32 = arith.constant 0 : index
    %c0_33 = arith.constant 0 : index
    %43 = vector.load %arg11[%c0_32, %c0_33] : memref<128x128xf32, #tpu.memory_space<vmem>>, vector<128x128xf32>
    tpu.vector_store %arg11[%c0_32, %c0_33], %42 {strides = array<i32>} : memref<128x128xf32, #tpu.memory_space<vmem>>, vector<128x128xf32>,
    return
  }
  func.func @transform_0(%arg0: i32, %arg1: i32) -> (i32, i32) {
    %c0_i32 = arith.constant 0 : i32
    %c0_i32_0 = arith.constant 0 : i32
    return %arg0, %c0_i32 : i32, i32
  }
  func.func @transform_1(%arg0: i32, %arg1: i32) -> (i32, i32) {
    %c0_i32 = arith.constant 0 : i32
    %c0_i32_0 = arith.constant 0 : i32
    %c0_i32_1 = arith.constant 0 : i32
    return %c0_i32, %c0_i32_0 : i32, i32
  }
  func.func @transform_2(%arg0: i32, %arg1: i32) -> (i32, i32, i32) {
    %c0_i32 = arith.constant 0 : i32
    %c0_i32_0 = arith.constant 0 : i32
    %c0_i32_1 = arith.constant 0 : i32
    return %arg1, %c0_i32, %c0_i32_0 : i32, i32, i32
  }
  func.func @transform_3(%arg0: i32, %arg1: i32) -> (i32, i32, i32) {
    %c0_i32 = arith.constant 0 : i32
    %c0_i32_0 = arith.constant 0 : i32
    %c0_i32_1 = arith.constant 0 : i32
    return %arg1, %c0_i32, %c0_i32_0 : i32, i32, i32
  }
  func.func @transform_4(%arg0: i32, %arg1: i32) -> (i32, i32) {
    %c0_i32 = arith.constant 0 : i32
    %c0_i32_0 = arith.constant 0 : i32
    return %arg1, %c0_i32 : i32, i32
  }
  func.func @transform_5(%arg0: i32, %arg1: i32) -> (i32, i32, i32) {
    %c0_i32 = arith.constant 0 : i32
    %c0_i32_0 = arith.constant 0 : i32
    %c0_i32_1 = arith.constant 0 : i32
    return %arg1, %c0_i32, %c0_i32_0 : i32, i32, i32
  }
  func.func @transform_6(%arg0: i32, %arg1: i32) -> (i32, i32, i32) {
    %c0_i32 = arith.constant 0 : i32
    %c0_i32_0 = arith.constant 0 : i32
    %c0_i32_1 = arith.constant 0 : i32
    return %arg1, %c0_i32, %c0_i32_0 : i32, i32, i32
  }
  func.func @transform_7(%arg0: i32, %arg1: i32) -> (i32, i32) {
    %c0_i32 = arith.constant 0 : i32
    %c0_i32_0 = arith.constant 0 : i32
    return %arg1, %c0_i32 : i32, i32
  }
  func.func @transform_8(%arg0: i32, %arg1: i32) -> (i32, i32) {
    %c0_i32 = arith.constant 0 : i32
    %c0_i32_0 = arith.constant 0 : i32
    return %arg1, %c0_i32 : i32, i32
  }
  func.func @transform_9(%arg0: i32, %arg1: i32) -> (i32, i32) {
    %c0_i32 = arith.constant 0 : i32
    %c0_i32_0 = arith.constant 0 : i32
    return %arg0, %c0_i32 : i32, i32
  }
}

</mosaic_0001>

<llo_original>
// kernel: tpu_custom_call.1
$region0: #{tpu_custom_call.1}
  #allocation0 [shape = 'u32[]', space=smem, size = 0x4, offset = 0x4, fixed_abs, tag = 'smem constant byte address 0x4 - core index']
  #allocation1 [shape = 'u32[144,128]{1,0:T(1,128)}', space=vmem, size = 0x12000, scoped, tag = 'internal scratch']
  #allocation2 [shape = 'bf16[128,1024]{1,0:T(16,128)(2,1)}', space=vmem, size = 0x40000, scoped, tag = 'scratch operand']
  %s0 = inlined_call_operand.hbm [shape: f32[256,128], index: 0, kind: input, shape index: {}]
  %s1 = inlined_call_operand.vmem [shape: f32[1,128], index: 1, kind: input, shape index: {}]
  %s2 = inlined_call_operand.hbm [shape: f32[2,128,128], index: 2, kind: input, shape index: {}]
  %s3 = inlined_call_operand.vmem [shape: f32[2,1,128], index: 3, kind: input, shape index: {}]
  %s4 = inlined_call_operand.hbm [shape: bf16[256,128], index: 4, kind: input, shape index: {}]
  %s5 = inlined_call_operand.hbm [shape: bf16[2,128,1024], index: 5, kind: input, shape index: {}]
  %s6 = inlined_call_operand.vmem [shape: f32[2,1,1024], index: 6, kind: input, shape index: {}]
  %s7 = inlined_call_operand.hbm [shape: bf16[2048,128], index: 7, kind: input, shape index: {}]
  %s8 = inlined_call_operand.hbm [shape: bf16[256,128], index: 8, kind: input, shape index: {}]
  %s9 = inlined_call_operand.hbm [shape: f32[256,128], index: 9, kind: output, shape index: {}]
  %s10 = sld [smem:[#allocation0]]
  $region97: #{tpu_custom_call.1} parent=0
    _
  %s12 = ssub.s32 1, %s10
  %s13 = scalar_select 0, %s12, %s10
  $region1: #{tpu_custom_call.1} parent=0
    #allocation3 [shape = 'u8[131072]{0}', space=vmem, size = 0x20000, scoped, tag = 'input window, operand 0']
    #allocation4 [shape = 's32[2]{0}', space=sflag, size = 0x8, scoped, tag = 'scoped memory for tpu_custom_call.1']
    #allocation5 [shape = 's32[2]{0}', space=sflag, size = 0x8, scoped, tag = 'scoped memory for tpu_custom_call.1']
    #allocation6 [shape = 'u8[131072]{0}', space=vmem, size = 0x20000, scoped, tag = 'input window, operand 2']
    #allocation7 [shape = 's32[2]{0}', space=sflag, size = 0x8, scoped, tag = 'scoped memory for tpu_custom_call.1']
    #allocation8 [shape = 'u8[65536]{0}', space=vmem, size = 0x10000, scoped, tag = 'input window, operand 4']
    #allocation9 [shape = 'u8[524288]{0}', space=vmem, size = 0x80000, scoped, tag = 'input window, operand 5']
    #allocation10 [shape = 's32[2]{0}', space=sflag, size = 0x8, scoped, tag = 'scoped memory for tpu_custom_call.1']
    #allocation11 [shape = 'u8[524288]{0}', space=vmem, size = 0x80000, scoped, tag = 'input window, operand 7']
    #allocation12 [shape = 'u8[65536]{0}', space=vmem, size = 0x10000, scoped, tag = 'input window, operand 8']
    #allocation13 [shape = 's32[2]{0}', space=sflag, size = 0x8, scoped, tag = 'scoped memory for tpu_custom_call.1']
    #allocation14 [shape = 'u8[131072]{0}', space=vmem, size = 0x20000, scoped, tag = 'output window, operand 0']
    %14 = vsyncpa [#allocation4], 0
    %s15 = scalar_lea.sflag [#allocation4], 1
    %16 = vsyncpa %s15, 0
    %17 = vsyncpa [#allocation7], 0
    %s18 = scalar_lea.sflag [#allocation7], 1
    %19 = vsyncpa %s18, 0
    %20 = vsyncpa [#allocation10], 0
    %s21 = scalar_lea.sflag [#allocation10], 1
    %22 = vsyncpa %s21, 0
    %23 = vsyncpa [#allocation13], 0
    %s24 = scalar_lea.sflag [#allocation13], 1
    %25 = vsyncpa %s24, 0
    %26 = vsyncpa [#allocation5], 0
    %s27 = scalar_lea.sflag [#allocation5], 1
    %28 = vsyncpa %s27, 0
    loop: start=0, step=1, limit=6
    $region2: #{tpu_custom_call.1} parent=1 // loop_pre_header
      _
    $region3: #{tpu_custom_call.1} parent=1 // loop_header
      %s30 = sphi 0, %s34
      %p31 = scmp.ge.s32.totalorder %s30, 6
      %s37 = sphi 0, %s49
      %s38 = sphi 0, %s45
      %s39 = sphi 0, %s37
      %s40 = sphi 0, %s38
      %s41 = sphi 0, %s39
      %s42 = sphi 0, %s40
      %s52 = sphi 0, %s54
      %s55 = sphi 0, %s52
      %s56 = sphi 0, %s55
      %s72 = sphi 0, %s56
      %s76 = sphi 0, %s76
      %s78 = sphi 0, %s76
      %s79 = sphi 0, %s78
      %s93 = sphi 0, %s79
      %s99 = sphi 0, %s101
      %s102 = sphi 0, %s99
      %s103 = sphi 0, %s102
      %s119 = sphi 0, %s103
      %s125 = sphi 0, %s127
      %s128 = sphi 0, %s125
      %s129 = sphi 0, %s128
      %s145 = sphi 0, %s129
      %s151 = sphi 0, %s153
      %s154 = sphi 0, %s151
      %s155 = sphi 0, %s154
      %s171 = sphi 0, %s155
      %s177 = sphi 0, %s179
      %s180 = sphi 0, %s177
      %s181 = sphi 0, %s180
      %s197 = sphi 0, %s181
      %s203 = sphi 0, %s205
      %s206 = sphi 0, %s203
      %s207 = sphi 0, %s206
      %s223 = sphi 0, %s207
      %s229 = sphi 0, %s231
      %s232 = sphi 0, %s229
      %s233 = sphi 0, %s232
      %s249 = sphi 0, %s233
      %s255 = sphi 0, %s257
      %s258 = sphi 0, %s255
      %s259 = sphi 0, %s258
      %s275 = sphi 0, %s259
      %s281 = sphi 0, %s283
      %s284 = sphi 0, %s281
      %s285 = sphi 0, %s284
      %s301 = sphi 0, %s285
    $region4: #{tpu_custom_call.1} parent=1 // loop_header_branch
      %33 = sbr.rel (%p31) target = $region8
    $region5: #{tpu_custom_call.1} parent=1 // loop_body
      %s35 = ssub.s32 %s30, 1
      %s36 = ssub.s32 %s30, 2
      %s43 = sadd.s32 1, %s38
      %p44 = scmp.ge.s32.totalorder %s43, 2
      %s45 = scalar_select %p44, 0, %s43
      %s46 = sadd.s32 1, %s37
      %s47 = scalar_select %p44, %s46, %s37
      %p48 = scmp.ge.s32.totalorder %s47, 2
      %s49 = scalar_select %p48, 0, %s47
      %s50 = ssub.s32 %s37, %s49
      %p51 = scmp.eq.s32.totalorder %s50, 0
      %s53 = sadd.s32 %s52, 1
      %s54 = scalar_select %p51, %s52, %s53
      %p57 = pneg %p51
      %p58 = scmp.eq.s32.totalorder %s30, 3
      %p59 = por %p57, %p58
      %p60 = scmp.ne.s32.totalorder %s52, %s55
      %p61 = scmp.eq.s32.totalorder %s30, 0
      %p62 = por %p60, %p61
      %p63 = scmp.ne.s32.totalorder %s52, %s55
      %p64 = scmp.eq.s32.totalorder %s35, 3
      %p65 = por %p63, %p64
      %p66 = scmp.ne.s32.totalorder %s55, %s56
      %p67 = scmp.eq.s32.totalorder %s35, 0
      %p68 = por %p66, %p67
      %p69 = scmp.ne.s32.totalorder %s55, %s56
      %p70 = scmp.eq.s32.totalorder %s36, 3
      %p71 = por %p69, %p70
      %p73 = scmp.ne.s32.totalorder %s56, %s72
      %p74 = scmp.eq.s32.totalorder %s36, 0
      %p75 = por %p73, %p74
      %s77 = sadd.s32 %s76, 1
      %p80 = scmp.eq.s32.totalorder %s30, 3
      %p81 = scmp.ne.s32.totalorder %s76, %s78
      %p82 = scmp.eq.s32.totalorder %s30, 0
      %p83 = por %p81, %p82
      %p84 = scmp.ne.s32.totalorder %s76, %s78
      %p85 = scmp.eq.s32.totalorder %s35, 3
      %p86 = por %p84, %p85
      %p87 = scmp.ne.s32.totalorder %s78, %s79
      %p88 = scmp.eq.s32.totalorder %s35, 0
      %p89 = por %p87, %p88
      %p90 = scmp.ne.s32.totalorder %s78, %s79
      %p91 = scmp.eq.s32.totalorder %s36, 3
      %p92 = por %p90, %p91
      %p94 = scmp.ne.s32.totalorder %s79, %s93
      %p95 = scmp.eq.s32.totalorder %s36, 0
      %p96 = por %p94, %p95
      %s97 = ssub.s32 %s38, %s45
      %p98 = scmp.eq.s32.totalorder %s97, 0
      %s100 = sadd.s32 %s99, 1
      %s101 = scalar_select %p98, %s99, %s100
      %p104 = pneg %p98
      %p105 = scmp.eq.s32.totalorder %s30, 3
      %p106 = por %p104, %p105
      %p107 = scmp.ne.s32.totalorder %s99, %s102
      %p108 = scmp.eq.s32.totalorder %s30, 0
      %p109 = por %p107, %p108
      %p110 = scmp.ne.s32.totalorder %s99, %s102
      %p111 = scmp.eq.s32.totalorder %s35, 3
      %p112 = por %p110, %p111
      %p113 = scmp.ne.s32.totalorder %s102, %s103
      %p114 = scmp.eq.s32.totalorder %s35, 0
      %p115 = por %p113, %p114
      %p116 = scmp.ne.s32.totalorder %s102, %s103
      %p117 = scmp.eq.s32.totalorder %s36, 3
      %p118 = por %p116, %p117
      %p120 = scmp.ne.s32.totalorder %s103, %s119
      %p121 = scmp.eq.s32.totalorder %s36, 0
      %p122 = por %p120, %p121
      %s123 = ssub.s32 %s38, %s45
      %p124 = scmp.eq.s32.totalorder %s123, 0
      %s126 = sadd.s32 %s125, 1
      %s127 = scalar_select %p124, %s125, %s126
      %p130 = pneg %p124
      %p131 = scmp.eq.s32.totalorder %s30, 3
      %p132 = por %p130, %p131
      %p133 = scmp.ne.s32.totalorder %s125, %s128
      %p134 = scmp.eq.s32.totalorder %s30, 0
      %p135 = por %p133, %p134
      %p136 = scmp.ne.s32.totalorder %s125, %s128
      %p137 = scmp.eq.s32.totalorder %s35, 3
      %p138 = por %p136, %p137
      %p139 = scmp.ne.s32.totalorder %s128, %s129
      %p140 = scmp.eq.s32.totalorder %s35, 0
      %p141 = por %p139, %p140
      %p142 = scmp.ne.s32.totalorder %s128, %s129
      %p143 = scmp.eq.s32.totalorder %s36, 3
      %p144 = por %p142, %p143
      %p146 = scmp.ne.s32.totalorder %s129, %s145
      %p147 = scmp.eq.s32.totalorder %s36, 0
      %p148 = por %p146, %p147
      %s149 = ssub.s32 %s38, %s45
      %p150 = scmp.eq.s32.totalorder %s149, 0
      %s152 = sadd.s32 %s151, 1
      %s153 = scalar_select %p150, %s151, %s152
      %p156 = pneg %p150
      %p157 = scmp.eq.s32.totalorder %s30, 3
      %p158 = por %p156, %p157
      %p159 = scmp.ne.s32.totalorder %s151, %s154
      %p160 = scmp.eq.s32.totalorder %s30, 0
      %p161 = por %p159, %p160
      %p162 = scmp.ne.s32.totalorder %s151, %s154
      %p163 = scmp.eq.s32.totalorder %s35, 3
      %p164 = por %p162, %p163
      %p165 = scmp.ne.s32.totalorder %s154, %s155
      %p166 = scmp.eq.s32.totalorder %s35, 0
      %p167 = por %p165, %p166
      %p168 = scmp.ne.s32.totalorder %s154, %s155
      %p169 = scmp.eq.s32.totalorder %s36, 3
      %p170 = por %p168, %p169
      %p172 = scmp.ne.s32.totalorder %s155, %s171
      %p173 = scmp.eq.s32.totalorder %s36, 0
      %p174 = por %p172, %p173
      %s175 = ssub.s32 %s38, %s45
      %p176 = scmp.eq.s32.totalorder %s175, 0
      %s178 = sadd.s32 %s177, 1
      %s179 = scalar_select %p176, %s177, %s178
      %p182 = pneg %p176
      %p183 = scmp.eq.s32.totalorder %s30, 3
      %p184 = por %p182, %p183
      %p185 = scmp.ne.s32.totalorder %s177, %s180
      %p186 = scmp.eq.s32.totalorder %s30, 0
      %p187 = por %p185, %p186
      %p188 = scmp.ne.s32.totalorder %s177, %s180
      %p189 = scmp.eq.s32.totalorder %s35, 3
      %p190 = por %p188, %p189
      %p191 = scmp.ne.s32.totalorder %s180, %s181
      %p192 = scmp.eq.s32.totalorder %s35, 0
      %p193 = por %p191, %p192
      %p194 = scmp.ne.s32.totalorder %s180, %s181
      %p195 = scmp.eq.s32.totalorder %s36, 3
      %p196 = por %p194, %p195
      %p198 = scmp.ne.s32.totalorder %s181, %s197
      %p199 = scmp.eq.s32.totalorder %s36, 0
      %p200 = por %p198, %p199
      %s201 = ssub.s32 %s38, %s45
      %p202 = scmp.eq.s32.totalorder %s201, 0
      %s204 = sadd.s32 %s203, 1
      %s205 = scalar_select %p202, %s203, %s204
      %p208 = pneg %p202
      %p209 = scmp.eq.s32.totalorder %s30, 3
      %p210 = por %p208, %p209
      %p211 = scmp.ne.s32.totalorder %s203, %s206
      %p212 = scmp.eq.s32.totalorder %s30, 0
      %p213 = por %p211, %p212
      %p214 = scmp.ne.s32.totalorder %s203, %s206
      %p215 = scmp.eq.s32.totalorder %s35, 3
      %p216 = por %p214, %p215
      %p217 = scmp.ne.s32.totalorder %s206, %s207
      %p218 = scmp.eq.s32.totalorder %s35, 0
      %p219 = por %p217, %p218
      %p220 = scmp.ne.s32.totalorder %s206, %s207
      %p221 = scmp.eq.s32.totalorder %s36, 3
      %p222 = por %p220, %p221
      %p224 = scmp.ne.s32.totalorder %s207, %s223
      %p225 = scmp.eq.s32.totalorder %s36, 0
      %p226 = por %p224, %p225
      %s227 = ssub.s32 %s38, %s45
      %p228 = scmp.eq.s32.totalorder %s227, 0
      %s230 = sadd.s32 %s229, 1
      %s231 = scalar_select %p228, %s229, %s230
      %p234 = pneg %p228
      %p235 = scmp.eq.s32.totalorder %s30, 3
      %p236 = por %p234, %p235
      %p237 = scmp.ne.s32.totalorder %s229, %s232
      %p238 = scmp.eq.s32.totalorder %s30, 0
      %p239 = por %p237, %p238
      %p240 = scmp.ne.s32.totalorder %s229, %s232
      %p241 = scmp.eq.s32.totalorder %s35, 3
      %p242 = por %p240, %p241
      %p243 = scmp.ne.s32.totalorder %s232, %s233
      %p244 = scmp.eq.s32.totalorder %s35, 0
      %p245 = por %p243, %p244
      %p246 = scmp.ne.s32.totalorder %s232, %s233
      %p247 = scmp.eq.s32.totalorder %s36, 3
      %p248 = por %p246, %p247
      %p250 = scmp.ne.s32.totalorder %s233, %s249
      %p251 = scmp.eq.s32.totalorder %s36, 0
      %p252 = por %p250, %p251
      %s253 = ssub.s32 %s38, %s45
      %p254 = scmp.eq.s32.totalorder %s253, 0
      %s256 = sadd.s32 %s255, 1
      %s257 = scalar_select %p254, %s255, %s256
      %p260 = pneg %p254
      %p261 = scmp.eq.s32.totalorder %s30, 3
      %p262 = por %p260, %p261
      %p263 = scmp.ne.s32.totalorder %s255, %s258
      %p264 = scmp.eq.s32.totalorder %s30, 0
      %p265 = por %p263, %p264
      %p266 = scmp.ne.s32.totalorder %s255, %s258
      %p267 = scmp.eq.s32.totalorder %s35, 3
      %p268 = por %p266, %p267
      %p269 = scmp.ne.s32.totalorder %s258, %s259
      %p270 = scmp.eq.s32.totalorder %s35, 0
      %p271 = por %p269, %p270
      %p272 = scmp.ne.s32.totalorder %s258, %s259
      %p273 = scmp.eq.s32.totalorder %s36, 3
      %p274 = por %p272, %p273
      %p276 = scmp.ne.s32.totalorder %s259, %s275
      %p277 = scmp.eq.s32.totalorder %s36, 0
      %p278 = por %p276, %p277
      %s279 = ssub.s32 %s37, %s49
      %p280 = scmp.eq.s32.totalorder %s279, 0
      %s282 = sadd.s32 %s281, 1
      %s283 = scalar_select %p280, %s281, %s282
      %p286 = pneg %p280
      %p287 = scmp.eq.s32.totalorder %s30, 3
      %p288 = por %p286, %p287
      %p289 = scmp.ne.s32.totalorder %s281, %s284
      %p290 = scmp.eq.s32.totalorder %s30, 0
      %p291 = por %p289, %p290
      %p292 = scmp.ne.s32.totalorder %s281, %s284
      %p293 = scmp.eq.s32.totalorder %s35, 3
      %p294 = por %p292, %p293
      %p295 = scmp.ne.s32.totalorder %s284, %s285
      %p296 = scmp.eq.s32.totalorder %s35, 0
      %p297 = por %p295, %p296
      %p298 = scmp.ne.s32.totalorder %s284, %s285
      %p299 = scmp.eq.s32.totalorder %s36, 3
      %p300 = por %p298, %p299
      %p302 = scmp.ne.s32.totalorder %s285, %s301
      %p303 = scmp.eq.s32.totalorder %s36, 0
      %p304 = por %p302, %p303
      %p305 = scmp.le.s32.totalorder 1, %s30
      %p306 = scmp.lt.s32.totalorder %s30, 5
      %p307 = pnand %p305, %p306
      %p308 = pneg %p307
      // Predicated region
      $region9: #{tpu_custom_call.1} parent=5 // pred_check
        _
      $region10: #{tpu_custom_call.1} parent=5 // pred_check_branch
        %310 = sbr.rel (%p307) target = $region12
      $region11: #{tpu_custom_call.1} parent=5 // pred_region
        %s311 = ssub.s32 %s30, 1
        // Predicated region
        $region13: #{tpu_custom_call.1} parent=11 // pred_check
          %p312 = pneg %p89
        $region14: #{tpu_custom_call.1} parent=11 // pred_check_branch
          %314 = sbr.rel (%p312) target = $region16
        $region15: #{tpu_custom_call.1} parent=11 // pred_region
          _
        $region16: #{tpu_custom_call.1} parent=11 // pred_fallthru
          _
      $region12: #{tpu_custom_call.1} parent=5 // pred_fallthru
        _
      %p315 = scmp.lt.s32.totalorder %s30, 4
      // Predicated region
      $region17: #{tpu_custom_call.1} parent=5 // pred_check
        %p316 = pneg %p315
      $region18: #{tpu_custom_call.1} parent=5 // pred_check_branch
        %318 = sbr.rel (%p316) target = $region20
      $region19: #{tpu_custom_call.1} parent=5 // pred_region
        // Predicated region
        $region21: #{tpu_custom_call.1} parent=19 // pred_check
          %p319 = pneg %p62
        $region22: #{tpu_custom_call.1} parent=19 // pred_check_branch
          %321 = sbr.rel (%p319) target = $region24
        $region23: #{tpu_custom_call.1} parent=19 // pred_region
          %s322 = sand.u32 %s52, 1
          %s323 = scalar_lea.sflag [#allocation4], %s322
          %s324 = sand.u32 %s52, 1
          %s325 = smul.addr %s324, 128
          %s326 = scalar_lea.vmem [#allocation3], %s325
          %s327 = smul.u32 16, %s37
          %s329 = ssub.s32 2048, 2048
          %330 = vsyncadd %s323, %s329
          %s331 = smul.addr %s327, 128
          %s332 = scalar_lea.hbm %s0, %s331
          %s333 = sshll.u32 %s326, 4
          %s334 = int_to_ptr.vmem [resolvable:$true] %s333
          %339 = dma.hbm_to_vmem [thread:$0]  %s332, 2048, %s334, %s323, 128, 128, 8
        $region24: #{tpu_custom_call.1} parent=19 // pred_fallthru
          _
        // Predicated region
        $region25: #{tpu_custom_call.1} parent=19 // pred_check
          %p340 = pneg %p109
        $region26: #{tpu_custom_call.1} parent=19 // pred_check_branch
          %342 = sbr.rel (%p340) target = $region28
        $region27: #{tpu_custom_call.1} parent=19 // pred_region
          %s343 = sand.u32 %s30, 1
          %s344 = scalar_lea.sflag [#allocation7], %s343
          %s345 = sand.u32 %s99, 1
          %s346 = smul.addr %s345, 128
          %s347 = scalar_lea.vmem [#allocation6], %s346
          %s349 = ssub.s32 2048, 2048
          %350 = vsyncadd %s344, %s349
          %s351 = smul.addr %s38, 16
          %s352 = smul.addr %s351, 128
          %s353 = scalar_lea.hbm %s2, %s352
          %s354 = sshll.u32 %s347, 4
          %s355 = int_to_ptr.vmem [resolvable:$true] %s354
          %360 = dma.hbm_to_vmem [thread:$0]  %s353, 2048, %s355, %s344, 128, 128, 8
        $region28: #{tpu_custom_call.1} parent=19 // pred_fallthru
          _
        // Predicated region
        $region29: #{tpu_custom_call.1} parent=19 // pred_check
          %p361 = pneg %p135
        $region30: #{tpu_custom_call.1} parent=19 // pred_check_branch
          %363 = sbr.rel (%p361) target = $region32
        $region31: #{tpu_custom_call.1} parent=19 // pred_region
          %p364 = scmp.lt.s32.totalorder %s38, 1
          %s365 = scalar_select %p364, %s38, 1
          %s366 = scalar_lea.vmem %s3, %s365
        $region32: #{tpu_custom_call.1} parent=19 // pred_fallthru
          _
        // Predicated region
        $region33: #{tpu_custom_call.1} parent=19 // pred_check
          %p367 = pneg %p161
        $region34: #{tpu_custom_call.1} parent=19 // pred_check_branch
          %369 = sbr.rel (%p367) target = $region36
        $region35: #{tpu_custom_call.1} parent=19 // pred_region
          %s370 = sand.u32 %s30, 1
          %s371 = scalar_lea.sflag [#allocation7], %s370
          %s372 = sand.u32 %s151, 1
          %s373 = smul.addr %s372, 64
          %s374 = scalar_lea.vmem [#allocation8], %s373
          %s375 = smul.u32 16, %s38
          %s377 = ssub.s32 1024, 1024
          %378 = vsyncadd %s371, %s377
          %s379 = smul.addr %s375, 64
          %s380 = scalar_lea.hbm %s4, %s379
          %s381 = sshll.u32 %s374, 4
          %s382 = int_to_ptr.vmem [resolvable:$true] %s381
          %387 = dma.hbm_to_vmem [thread:$0]  %s380, 1024, %s382, %s371, 64, 64, 4
        $region36: #{tpu_custom_call.1} parent=19 // pred_fallthru
          _
        // Predicated region
        $region37: #{tpu_custom_call.1} parent=19 // pred_check
          %p388 = pneg %p187
        $region38: #{tpu_custom_call.1} parent=19 // pred_check_branch
          %390 = sbr.rel (%p388) target = $region40
        $region39: #{tpu_custom_call.1} parent=19 // pred_region
          %s391 = sand.u32 %s30, 1
          %s392 = scalar_lea.sflag [#allocation10], %s391
          %s393 = sand.u32 %s177, 1
          %s394 = smul.addr %s393, 512
          %s395 = scalar_lea.vmem [#allocation9], %s394
          %s397 = ssub.s32 8192, 8192
          %398 = vsyncadd %s392, %s397
          %s399 = smul.addr %s38, 128
          %s400 = smul.addr %s399, 64
          %s401 = scalar_lea.hbm %s5, %s400
          %s402 = sshll.u32 %s395, 4
          %s403 = int_to_ptr.vmem [resolvable:$true] %s402
          %408 = dma.hbm_to_vmem [thread:$0]  %s401, 8192, %s403, %s392, 512, 512, 32
        $region40: #{tpu_custom_call.1} parent=19 // pred_fallthru
          _
        // Predicated region
        $region41: #{tpu_custom_call.1} parent=19 // pred_check
          %p409 = pneg %p213
        $region42: #{tpu_custom_call.1} parent=19 // pred_check_branch
          %411 = sbr.rel (%p409) target = $region44
        $region43: #{tpu_custom_call.1} parent=19 // pred_region
          %p412 = scmp.lt.s32.totalorder %s38, 1
          %s413 = scalar_select %p412, %s38, 1
          %s414 = smul.addr %s413, 8
          %s415 = scalar_lea.vmem %s6, %s414
        $region44: #{tpu_custom_call.1} parent=19 // pred_fallthru
          _
        // Predicated region
        $region45: #{tpu_custom_call.1} parent=19 // pred_check
          %p416 = pneg %p239
        $region46: #{tpu_custom_call.1} parent=19 // pred_check_branch
          %418 = sbr.rel (%p416) target = $region48
        $region47: #{tpu_custom_call.1} parent=19 // pred_region
          %s419 = sand.u32 %s30, 1
          %s420 = scalar_lea.sflag [#allocation10], %s419
          %s421 = sand.u32 %s229, 1
          %s422 = smul.addr %s421, 512
          %s423 = scalar_lea.vmem [#allocation11], %s422
          %s424 = smul.u32 128, %s38
          %s426 = ssub.s32 8192, 8192
          %427 = vsyncadd %s420, %s426
          %s428 = smul.addr %s424, 64
          %s429 = scalar_lea.hbm %s7, %s428
          %s430 = sshll.u32 %s423, 4
          %s431 = int_to_ptr.vmem [resolvable:$true] %s430
          %436 = dma.hbm_to_vmem [thread:$0]  %s429, 8192, %s431, %s420, 64, 64, 4
        $region48: #{tpu_custom_call.1} parent=19 // pred_fallthru
          _
        // Predicated region
        $region49: #{tpu_custom_call.1} parent=19 // pred_check
          %p437 = pneg %p265
        $region50: #{tpu_custom_call.1} parent=19 // pred_check_branch
          %439 = sbr.rel (%p437) target = $region52
        $region51: #{tpu_custom_call.1} parent=19 // pred_region
          %s440 = sand.u32 %s255, 1
          %s441 = scalar_lea.sflag [#allocation13], %s440
          %s442 = sand.u32 %s255, 1
          %s443 = smul.addr %s442, 64
          %s444 = scalar_lea.vmem [#allocation12], %s443
          %s445 = smul.u32 16, %s38
          %s447 = ssub.s32 1024, 1024
          %448 = vsyncadd %s441, %s447
          %s449 = smul.addr %s445, 64
          %s450 = scalar_lea.hbm %s8, %s449
          %s451 = sshll.u32 %s444, 4
          %s452 = int_to_ptr.vmem [resolvable:$true] %s451
          %457 = dma.hbm_to_vmem [thread:$0]  %s450, 1024, %s452, %s441, 64, 64, 4
        $region52: #{tpu_custom_call.1} parent=19 // pred_fallthru
          _
      $region20: #{tpu_custom_call.1} parent=5 // pred_fallthru
        _
      %p458 = scmp.le.s32.totalorder 1, %s30
      %p459 = scmp.lt.s32.totalorder %s30, 5
      %p460 = pnand %p458, %p459
      %p461 = pneg %p460
      // Predicated region
      $region53: #{tpu_custom_call.1} parent=5 // pred_check
        _
      $region54: #{tpu_custom_call.1} parent=5 // pred_check_branch
        %463 = sbr.rel (%p460) target = $region56
      $region55: #{tpu_custom_call.1} parent=5 // pred_region
        %s464 = ssub.s32 %s30, 1
        %s465 = sand.u32 %s55, 1
        %s466 = scalar_lea.sflag [#allocation4], %s465
        %s467 = sand.u32 %s55, 1
        %s468 = smul.addr %s467, 128
        %s469 = scalar_lea.vmem [#allocation3], %s468
        // Predicated region
        $region57: #{tpu_custom_call.1} parent=55 // pred_check
          %p470 = pneg %p68
        $region58: #{tpu_custom_call.1} parent=55 // pred_check_branch
          %472 = sbr.rel (%p470) target = $region60
        $region59: #{tpu_custom_call.1} parent=55 // pred_region
          %473 = dma.done %s466, 2048
        $region60: #{tpu_custom_call.1} parent=55 // pred_fallthru
          _
        %s474 = sand.u32 %s35, 1
        %s475 = scalar_lea.sflag [#allocation7], %s474
        %s476 = sand.u32 %s102, 1
        %s477 = smul.addr %s476, 128
        %s478 = scalar_lea.vmem [#allocation6], %s477
        // Predicated region
        $region61: #{tpu_custom_call.1} parent=55 // pred_check
          %p479 = pneg %p115
        $region62: #{tpu_custom_call.1} parent=55 // pred_check_branch
          %481 = sbr.rel (%p479) target = $region64
        $region63: #{tpu_custom_call.1} parent=55 // pred_region
          %482 = dma.done %s475, 2048
        $region64: #{tpu_custom_call.1} parent=55 // pred_fallthru
          _
        %s483 = sand.u32 %s35, 1
        %s484 = scalar_lea.sflag [#allocation7], %s483
        %s485 = sand.u32 %s154, 1
        %s486 = smul.addr %s485, 64
        %s487 = scalar_lea.vmem [#allocation8], %s486
        // Predicated region
        $region65: #{tpu_custom_call.1} parent=55 // pred_check
          %p488 = pneg %p167
        $region66: #{tpu_custom_call.1} parent=55 // pred_check_branch
          %490 = sbr.rel (%p488) target = $region68
        $region67: #{tpu_custom_call.1} parent=55 // pred_region
          %491 = dma.done %s484, 1024
        $region68: #{tpu_custom_call.1} parent=55 // pred_fallthru
          _
        %s492 = sand.u32 %s35, 1
        %s493 = scalar_lea.sflag [#allocation10], %s492
        %s494 = sand.u32 %s180, 1
        %s495 = smul.addr %s494, 512
        %s496 = scalar_lea.vmem [#allocation9], %s495
        // Predicated region
        $region69: #{tpu_custom_call.1} parent=55 // pred_check
          %p497 = pneg %p193
        $region70: #{tpu_custom_call.1} parent=55 // pred_check_branch
          %499 = sbr.rel (%p497) target = $region72
        $region71: #{tpu_custom_call.1} parent=55 // pred_region
          %500 = dma.done %s493, 8192
        $region72: #{tpu_custom_call.1} parent=55 // pred_fallthru
          _
        %s501 = sand.u32 %s35, 1
        %s502 = scalar_lea.sflag [#allocation10], %s501
        %s503 = sand.u32 %s232, 1
        %s504 = smul.addr %s503, 512
        %s505 = scalar_lea.vmem [#allocation11], %s504
        // Predicated region
        $region73: #{tpu_custom_call.1} parent=55 // pred_check
          %p506 = pneg %p245
        $region74: #{tpu_custom_call.1} parent=55 // pred_check_branch
          %508 = sbr.rel (%p506) target = $region76
        $region75: #{tpu_custom_call.1} parent=55 // pred_region
          %509 = dma.done %s502, 8192
        $region76: #{tpu_custom_call.1} parent=55 // pred_fallthru
          _
        %s510 = sand.u32 %s258, 1
        %s511 = scalar_lea.sflag [#allocation13], %s510
        %s512 = sand.u32 %s258, 1
        %s513 = smul.addr %s512, 64
        %s514 = scalar_lea.vmem [#allocation12], %s513
        // Predicated region
        $region77: #{tpu_custom_call.1} parent=55 // pred_check
          %p515 = pneg %p271
        $region78: #{tpu_custom_call.1} parent=55 // pred_check_branch
          %517 = sbr.rel (%p515) target = $region80
        $region79: #{tpu_custom_call.1} parent=55 // pred_region
          %518 = dma.done %s511, 1024
        $region80: #{tpu_custom_call.1} parent=55 // pred_fallthru
          _
        %s519 = sand.u32 %s55, 1
        %s520 = scalar_lea.sflag [#allocation4], %s519
        %s521 = sand.u32 %s55, 1
        %s522 = smul.addr %s521, 128
        %s523 = scalar_lea.vmem [#allocation3], %s522
        %p524 = pneg %p68
        %p525 = pneg %p65
        %p526 = pneg %p89
        %p527 = pneg %p86
        %s528 = sand.u32 %s35, 1
        %s529 = scalar_lea.sflag [#allocation7], %s528
        %s530 = sand.u32 %s102, 1
        %s531 = smul.addr %s530, 128
        %s532 = scalar_lea.vmem [#allocation6], %s531
        %p533 = pneg %p115
        %p534 = pneg %p112
        %p535 = scmp.lt.s32.totalorder %s40, 1
        %s536 = scalar_select %p535, %s40, 1
        %s537 = scalar_lea.vmem %s3, %s536
        %p538 = pneg %p141
        %p539 = pneg %p138
        %s540 = sand.u32 %s35, 1
        %s541 = scalar_lea.sflag [#allocation7], %s540
        %s542 = sand.u32 %s154, 1
        %s543 = smul.addr %s542, 64
        %s544 = scalar_lea.vmem [#allocation8], %s543
        %p545 = pneg %p167
        %p546 = pneg %p164
        %s547 = sand.u32 %s35, 1
        %s548 = scalar_lea.sflag [#allocation10], %s547
        %s549 = sand.u32 %s180, 1
        %s550 = smul.addr %s549, 512
        %s551 = scalar_lea.vmem [#allocation9], %s550
        %p552 = pneg %p193
        %p553 = pneg %p190
        %p554 = scmp.lt.s32.totalorder %s40, 1
        %s555 = scalar_select %p554, %s40, 1
        %s556 = smul.addr %s555, 8
        %s557 = scalar_lea.vmem %s6, %s556
        %p558 = pneg %p219
        %p559 = pneg %p216
        %s560 = sand.u32 %s35, 1
        %s561 = scalar_lea.sflag [#allocation10], %s560
        %s562 = sand.u32 %s232, 1
        %s563 = smul.addr %s562, 512
        %s564 = scalar_lea.vmem [#allocation11], %s563
        %p565 = pneg %p245
        %p566 = pneg %p242
        %s567 = sand.u32 %s258, 1
        %s568 = scalar_lea.sflag [#allocation13], %s567
        %s569 = sand.u32 %s258, 1
        %s570 = smul.addr %s569, 64
        %s571 = scalar_lea.vmem [#allocation12], %s570
        %p572 = pneg %p271
        %p573 = pneg %p268
        %p574 = pneg %p297
        %p575 = pneg %p294
        %s576 = sand.u32 %s284, 1
        %s577 = scalar_lea.sflag [#allocation5], %s576
        %s578 = sand.u32 %s284, 1
        %s579 = smul.addr %s578, 128
        %s580 = scalar_lea.vmem [#allocation14], %s579
        %s581 = smul.u32 16, %s39
        %p582 = scmp.lt.s32.totalorder %s40, 1
        %s583 = scalar_select %p582, %s40, 1
        %s584 = scalar_lea.vmem %s3, %s583
        %s585 = smul.u32 16, %s40
        %p586 = scmp.lt.s32.totalorder %s40, 1
        %s587 = scalar_select %p586, %s40, 1
        %s588 = smul.addr %s587, 8
        %s589 = scalar_lea.vmem %s6, %s588
        %s590 = smul.u32 128, %s40
        %s591 = smul.u32 16, %s40
        %s592 = smul.u32 16, %s39
        %p594 = scmp.eq.s32.totalorder %s40, 0
        // Predicated region
        $region81: #{tpu_custom_call.1} parent=55 // pred_check
          %p595 = pneg %p594
        $region82: #{tpu_custom_call.1} parent=55 // pred_check_branch
          %597 = sbr.rel (%p595) target = $region84
        $region83: #{tpu_custom_call.1} parent=55 // pred_region
          %v598 = vld [vmem:[%s1] sm:$0x1]
          %v600 = vlaneseq
          %v601 = vshrl.u32 %v600, 7
          %v602 = vsub.s32 0, %v601
          %v603 = vrot.slane %v598, %v602
          %605 = vst [vmem:[%s580] sm:$0xff] %v603
          %606 = vst [vmem:[%s580 + $0x8] sm:$0xff] %v603
          %607 = vst [vmem:[%s580 + $0x10] sm:$0xff] %v603
          %608 = vst [vmem:[%s580 + $0x18] sm:$0xff] %v603
          %609 = vst [vmem:[%s580 + $0x20] sm:$0xff] %v603
          %610 = vst [vmem:[%s580 + $0x28] sm:$0xff] %v603
          %611 = vst [vmem:[%s580 + $0x30] sm:$0xff] %v603
          %612 = vst [vmem:[%s580 + $0x38] sm:$0xff] %v603
          %613 = vst [vmem:[%s580 + $0x40] sm:$0xff] %v603
          %614 = vst [vmem:[%s580 + $0x48] sm:$0xff] %v603
          %615 = vst [vmem:[%s580 + $0x50] sm:$0xff] %v603
          %616 = vst [vmem:[%s580 + $0x58] sm:$0xff] %v603
          %617 = vst [vmem:[%s580 + $0x60] sm:$0xff] %v603
          %618 = vst [vmem:[%s580 + $0x68] sm:$0xff] %v603
          %619 = vst [vmem:[%s580 + $0x70] sm:$0xff] %v603
          %620 = vst [vmem:[%s580 + $0x78] sm:$0xff] %v603
          %v621 = vlaneseq
          %v622 = vshrl.u32 %v621, 7
          %v623 = vadd.s32 %v622, 8
          %v624 = vadd.s32 %v622, 16
          %v625 = vadd.s32 %v622, 24
          %v626 = vadd.s32 %v622, 32
          %v627 = vadd.s32 %v622, 40
          %v628 = vadd.s32 %v622, 48
          %v629 = vadd.s32 %v622, 56
          %v630 = vadd.s32 %v622, 64
          %v631 = vadd.s32 %v622, 72
          %v632 = vadd.s32 %v622, 80
          %v633 = vadd.s32 %v622, 88
          %v634 = vadd.s32 %v622, 96
          %v635 = vadd.s32 %v622, 104
          %v636 = vadd.s32 %v622, 112
          %v637 = vadd.s32 %v622, 120
          %v638 = vlaneseq
          %v639 = vand.u32 %v638, 127
          %v640 = vadd.s32 %v639, 128
          %v641 = vadd.s32 %v639, 256
          %v642 = vadd.s32 %v639, 384
          %v643 = vadd.s32 %v639, 512
          %v644 = vadd.s32 %v639, 640
          %v645 = vadd.s32 %v639, 768
          %v646 = vadd.s32 %v639, 896
          %v647 = vmul.u32 %v622, 8
          %v648 = vmul.u32 %v623, 8
          %v649 = vmul.u32 %v624, 8
          %v650 = vmul.u32 %v625, 8
          %v651 = vmul.u32 %v626, 8
          %v652 = vmul.u32 %v627, 8
          %v653 = vmul.u32 %v628, 8
          %v654 = vmul.u32 %v629, 8
          %v655 = vmul.u32 %v630, 8
          %v656 = vmul.u32 %v631, 8
          %v657 = vmul.u32 %v632, 8
          %v658 = vmul.u32 %v633, 8
          %v659 = vmul.u32 %v634, 8
          %v660 = vmul.u32 %v635, 8
          %v661 = vmul.u32 %v636, 8
          %v662 = vmul.u32 %v637, 8
          %v663 = vsub.s32 %v639, %v647
          %v664 = vsub.s32 %v640, %v647
          %v665 = vsub.s32 %v641, %v647
          %v666 = vsub.s32 %v642, %v647
          %v667 = vsub.s32 %v643, %v647
          %v668 = vsub.s32 %v644, %v647
          %v669 = vsub.s32 %v645, %v647
          %v670 = vsub.s32 %v646, %v647
          %v671 = vsub.s32 %v639, %v648
          %v672 = vsub.s32 %v640, %v648
          %v673 = vsub.s32 %v641, %v648
          %v674 = vsub.s32 %v642, %v648
          %v675 = vsub.s32 %v643, %v648
          %v676 = vsub.s32 %v644, %v648
          %v677 = vsub.s32 %v645, %v648
          %v678 = vsub.s32 %v646, %v648
          %v679 = vsub.s32 %v639, %v649
          %v680 = vsub.s32 %v640, %v649
          %v681 = vsub.s32 %v641, %v649
          %v682 = vsub.s32 %v642, %v649
          %v683 = vsub.s32 %v643, %v649
          %v684 = vsub.s32 %v644, %v649
          %v685 = vsub.s32 %v645, %v649
          %v686 = vsub.s32 %v646, %v649
          %v687 = vsub.s32 %v639, %v650
          %v688 = vsub.s32 %v640, %v650
          %v689 = vsub.s32 %v641, %v650
          %v690 = vsub.s32 %v642, %v650
          %v691 = vsub.s32 %v643, %v650
          %v692 = vsub.s32 %v644, %v650
          %v693 = vsub.s32 %v645, %v650
          %v694 = vsub.s32 %v646, %v650
          %v695 = vsub.s32 %v639, %v651
          %v696 = vsub.s32 %v640, %v651
          %v697 = vsub.s32 %v641, %v651
          %v698 = vsub.s32 %v642, %v651
          %v699 = vsub.s32 %v643, %v651
          %v700 = vsub.s32 %v644, %v651
          %v701 = vsub.s32 %v645, %v651
          %v702 = vsub.s32 %v646, %v651
          %v703 = vsub.s32 %v639, %v652
          %v704 = vsub.s32 %v640, %v652
          %v705 = vsub.s32 %v641, %v652
          %v706 = vsub.s32 %v642, %v652
          %v707 = vsub.s32 %v643, %v652
          %v708 = vsub.s32 %v644, %v652
          %v709 = vsub.s32 %v645, %v652
          %v710 = vsub.s32 %v646, %v652
          %v711 = vsub.s32 %v639, %v653
          %v712 = vsub.s32 %v640, %v653
          %v713 = vsub.s32 %v641, %v653
          %v714 = vsub.s32 %v642, %v653
          %v715 = vsub.s32 %v643, %v653
          %v716 = vsub.s32 %v644, %v653
          %v717 = vsub.s32 %v645, %v653
          %v718 = vsub.s32 %v646, %v653
          %v719 = vsub.s32 %v639, %v654
          %v720 = vsub.s32 %v640, %v654
          %v721 = vsub.s32 %v641, %v654
          %v722 = vsub.s32 %v642, %v654
          %v723 = vsub.s32 %v643, %v654
          %v724 = vsub.s32 %v644, %v654
          %v725 = vsub.s32 %v645, %v654
          %v726 = vsub.s32 %v646, %v654
          %v727 = vsub.s32 %v639, %v655
          %v728 = vsub.s32 %v640, %v655
          %v729 = vsub.s32 %v641, %v655
          %v730 = vsub.s32 %v642, %v655
          %v731 = vsub.s32 %v643, %v655
          %v732 = vsub.s32 %v644, %v655
          %v733 = vsub.s32 %v645, %v655
          %v734 = vsub.s32 %v646, %v655
          %v735 = vsub.s32 %v639, %v656
          %v736 = vsub.s32 %v640, %v656
          %v737 = vsub.s32 %v641, %v656
          %v738 = vsub.s32 %v642, %v656
          %v739 = vsub.s32 %v643, %v656
          %v740 = vsub.s32 %v644, %v656
          %v741 = vsub.s32 %v645, %v656
          %v742 = vsub.s32 %v646, %v656
          %v743 = vsub.s32 %v639, %v657
          %v744 = vsub.s32 %v640, %v657
          %v745 = vsub.s32 %v641, %v657
          %v746 = vsub.s32 %v642, %v657
          %v747 = vsub.s32 %v643, %v657
          %v748 = vsub.s32 %v644, %v657
          %v749 = vsub.s32 %v645, %v657
          %v750 = vsub.s32 %v646, %v657
          %v751 = vsub.s32 %v639, %v658
          %v752 = vsub.s32 %v640, %v658
          %v753 = vsub.s32 %v641, %v658
          %v754 = vsub.s32 %v642, %v658
          %v755 = vsub.s32 %v643, %v658
          %v756 = vsub.s32 %v644, %v658
          %v757 = vsub.s32 %v645, %v658
          %v758 = vsub.s32 %v646, %v658
          %v759 = vsub.s32 %v639, %v659
          %v760 = vsub.s32 %v640, %v659
          %v761 = vsub.s32 %v641, %v659
          %v762 = vsub.s32 %v642, %v659
          %v763 = vsub.s32 %v643, %v659
          %v764 = vsub.s32 %v644, %v659
          %v765 = vsub.s32 %v645, %v659
          %v766 = vsub.s32 %v646, %v659
          %v767 = vsub.s32 %v639, %v660
          %v768 = vsub.s32 %v640, %v660
          %v769 = vsub.s32 %v641, %v660
          %v770 = vsub.s32 %v642, %v660
          %v771 = vsub.s32 %v643, %v660
          %v772 = vsub.s32 %v644, %v660
          %v773 = vsub.s32 %v645, %v660
          %v774 = vsub.s32 %v646, %v660
          %v775 = vsub.s32 %v639, %v661
          %v776 = vsub.s32 %v640, %v661
          %v777 = vsub.s32 %v641, %v661
          %v778 = vsub.s32 %v642, %v661
          %v779 = vsub.s32 %v643, %v661
          %v780 = vsub.s32 %v644, %v661
          %v781 = vsub.s32 %v645, %v661
          %v782 = vsub.s32 %v646, %v661
          %v783 = vsub.s32 %v639, %v662
          %v784 = vsub.s32 %v640, %v662
          %v785 = vsub.s32 %v641, %v662
          %v786 = vsub.s32 %v642, %v662
          %v787 = vsub.s32 %v643, %v662
          %v788 = vsub.s32 %v644, %v662
          %v789 = vsub.s32 %v645, %v662
          %v790 = vsub.s32 %v646, %v662
          %vm791 = vcmp.ge.s32.totalorder %v663, 0
          %vm792 = vcmp.ge.s32.totalorder %v664, 0
          %vm793 = vcmp.ge.s32.totalorder %v665, 0
          %vm794 = vcmp.ge.s32.totalorder %v666, 0
          %vm795 = vcmp.ge.s32.totalorder %v667, 0
          %vm796 = vcmp.ge.s32.totalorder %v668, 0
          %vm797 = vcmp.ge.s32.totalorder %v669, 0
          %vm798 = vcmp.ge.s32.totalorder %v670, 0
          %vm799 = vcmp.ge.s32.totalorder %v671, 0
          %vm800 = vcmp.ge.s32.totalorder %v672, 0
          %vm801 = vcmp.ge.s32.totalorder %v673, 0
          %vm802 = vcmp.ge.s32.totalorder %v674, 0
          %vm803 = vcmp.ge.s32.totalorder %v675, 0
          %vm804 = vcmp.ge.s32.totalorder %v676, 0
          %vm805 = vcmp.ge.s32.totalorder %v677, 0
          %vm806 = vcmp.ge.s32.totalorder %v678, 0
          %vm807 = vcmp.ge.s32.totalorder %v679, 0
          %vm808 = vcmp.ge.s32.totalorder %v680, 0
          %vm809 = vcmp.ge.s32.totalorder %v681, 0
          %vm810 = vcmp.ge.s32.totalorder %v682, 0
          %vm811 = vcmp.ge.s32.totalorder %v683, 0
          %vm812 = vcmp.ge.s32.totalorder %v684, 0
          %vm813 = vcmp.ge.s32.totalorder %v685, 0
          %vm814 = vcmp.ge.s32.totalorder %v686, 0
          %vm815 = vcmp.ge.s32.totalorder %v687, 0
          %vm816 = vcmp.ge.s32.totalorder %v688, 0
          %vm817 = vcmp.ge.s32.totalorder %v689, 0
          %vm818 = vcmp.ge.s32.totalorder %v690, 0
          %vm819 = vcmp.ge.s32.totalorder %v691, 0
          %vm820 = vcmp.ge.s32.totalorder %v692, 0
          %vm821 = vcmp.ge.s32.totalorder %v693, 0
          %vm822 = vcmp.ge.s32.totalorder %v694, 0
          %vm823 = vcmp.ge.s32.totalorder %v695, 0
          %vm824 = vcmp.ge.s32.totalorder %v696, 0
          %vm825 = vcmp.ge.s32.totalorder %v697, 0
          %vm826 = vcmp.ge.s32.totalorder %v698, 0
          %vm827 = vcmp.ge.s32.totalorder %v699, 0
          %vm828 = vcmp.ge.s32.totalorder %v700, 0
          %vm829 = vcmp.ge.s32.totalorder %v701, 0
          %vm830 = vcmp.ge.s32.totalorder %v702, 0
          %vm831 = vcmp.ge.s32.totalorder %v703, 0
          %vm832 = vcmp.ge.s32.totalorder %v704, 0
          %vm833 = vcmp.ge.s32.totalorder %v705, 0
          %vm834 = vcmp.ge.s32.totalorder %v706, 0
          %vm835 = vcmp.ge.s32.totalorder %v707, 0
          %vm836 = vcmp.ge.s32.totalorder %v708, 0
          %vm837 = vcmp.ge.s32.totalorder %v709, 0
          %vm838 = vcmp.ge.s32.totalorder %v710, 0
          %vm839 = vcmp.ge.s32.totalorder %v711, 0
          %vm840 = vcmp.ge.s32.totalorder %v712, 0
          %vm841 = vcmp.ge.s32.totalorder %v713, 0
          %vm842 = vcmp.ge.s32.totalorder %v714, 0
          %vm843 = vcmp.ge.s32.totalorder %v715, 0
          %vm844 = vcmp.ge.s32.totalorder %v716, 0
          %vm845 = vcmp.ge.s32.totalorder %v717, 0
          %vm846 = vcmp.ge.s32.totalorder %v718, 0
          %vm847 = vcmp.ge.s32.totalorder %v719, 0
          %vm848 = vcmp.ge.s32.totalorder %v720, 0
          %vm849 = vcmp.ge.s32.totalorder %v721, 0
          %vm850 = vcmp.ge.s32.totalorder %v722, 0
          %vm851 = vcmp.ge.s32.totalorder %v723, 0
          %vm852 = vcmp.ge.s32.totalorder %v724, 0
          %vm853 = vcmp.ge.s32.totalorder %v725, 0
          %vm854 = vcmp.ge.s32.totalorder %v726, 0
          %vm855 = vcmp.ge.s32.totalorder %v727, 0
          %vm856 = vcmp.ge.s32.totalorder %v728, 0
          %vm857 = vcmp.ge.s32.totalorder %v729, 0
          %vm858 = vcmp.ge.s32.totalorder %v730, 0
          %vm859 = vcmp.ge.s32.totalorder %v731, 0
          %vm860 = vcmp.ge.s32.totalorder %v732, 0
          %vm861 = vcmp.ge.s32.totalorder %v733, 0
          %vm862 = vcmp.ge.s32.totalorder %v734, 0
          %vm863 = vcmp.ge.s32.totalorder %v735, 0
          %vm864 = vcmp.ge.s32.totalorder %v736, 0
          %vm865 = vcmp.ge.s32.totalorder %v737, 0
          %vm866 = vcmp.ge.s32.totalorder %v738, 0
          %vm867 = vcmp.ge.s32.totalorder %v739, 0
          %vm868 = vcmp.ge.s32.totalorder %v740, 0
          %vm869 = vcmp.ge.s32.totalorder %v741, 0
          %vm870 = vcmp.ge.s32.totalorder %v742, 0
          %vm871 = vcmp.ge.s32.totalorder %v743, 0
          %vm872 = vcmp.ge.s32.totalorder %v744, 0
          %vm873 = vcmp.ge.s32.totalorder %v745, 0
          %vm874 = vcmp.ge.s32.totalorder %v746, 0
          %vm875 = vcmp.ge.s32.totalorder %v747, 0
          %vm876 = vcmp.ge.s32.totalorder %v748, 0
          %vm877 = vcmp.ge.s32.totalorder %v749, 0
          %vm878 = vcmp.ge.s32.totalorder %v750, 0
          %vm879 = vcmp.ge.s32.totalorder %v751, 0
          %vm880 = vcmp.ge.s32.totalorder %v752, 0
          %vm881 = vcmp.ge.s32.totalorder %v753, 0
          %vm882 = vcmp.ge.s32.totalorder %v754, 0
          %vm883 = vcmp.ge.s32.totalorder %v755, 0
          %vm884 = vcmp.ge.s32.totalorder %v756, 0
          %vm885 = vcmp.ge.s32.totalorder %v757, 0
          %vm886 = vcmp.ge.s32.totalorder %v758, 0
          %vm887 = vcmp.ge.s32.totalorder %v759, 0
          %vm888 = vcmp.ge.s32.totalorder %v760, 0
          %vm889 = vcmp.ge.s32.totalorder %v761, 0
          %vm890 = vcmp.ge.s32.totalorder %v762, 0
          %vm891 = vcmp.ge.s32.totalorder %v763, 0
          %vm892 = vcmp.ge.s32.totalorder %v764, 0
          %vm893 = vcmp.ge.s32.totalorder %v765, 0
          %vm894 = vcmp.ge.s32.totalorder %v766, 0
          %vm895 = vcmp.ge.s32.totalorder %v767, 0
          %vm896 = vcmp.ge.s32.totalorder %v768, 0
          %vm897 = vcmp.ge.s32.totalorder %v769, 0
          %vm898 = vcmp.ge.s32.totalorder %v770, 0
          %vm899 = vcmp.ge.s32.totalorder %v771, 0
          %vm900 = vcmp.ge.s32.totalorder %v772, 0
          %vm901 = vcmp.ge.s32.totalorder %v773, 0
          %vm902 = vcmp.ge.s32.totalorder %v774, 0
          %vm903 = vcmp.ge.s32.totalorder %v775, 0
          %vm904 = vcmp.ge.s32.totalorder %v776, 0
          %vm905 = vcmp.ge.s32.totalorder %v777, 0
          %vm906 = vcmp.ge.s32.totalorder %v778, 0
          %vm907 = vcmp.ge.s32.totalorder %v779, 0
          %vm908 = vcmp.ge.s32.totalorder %v780, 0
          %vm909 = vcmp.ge.s32.totalorder %v781, 0
          %vm910 = vcmp.ge.s32.totalorder %v782, 0
          %vm911 = vcmp.ge.s32.totalorder %v783, 0
          %vm912 = vcmp.ge.s32.totalorder %v784, 0
          %vm913 = vcmp.ge.s32.totalorder %v785, 0
          %vm914 = vcmp.ge.s32.totalorder %v786, 0
          %vm915 = vcmp.ge.s32.totalorder %v787, 0
          %vm916 = vcmp.ge.s32.totalorder %v788, 0
          %vm917 = vcmp.ge.s32.totalorder %v789, 0
          %vm918 = vcmp.ge.s32.totalorder %v790, 0
          %vm919 = vcmp.lt.s32.totalorder %v663, 8
          %vm920 = vcmp.lt.s32.totalorder %v664, 8
          %vm921 = vcmp.lt.s32.totalorder %v665, 8
          %vm922 = vcmp.lt.s32.totalorder %v666, 8
          %vm923 = vcmp.lt.s32.totalorder %v667, 8
          %vm924 = vcmp.lt.s32.totalorder %v668, 8
          %vm925 = vcmp.lt.s32.totalorder %v669, 8
          %vm926 = vcmp.lt.s32.totalorder %v670, 8
          %vm927 = vcmp.lt.s32.totalorder %v671, 8
          %vm928 = vcmp.lt.s32.totalorder %v672, 8
          %vm929 = vcmp.lt.s32.totalorder %v673, 8
          %vm930 = vcmp.lt.s32.totalorder %v674, 8
          %vm931 = vcmp.lt.s32.totalorder %v675, 8
          %vm932 = vcmp.lt.s32.totalorder %v676, 8
          %vm933 = vcmp.lt.s32.totalorder %v677, 8
          %vm934 = vcmp.lt.s32.totalorder %v678, 8
          %vm935 = vcmp.lt.s32.totalorder %v679, 8
          %vm936 = vcmp.lt.s32.totalorder %v680, 8
          %vm937 = vcmp.lt.s32.totalorder %v681, 8
          %vm938 = vcmp.lt.s32.totalorder %v682, 8
          %vm939 = vcmp.lt.s32.totalorder %v683, 8
          %vm940 = vcmp.lt.s32.totalorder %v684, 8
          %vm941 = vcmp.lt.s32.totalorder %v685, 8
          %vm942 = vcmp.lt.s32.totalorder %v686, 8
          %vm943 = vcmp.lt.s32.totalorder %v687, 8
          %vm944 = vcmp.lt.s32.totalorder %v688, 8
          %vm945 = vcmp.lt.s32.totalorder %v689, 8
          %vm946 = vcmp.lt.s32.totalorder %v690, 8
          %vm947 = vcmp.lt.s32.totalorder %v691, 8
          %vm948 = vcmp.lt.s32.totalorder %v692, 8
          %vm949 = vcmp.lt.s32.totalorder %v693, 8
          %vm950 = vcmp.lt.s32.totalorder %v694, 8
          %vm951 = vcmp.lt.s32.totalorder %v695, 8
          %vm952 = vcmp.lt.s32.totalorder %v696, 8
          %vm953 = vcmp.lt.s32.totalorder %v697, 8
          %vm954 = vcmp.lt.s32.totalorder %v698, 8
          %vm955 = vcmp.lt.s32.totalorder %v699, 8
          %vm956 = vcmp.lt.s32.totalorder %v700, 8
          %vm957 = vcmp.lt.s32.totalorder %v701, 8
          %vm958 = vcmp.lt.s32.totalorder %v702, 8
          %vm959 = vcmp.lt.s32.totalorder %v703, 8
          %vm960 = vcmp.lt.s32.totalorder %v704, 8
          %vm961 = vcmp.lt.s32.totalorder %v705, 8
          %vm962 = vcmp.lt.s32.totalorder %v706, 8
          %vm963 = vcmp.lt.s32.totalorder %v707, 8
          %vm964 = vcmp.lt.s32.totalorder %v708, 8
          %vm965 = vcmp.lt.s32.totalorder %v709, 8
          %vm966 = vcmp.lt.s32.totalorder %v710, 8
          %vm967 = vcmp.lt.s32.totalorder %v711, 8
          %vm968 = vcmp.lt.s32.totalorder %v712, 8
          %vm969 = vcmp.lt.s32.totalorder %v713, 8
          %vm970 = vcmp.lt.s32.totalorder %v714, 8
          %vm971 = vcmp.lt.s32.totalorder %v715, 8
          %vm972 = vcmp.lt.s32.totalorder %v716, 8
          %vm973 = vcmp.lt.s32.totalorder %v717, 8
          %vm974 = vcmp.lt.s32.totalorder %v718, 8
          %vm975 = vcmp.lt.s32.totalorder %v719, 8
          %vm976 = vcmp.lt.s32.totalorder %v720, 8
          %vm977 = vcmp.lt.s32.totalorder %v721, 8
          %vm978 = vcmp.lt.s32.totalorder %v722, 8
          %vm979 = vcmp.lt.s32.totalorder %v723, 8
          %vm980 = vcmp.lt.s32.totalorder %v724, 8
          %vm981 = vcmp.lt.s32.totalorder %v725, 8
          %vm982 = vcmp.lt.s32.totalorder %v726, 8
          %vm983 = vcmp.lt.s32.totalorder %v727, 8
          %vm984 = vcmp.lt.s32.totalorder %v728, 8
          %vm985 = vcmp.lt.s32.totalorder %v729, 8
          %vm986 = vcmp.lt.s32.totalorder %v730, 8
          %vm987 = vcmp.lt.s32.totalorder %v731, 8
          %vm988 = vcmp.lt.s32.totalorder %v732, 8
          %vm989 = vcmp.lt.s32.totalorder %v733, 8
          %vm990 = vcmp.lt.s32.totalorder %v734, 8
          %vm991 = vcmp.lt.s32.totalorder %v735, 8
          %vm992 = vcmp.lt.s32.totalorder %v736, 8
          %vm993 = vcmp.lt.s32.totalorder %v737, 8
          %vm994 = vcmp.lt.s32.totalorder %v738, 8
          %vm995 = vcmp.lt.s32.totalorder %v739, 8
          %vm996 = vcmp.lt.s32.totalorder %v740, 8
          %vm997 = vcmp.lt.s32.totalorder %v741, 8
          %vm998 = vcmp.lt.s32.totalorder %v742, 8
          %vm999 = vcmp.lt.s32.totalorder %v743, 8
          %vm1000 = vcmp.lt.s32.totalorder %v744, 8
          %vm1001 = vcmp.lt.s32.totalorder %v745, 8
          %vm1002 = vcmp.lt.s32.totalorder %v746, 8
          %vm1003 = vcmp.lt.s32.totalorder %v747, 8
          %vm1004 = vcmp.lt.s32.totalorder %v748, 8
          %vm1005 = vcmp.lt.s32.totalorder %v749, 8
          %vm1006 = vcmp.lt.s32.totalorder %v750, 8
          %vm1007 = vcmp.lt.s32.totalorder %v751, 8
          %vm1008 = vcmp.lt.s32.totalorder %v752, 8
          %vm1009 = vcmp.lt.s32.totalorder %v753, 8
          %vm1010 = vcmp.lt.s32.totalorder %v754, 8
          %vm1011 = vcmp.lt.s32.totalorder %v755, 8
          %vm1012 = vcmp.lt.s32.totalorder %v756, 8
          %vm1013 = vcmp.lt.s32.totalorder %v757, 8
          %vm1014 = vcmp.lt.s32.totalorder %v758, 8
          %vm1015 = vcmp.lt.s32.totalorder %v759, 8
          %vm1016 = vcmp.lt.s32.totalorder %v760, 8
          %vm1017 = vcmp.lt.s32.totalorder %v761, 8
          %vm1018 = vcmp.lt.s32.totalorder %v762, 8
          %vm1019 = vcmp.lt.s32.totalorder %v763, 8
          %vm1020 = vcmp.lt.s32.totalorder %v764, 8
          %vm1021 = vcmp.lt.s32.totalorder %v765, 8
          %vm1022 = vcmp.lt.s32.totalorder %v766, 8
          %vm1023 = vcmp.lt.s32.totalorder %v767, 8
          %vm1024 = vcmp.lt.s32.totalorder %v768, 8
          %vm1025 = vcmp.lt.s32.totalorder %v769, 8
          %vm1026 = vcmp.lt.s32.totalorder %v770, 8
          %vm1027 = vcmp.lt.s32.totalorder %v771, 8
          %vm1028 = vcmp.lt.s32.totalorder %v772, 8
          %vm1029 = vcmp.lt.s32.totalorder %v773, 8
          %vm1030 = vcmp.lt.s32.totalorder %v774, 8
          %vm1031 = vcmp.lt.s32.totalorder %v775, 8
          %vm1032 = vcmp.lt.s32.totalorder %v776, 8
          %vm1033 = vcmp.lt.s32.totalorder %v777, 8
          %vm1034 = vcmp.lt.s32.totalorder %v778, 8
          %vm1035 = vcmp.lt.s32.totalorder %v779, 8
          %vm1036 = vcmp.lt.s32.totalorder %v780, 8
          %vm1037 = vcmp.lt.s32.totalorder %v781, 8
          %vm1038 = vcmp.lt.s32.totalorder %v782, 8
          %vm1039 = vcmp.lt.s32.totalorder %v783, 8
          %vm1040 = vcmp.lt.s32.totalorder %v784, 8
          %vm1041 = vcmp.lt.s32.totalorder %v785, 8
          %vm1042 = vcmp.lt.s32.totalorder %v786, 8
          %vm1043 = vcmp.lt.s32.totalorder %v787, 8
          %vm1044 = vcmp.lt.s32.totalorder %v788, 8
          %vm1045 = vcmp.lt.s32.totalorder %v789, 8
          %vm1046 = vcmp.lt.s32.totalorder %v790, 8
          %vm1047 = vmand %vm791, %vm919
          %vm1048 = vmand %vm792, %vm920
          %vm1049 = vmand %vm793, %vm921
          %vm1050 = vmand %vm794, %vm922
          %vm1051 = vmand %vm795, %vm923
          %vm1052 = vmand %vm796, %vm924
          %vm1053 = vmand %vm797, %vm925
          %vm1054 = vmand %vm798, %vm926
          %vm1055 = vmand %vm799, %vm927
          %vm1056 = vmand %vm800, %vm928
          %vm1057 = vmand %vm801, %vm929
          %vm1058 = vmand %vm802, %vm930
          %vm1059 = vmand %vm803, %vm931
          %vm1060 = vmand %vm804, %vm932
          %vm1061 = vmand %vm805, %vm933
          %vm1062 = vmand %vm806, %vm934
          %vm1063 = vmand %vm807, %vm935
          %vm1064 = vmand %vm808, %vm936
          %vm1065 = vmand %vm809, %vm937
          %vm1066 = vmand %vm810, %vm938
          %vm1067 = vmand %vm811, %vm939
          %vm1068 = vmand %vm812, %vm940
          %vm1069 = vmand %vm813, %vm941
          %vm1070 = vmand %vm814, %vm942
          %vm1071 = vmand %vm815, %vm943
          %vm1072 = vmand %vm816, %vm944
          %vm1073 = vmand %vm817, %vm945
          %vm1074 = vmand %vm818, %vm946
          %vm1075 = vmand %vm819, %vm947
          %vm1076 = vmand %vm820, %vm948
          %vm1077 = vmand %vm821, %vm949
          %vm1078 = vmand %vm822, %vm950
          %vm1079 = vmand %vm823, %vm951
          %vm1080 = vmand %vm824, %vm952
          %vm1081 = vmand %vm825, %vm953
          %vm1082 = vmand %vm826, %vm954
          %vm1083 = vmand %vm827, %vm955
          %vm1084 = vmand %vm828, %vm956
          %vm1085 = vmand %vm829, %vm957
          %vm1086 = vmand %vm830, %vm958
          %vm1087 = vmand %vm831, %vm959
          %vm1088 = vmand %vm832, %vm960
          %vm1089 = vmand %vm833, %vm961
          %vm1090 = vmand %vm834, %vm962
          %vm1091 = vmand %vm835, %vm963
          %vm1092 = vmand %vm836, %vm964
          %vm1093 = vmand %vm837, %vm965
          %vm1094 = vmand %vm838, %vm966
          %vm1095 = vmand %vm839, %vm967
          %vm1096 = vmand %vm840, %vm968
          %vm1097 = vmand %vm841, %vm969
          %vm1098 = vmand %vm842, %vm970
          %vm1099 = vmand %vm843, %vm971
          %vm1100 = vmand %vm844, %vm972
          %vm1101 = vmand %vm845, %vm973
          %vm1102 = vmand %vm846, %vm974
          %vm1103 = vmand %vm847, %vm975
          %vm1104 = vmand %vm848, %vm976
          %vm1105 = vmand %vm849, %vm977
          %vm1106 = vmand %vm850, %vm978
          %vm1107 = vmand %vm851, %vm979
          %vm1108 = vmand %vm852, %vm980
          %vm1109 = vmand %vm853, %vm981
          %vm1110 = vmand %vm854, %vm982
          %vm1111 = vmand %vm855, %vm983
          %vm1112 = vmand %vm856, %vm984
          %vm1113 = vmand %vm857, %vm985
          %vm1114 = vmand %vm858, %vm986
          %vm1115 = vmand %vm859, %vm987
          %vm1116 = vmand %vm860, %vm988
          %vm1117 = vmand %vm861, %vm989
          %vm1118 = vmand %vm862, %vm990
          %vm1119 = vmand %vm863, %vm991
          %vm1120 = vmand %vm864, %vm992
          %vm1121 = vmand %vm865, %vm993
          %vm1122 = vmand %vm866, %vm994
          %vm1123 = vmand %vm867, %vm995
          %vm1124 = vmand %vm868, %vm996
          %vm1125 = vmand %vm869, %vm997
          %vm1126 = vmand %vm870, %vm998
          %vm1127 = vmand %vm871, %vm999
          %vm1128 = vmand %vm872, %vm1000
          %vm1129 = vmand %vm873, %vm1001
          %vm1130 = vmand %vm874, %vm1002
          %vm1131 = vmand %vm875, %vm1003
          %vm1132 = vmand %vm876, %vm1004
          %vm1133 = vmand %vm877, %vm1005
          %vm1134 = vmand %vm878, %vm1006
          %vm1135 = vmand %vm879, %vm1007
          %vm1136 = vmand %vm880, %vm1008
          %vm1137 = vmand %vm881, %vm1009
          %vm1138 = vmand %vm882, %vm1010
          %vm1139 = vmand %vm883, %vm1011
          %vm1140 = vmand %vm884, %vm1012
          %vm1141 = vmand %vm885, %vm1013
          %vm1142 = vmand %vm886, %vm1014
          %vm1143 = vmand %vm887, %vm1015
          %vm1144 = vmand %vm888, %vm1016
          %vm1145 = vmand %vm889, %vm1017
          %vm1146 = vmand %vm890, %vm1018
          %vm1147 = vmand %vm891, %vm1019
          %vm1148 = vmand %vm892, %vm1020
          %vm1149 = vmand %vm893, %vm1021
          %vm1150 = vmand %vm894, %vm1022
          %vm1151 = vmand %vm895, %vm1023
          %vm1152 = vmand %vm896, %vm1024
          %vm1153 = vmand %vm897, %vm1025
          %vm1154 = vmand %vm898, %vm1026
          %vm1155 = vmand %vm899, %vm1027
          %vm1156 = vmand %vm900, %vm1028
          %vm1157 = vmand %vm901, %vm1029
          %vm1158 = vmand %vm902, %vm1030
          %vm1159 = vmand %vm903, %vm1031
          %vm1160 = vmand %vm904, %vm1032
          %vm1161 = vmand %vm905, %vm1033
          %vm1162 = vmand %vm906, %vm1034
          %vm1163 = vmand %vm907, %vm1035
          %vm1164 = vmand %vm908, %vm1036
          %vm1165 = vmand %vm909, %vm1037
          %vm1166 = vmand %vm910, %vm1038
          %vm1167 = vmand %vm911, %vm1039
          %vm1168 = vmand %vm912, %vm1040
          %vm1169 = vmand %vm913, %vm1041
          %vm1170 = vmand %vm914, %vm1042
          %vm1171 = vmand %vm915, %vm1043
          %vm1172 = vmand %vm916, %vm1044
          %vm1173 = vmand %vm917, %vm1045
          %vm1174 = vmand %vm918, %vm1046
          %v1175 = vsel %vm1047, 1, 0
          %v1176 = vsel %vm1048, 1, 0
          %v1177 = vsel %vm1049, 1, 0
          %v1178 = vsel %vm1050, 1, 0
          %v1179 = vsel %vm1051, 1, 0
          %v1180 = vsel %vm1052, 1, 0
          %v1181 = vsel %vm1053, 1, 0
          %v1182 = vsel %vm1054, 1, 0
          %v1183 = vsel %vm1055, 1, 0
          %v1184 = vsel %vm1056, 1, 0
          %v1185 = vsel %vm1057, 1, 0
          %v1186 = vsel %vm1058, 1, 0
          %v1187 = vsel %vm1059, 1, 0
          %v1188 = vsel %vm1060, 1, 0
          %v1189 = vsel %vm1061, 1, 0
          %v1190 = vsel %vm1062, 1, 0
          %v1191 = vsel %vm1063, 1, 0
          %v1192 = vsel %vm1064, 1, 0
          %v1193 = vsel %vm1065, 1, 0
          %v1194 = vsel %vm1066, 1, 0
          %v1195 = vsel %vm1067, 1, 0
          %v1196 = vsel %vm1068, 1, 0
          %v1197 = vsel %vm1069, 1, 0
          %v1198 = vsel %vm1070, 1, 0
          %v1199 = vsel %vm1071, 1, 0
          %v1200 = vsel %vm1072, 1, 0
          %v1201 = vsel %vm1073, 1, 0
          %v1202 = vsel %vm1074, 1, 0
          %v1203 = vsel %vm1075, 1, 0
          %v1204 = vsel %vm1076, 1, 0
          %v1205 = vsel %vm1077, 1, 0
          %v1206 = vsel %vm1078, 1, 0
          %v1207 = vsel %vm1079, 1, 0
          %v1208 = vsel %vm1080, 1, 0
          %v1209 = vsel %vm1081, 1, 0
          %v1210 = vsel %vm1082, 1, 0
          %v1211 = vsel %vm1083, 1, 0
          %v1212 = vsel %vm1084, 1, 0
          %v1213 = vsel %vm1085, 1, 0
          %v1214 = vsel %vm1086, 1, 0
          %v1215 = vsel %vm1087, 1, 0
          %v1216 = vsel %vm1088, 1, 0
          %v1217 = vsel %vm1089, 1, 0
          %v1218 = vsel %vm1090, 1, 0
          %v1219 = vsel %vm1091, 1, 0
          %v1220 = vsel %vm1092, 1, 0
          %v1221 = vsel %vm1093, 1, 0
          %v1222 = vsel %vm1094, 1, 0
          %v1223 = vsel %vm1095, 1, 0
          %v1224 = vsel %vm1096, 1, 0
          %v1225 = vsel %vm1097, 1, 0
          %v1226 = vsel %vm1098, 1, 0
          %v1227 = vsel %vm1099, 1, 0
          %v1228 = vsel %vm1100, 1, 0
          %v1229 = vsel %vm1101, 1, 0
          %v1230 = vsel %vm1102, 1, 0
          %v1231 = vsel %vm1103, 1, 0
          %v1232 = vsel %vm1104, 1, 0
          %v1233 = vsel %vm1105, 1, 0
          %v1234 = vsel %vm1106, 1, 0
          %v1235 = vsel %vm1107, 1, 0
          %v1236 = vsel %vm1108, 1, 0
          %v1237 = vsel %vm1109, 1, 0
          %v1238 = vsel %vm1110, 1, 0
          %v1239 = vsel %vm1111, 1, 0
          %v1240 = vsel %vm1112, 1, 0
          %v1241 = vsel %vm1113, 1, 0
          %v1242 = vsel %vm1114, 1, 0
          %v1243 = vsel %vm1115, 1, 0
          %v1244 = vsel %vm1116, 1, 0
          %v1245 = vsel %vm1117, 1, 0
          %v1246 = vsel %vm1118, 1, 0
          %v1247 = vsel %vm1119, 1, 0
          %v1248 = vsel %vm1120, 1, 0
          %v1249 = vsel %vm1121, 1, 0
          %v1250 = vsel %vm1122, 1, 0
          %v1251 = vsel %vm1123, 1, 0
          %v1252 = vsel %vm1124, 1, 0
          %v1253 = vsel %vm1125, 1, 0
          %v1254 = vsel %vm1126, 1, 0
          %v1255 = vsel %vm1127, 1, 0
          %v1256 = vsel %vm1128, 1, 0
          %v1257 = vsel %vm1129, 1, 0
          %v1258 = vsel %vm1130, 1, 0
          %v1259 = vsel %vm1131, 1, 0
          %v1260 = vsel %vm1132, 1, 0
          %v1261 = vsel %vm1133, 1, 0
          %v1262 = vsel %vm1134, 1, 0
          %v1263 = vsel %vm1135, 1, 0
          %v1264 = vsel %vm1136, 1, 0
          %v1265 = vsel %vm1137, 1, 0
          %v1266 = vsel %vm1138, 1, 0
          %v1267 = vsel %vm1139, 1, 0
          %v1268 = vsel %vm1140, 1, 0
          %v1269 = vsel %vm1141, 1, 0
          %v1270 = vsel %vm1142, 1, 0
          %v1271 = vsel %vm1143, 1, 0
          %v1272 = vsel %vm1144, 1, 0
          %v1273 = vsel %vm1145, 1, 0
          %v1274 = vsel %vm1146, 1, 0
          %v1275 = vsel %vm1147, 1, 0
          %v1276 = vsel %vm1148, 1, 0
          %v1277 = vsel %vm1149, 1, 0
          %v1278 = vsel %vm1150, 1, 0
          %v1279 = vsel %vm1151, 1, 0
          %v1280 = vsel %vm1152, 1, 0
          %v1281 = vsel %vm1153, 1, 0
          %v1282 = vsel %vm1154, 1, 0
          %v1283 = vsel %vm1155, 1, 0
          %v1284 = vsel %vm1156, 1, 0
          %v1285 = vsel %vm1157, 1, 0
          %v1286 = vsel %vm1158, 1, 0
          %v1287 = vsel %vm1159, 1, 0
          %v1288 = vsel %vm1160, 1, 0
          %v1289 = vsel %vm1161, 1, 0
          %v1290 = vsel %vm1162, 1, 0
          %v1291 = vsel %vm1163, 1, 0
          %v1292 = vsel %vm1164, 1, 0
          %v1293 = vsel %vm1165, 1, 0
          %v1294 = vsel %vm1166, 1, 0
          %v1295 = vsel %vm1167, 1, 0
          %v1296 = vsel %vm1168, 1, 0
          %v1297 = vsel %vm1169, 1, 0
          %v1298 = vsel %vm1170, 1, 0
          %v1299 = vsel %vm1171, 1, 0
          %v1300 = vsel %vm1172, 1, 0
          %v1301 = vsel %vm1173, 1, 0
          %v1302 = vsel %vm1174, 1, 0
          %v1303 = vcvt.s32.f32 %v1175
          %v1304 = vcvt.s32.f32 %v1176
          %v1305 = vcvt.s32.f32 %v1177
          %v1306 = vcvt.s32.f32 %v1178
          %v1307 = vcvt.s32.f32 %v1179
          %v1308 = vcvt.s32.f32 %v1180
          %v1309 = vcvt.s32.f32 %v1181
          %v1310 = vcvt.s32.f32 %v1182
          %v1311 = vcvt.s32.f32 %v1183
          %v1312 = vcvt.s32.f32 %v1184
          %v1313 = vcvt.s32.f32 %v1185
          %v1314 = vcvt.s32.f32 %v1186
          %v1315 = vcvt.s32.f32 %v1187
          %v1316 = vcvt.s32.f32 %v1188
          %v1317 = vcvt.s32.f32 %v1189
          %v1318 = vcvt.s32.f32 %v1190
          %v1319 = vcvt.s32.f32 %v1191
          %v1320 = vcvt.s32.f32 %v1192
          %v1321 = vcvt.s32.f32 %v1193
          %v1322 = vcvt.s32.f32 %v1194
          %v1323 = vcvt.s32.f32 %v1195
          %v1324 = vcvt.s32.f32 %v1196
          %v1325 = vcvt.s32.f32 %v1197
          %v1326 = vcvt.s32.f32 %v1198
          %v1327 = vcvt.s32.f32 %v1199
          %v1328 = vcvt.s32.f32 %v1200
          %v1329 = vcvt.s32.f32 %v1201
          %v1330 = vcvt.s32.f32 %v1202
          %v1331 = vcvt.s32.f32 %v1203
          %v1332 = vcvt.s32.f32 %v1204
          %v1333 = vcvt.s32.f32 %v1205
          %v1334 = vcvt.s32.f32 %v1206
          %v1335 = vcvt.s32.f32 %v1207
          %v1336 = vcvt.s32.f32 %v1208
          %v1337 = vcvt.s32.f32 %v1209
          %v1338 = vcvt.s32.f32 %v1210
          %v1339 = vcvt.s32.f32 %v1211
          %v1340 = vcvt.s32.f32 %v1212
          %v1341 = vcvt.s32.f32 %v1213
          %v1342 = vcvt.s32.f32 %v1214
          %v1343 = vcvt.s32.f32 %v1215
          %v1344 = vcvt.s32.f32 %v1216
          %v1345 = vcvt.s32.f32 %v1217
          %v1346 = vcvt.s32.f32 %v1218
          %v1347 = vcvt.s32.f32 %v1219
          %v1348 = vcvt.s32.f32 %v1220
          %v1349 = vcvt.s32.f32 %v1221
          %v1350 = vcvt.s32.f32 %v1222
          %v1351 = vcvt.s32.f32 %v1223
          %v1352 = vcvt.s32.f32 %v1224
          %v1353 = vcvt.s32.f32 %v1225
          %v1354 = vcvt.s32.f32 %v1226
          %v1355 = vcvt.s32.f32 %v1227
          %v1356 = vcvt.s32.f32 %v1228
          %v1357 = vcvt.s32.f32 %v1229
          %v1358 = vcvt.s32.f32 %v1230
          %v1359 = vcvt.s32.f32 %v1231
          %v1360 = vcvt.s32.f32 %v1232
          %v1361 = vcvt.s32.f32 %v1233
          %v1362 = vcvt.s32.f32 %v1234
          %v1363 = vcvt.s32.f32 %v1235
          %v1364 = vcvt.s32.f32 %v1236
          %v1365 = vcvt.s32.f32 %v1237
          %v1366 = vcvt.s32.f32 %v1238
          %v1367 = vcvt.s32.f32 %v1239
          %v1368 = vcvt.s32.f32 %v1240
          %v1369 = vcvt.s32.f32 %v1241
          %v1370 = vcvt.s32.f32 %v1242
          %v1371 = vcvt.s32.f32 %v1243
          %v1372 = vcvt.s32.f32 %v1244
          %v1373 = vcvt.s32.f32 %v1245
          %v1374 = vcvt.s32.f32 %v1246
          %v1375 = vcvt.s32.f32 %v1247
          %v1376 = vcvt.s32.f32 %v1248
          %v1377 = vcvt.s32.f32 %v1249
          %v1378 = vcvt.s32.f32 %v1250
          %v1379 = vcvt.s32.f32 %v1251
          %v1380 = vcvt.s32.f32 %v1252
          %v1381 = vcvt.s32.f32 %v1253
          %v1382 = vcvt.s32.f32 %v1254
          %v1383 = vcvt.s32.f32 %v1255
          %v1384 = vcvt.s32.f32 %v1256
          %v1385 = vcvt.s32.f32 %v1257
          %v1386 = vcvt.s32.f32 %v1258
          %v1387 = vcvt.s32.f32 %v1259
          %v1388 = vcvt.s32.f32 %v1260
          %v1389 = vcvt.s32.f32 %v1261
          %v1390 = vcvt.s32.f32 %v1262
          %v1391 = vcvt.s32.f32 %v1263
          %v1392 = vcvt.s32.f32 %v1264
          %v1393 = vcvt.s32.f32 %v1265
          %v1394 = vcvt.s32.f32 %v1266
          %v1395 = vcvt.s32.f32 %v1267
          %v1396 = vcvt.s32.f32 %v1268
          %v1397 = vcvt.s32.f32 %v1269
          %v1398 = vcvt.s32.f32 %v1270
          %v1399 = vcvt.s32.f32 %v1271
          %v1400 = vcvt.s32.f32 %v1272
          %v1401 = vcvt.s32.f32 %v1273
          %v1402 = vcvt.s32.f32 %v1274
          %v1403 = vcvt.s32.f32 %v1275
          %v1404 = vcvt.s32.f32 %v1276
          %v1405 = vcvt.s32.f32 %v1277
          %v1406 = vcvt.s32.f32 %v1278
          %v1407 = vcvt.s32.f32 %v1279
          %v1408 = vcvt.s32.f32 %v1280
          %v1409 = vcvt.s32.f32 %v1281
          %v1410 = vcvt.s32.f32 %v1282
          %v1411 = vcvt.s32.f32 %v1283
          %v1412 = vcvt.s32.f32 %v1284
          %v1413 = vcvt.s32.f32 %v1285
          %v1414 = vcvt.s32.f32 %v1286
          %v1415 = vcvt.s32.f32 %v1287
          %v1416 = vcvt.s32.f32 %v1288
          %v1417 = vcvt.s32.f32 %v1289
          %v1418 = vcvt.s32.f32 %v1290
          %v1419 = vcvt.s32.f32 %v1291
          %v1420 = vcvt.s32.f32 %v1292
          %v1421 = vcvt.s32.f32 %v1293
          %v1422 = vcvt.s32.f32 %v1294
          %v1423 = vcvt.s32.f32 %v1295
          %v1424 = vcvt.s32.f32 %v1296
          %v1425 = vcvt.s32.f32 %v1297
          %v1426 = vcvt.s32.f32 %v1298
          %v1427 = vcvt.s32.f32 %v1299
          %v1428 = vcvt.s32.f32 %v1300
          %v1429 = vcvt.s32.f32 %v1301
          %v1430 = vcvt.s32.f32 %v1302
          %v1431 = vpack.c.bf16 %v1311, %v1303
          %v1432 = vpack.c.bf16 %v1312, %v1304
          %v1433 = vpack.c.bf16 %v1313, %v1305
          %v1434 = vpack.c.bf16 %v1314, %v1306
          %v1435 = vpack.c.bf16 %v1315, %v1307
          %v1436 = vpack.c.bf16 %v1316, %v1308
          %v1437 = vpack.c.bf16 %v1317, %v1309
          %v1438 = vpack.c.bf16 %v1318, %v1310
          %v1439 = vpack.c.bf16 %v1327, %v1319
          %v1440 = vpack.c.bf16 %v1328, %v1320
          %v1441 = vpack.c.bf16 %v1329, %v1321
          %v1442 = vpack.c.bf16 %v1330, %v1322
          %v1443 = vpack.c.bf16 %v1331, %v1323
          %v1444 = vpack.c.bf16 %v1332, %v1324
          %v1445 = vpack.c.bf16 %v1333, %v1325
          %v1446 = vpack.c.bf16 %v1334, %v1326
          %v1447 = vpack.c.bf16 %v1343, %v1335
          %v1448 = vpack.c.bf16 %v1344, %v1336
          %v1449 = vpack.c.bf16 %v1345, %v1337
          %v1450 = vpack.c.bf16 %v1346, %v1338
          %v1451 = vpack.c.bf16 %v1347, %v1339
          %v1452 = vpack.c.bf16 %v1348, %v1340
          %v1453 = vpack.c.bf16 %v1349, %v1341
          %v1454 = vpack.c.bf16 %v1350, %v1342
          %v1455 = vpack.c.bf16 %v1359, %v1351
          %v1456 = vpack.c.bf16 %v1360, %v1352
          %v1457 = vpack.c.bf16 %v1361, %v1353
          %v1458 = vpack.c.bf16 %v1362, %v1354
          %v1459 = vpack.c.bf16 %v1363, %v1355
          %v1460 = vpack.c.bf16 %v1364, %v1356
          %v1461 = vpack.c.bf16 %v1365, %v1357
          %v1462 = vpack.c.bf16 %v1366, %v1358
          %v1463 = vpack.c.bf16 %v1375, %v1367
          %v1464 = vpack.c.bf16 %v1376, %v1368
          %v1465 = vpack.c.bf16 %v1377, %v1369
          %v1466 = vpack.c.bf16 %v1378, %v1370
          %v1467 = vpack.c.bf16 %v1379, %v1371
          %v1468 = vpack.c.bf16 %v1380, %v1372
          %v1469 = vpack.c.bf16 %v1381, %v1373
          %v1470 = vpack.c.bf16 %v1382, %v1374
          %v1471 = vpack.c.bf16 %v1391, %v1383
          %v1472 = vpack.c.bf16 %v1392, %v1384
          %v1473 = vpack.c.bf16 %v1393, %v1385
          %v1474 = vpack.c.bf16 %v1394, %v1386
          %v1475 = vpack.c.bf16 %v1395, %v1387
          %v1476 = vpack.c.bf16 %v1396, %v1388
          %v1477 = vpack.c.bf16 %v1397, %v1389
          %v1478 = vpack.c.bf16 %v1398, %v1390
          %v1479 = vpack.c.bf16 %v1407, %v1399
          %v1480 = vpack.c.bf16 %v1408, %v1400
          %v1481 = vpack.c.bf16 %v1409, %v1401
          %v1482 = vpack.c.bf16 %v1410, %v1402
          %v1483 = vpack.c.bf16 %v1411, %v1403
          %v1484 = vpack.c.bf16 %v1412, %v1404
          %v1485 = vpack.c.bf16 %v1413, %v1405
          %v1486 = vpack.c.bf16 %v1414, %v1406
          %v1487 = vpack.c.bf16 %v1423, %v1415
          %v1488 = vpack.c.bf16 %v1424, %v1416
          %v1489 = vpack.c.bf16 %v1425, %v1417
          %v1490 = vpack.c.bf16 %v1426, %v1418
          %v1491 = vpack.c.bf16 %v1427, %v1419
          %v1492 = vpack.c.bf16 %v1428, %v1420
          %v1493 = vpack.c.bf16 %v1429, %v1421
          %v1494 = vpack.c.bf16 %v1430, %v1422
          %1495 = vst [vmem:[#allocation2] sm:$0xff] %v1431
          %1496 = vst [vmem:[#allocation2 + $0x8] sm:$0xff] %v1432
          %1497 = vst [vmem:[#allocation2 + $0x10] sm:$0xff] %v1433
          %1498 = vst [vmem:[#allocation2 + $0x18] sm:$0xff] %v1434
          %1499 = vst [vmem:[#allocation2 + $0x20] sm:$0xff] %v1435
          %1500 = vst [vmem:[#allocation2 + $0x28] sm:$0xff] %v1436
          %1501 = vst [vmem:[#allocation2 + $0x30] sm:$0xff] %v1437
          %1502 = vst [vmem:[#allocation2 + $0x38] sm:$0xff] %v1438
          %1503 = vst [vmem:[#allocation2 + $0x40] sm:$0xff] %v1439
          %1504 = vst [vmem:[#allocation2 + $0x48] sm:$0xff] %v1440
          %1505 = vst [vmem:[#allocation2 + $0x50] sm:$0xff] %v1441
          %1506 = vst [vmem:[#allocation2 + $0x58] sm:$0xff] %v1442
          %1507 = vst [vmem:[#allocation2 + $0x60] sm:$0xff] %v1443
          %1508 = vst [vmem:[#allocation2 + $0x68] sm:$0xff] %v1444
          %1509 = vst [vmem:[#allocation2 + $0x70] sm:$0xff] %v1445
          %1510 = vst [vmem:[#allocation2 + $0x78] sm:$0xff] %v1446
          %1511 = vst [vmem:[#allocation2 + $0x80] sm:$0xff] %v1447
          %1512 = vst [vmem:[#allocation2 + $0x88] sm:$0xff] %v1448
          %1513 = vst [vmem:[#allocation2 + $0x90] sm:$0xff] %v1449
          %1514 = vst [vmem:[#allocation2 + $0x98] sm:$0xff] %v1450
          %1515 = vst [vmem:[#allocation2 + $0xa0] sm:$0xff] %v1451
          %1516 = vst [vmem:[#allocation2 + $0xa8] sm:$0xff] %v1452
          %1517 = vst [vmem:[#allocation2 + $0xb0] sm:$0xff] %v1453
          %1518 = vst [vmem:[#allocation2 + $0xb8] sm:$0xff] %v1454
          %1519 = vst [vmem:[#allocation2 + $0xc0] sm:$0xff] %v1455
          %1520 = vst [vmem:[#allocation2 + $0xc8] sm:$0xff] %v1456
          %1521 = vst [vmem:[#allocation2 + $0xd0] sm:$0xff] %v1457
          %1522 = vst [vmem:[#allocation2 + $0xd8] sm:$0xff] %v1458
          %1523 = vst [vmem:[#allocation2 + $0xe0] sm:$0xff] %v1459
          %1524 = vst [vmem:[#allocation2 + $0xe8] sm:$0xff] %v1460
          %1525 = vst [vmem:[#allocation2 + $0xf0] sm:$0xff] %v1461
          %1526 = vst [vmem:[#allocation2 + $0xf8] sm:$0xff] %v1462
          %1527 = vst [vmem:[#allocation2 + $0x100] sm:$0xff] %v1463
          %1528 = vst [vmem:[#allocation2 + $0x108] sm:$0xff] %v1464
          %1529 = vst [vmem:[#allocation2 + $0x110] sm:$0xff] %v1465
          %1530 = vst [vmem:[#allocation2 + $0x118] sm:$0xff] %v1466
          %1531 = vst [vmem:[#allocation2 + $0x120] sm:$0xff] %v1467
          %1532 = vst [vmem:[#allocation2 + $0x128] sm:$0xff] %v1468
          %1533 = vst [vmem:[#allocation2 + $0x130] sm:$0xff] %v1469
          %1534 = vst [vmem:[#allocation2 + $0x138] sm:$0xff] %v1470
          %1535 = vst [vmem:[#allocation2 + $0x140] sm:$0xff] %v1471
          %1536 = vst [vmem:[#allocation2 + $0x148] sm:$0xff] %v1472
          %1537 = vst [vmem:[#allocation2 + $0x150] sm:$0xff] %v1473
          %1538 = vst [vmem:[#allocation2 + $0x158] sm:$0xff] %v1474
          %1539 = vst [vmem:[#allocation2 + $0x160] sm:$0xff] %v1475
          %1540 = vst [vmem:[#allocation2 + $0x168] sm:$0xff] %v1476
          %1541 = vst [vmem:[#allocation2 + $0x170] sm:$0xff] %v1477
          %1542 = vst [vmem:[#allocation2 + $0x178] sm:$0xff] %v1478
          %1543 = vst [vmem:[#allocation2 + $0x180] sm:$0xff] %v1479
          %1544 = vst [vmem:[#allocation2 + $0x188] sm:$0xff] %v1480
          %1545 = vst [vmem:[#allocation2 + $0x190] sm:$0xff] %v1481
          %1546 = vst [vmem:[#allocation2 + $0x198] sm:$0xff] %v1482
          %1547 = vst [vmem:[#allocation2 + $0x1a0] sm:$0xff] %v1483
          %1548 = vst [vmem:[#allocation2 + $0x1a8] sm:$0xff] %v1484
          %1549 = vst [vmem:[#allocation2 + $0x1b0] sm:$0xff] %v1485
          %1550 = vst [vmem:[#allocation2 + $0x1b8] sm:$0xff] %v1486
          %1551 = vst [vmem:[#allocation2 + $0x1c0] sm:$0xff] %v1487
          %1552 = vst [vmem:[#allocation2 + $0x1c8] sm:$0xff] %v1488
          %1553 = vst [vmem:[#allocation2 + $0x1d0] sm:$0xff] %v1489
          %1554 = vst [vmem:[#allocation2 + $0x1d8] sm:$0xff] %v1490
          %1555 = vst [vmem:[#allocation2 + $0x1e0] sm:$0xff] %v1491
          %1556 = vst [vmem:[#allocation2 + $0x1e8] sm:$0xff] %v1492
          %1557 = vst [vmem:[#allocation2 + $0x1f0] sm:$0xff] %v1493
          %1558 = vst [vmem:[#allocation2 + $0x1f8] sm:$0xff] %v1494
        $region84: #{tpu_custom_call.1} parent=55 // pred_fallthru
          _
        %v1559 = vld [vmem:[%s469] sm:$0xff]
        %v1560 = vld [vmem:[%s469 + $0x8] sm:$0xff]
        %v1561 = vld [vmem:[%s469 + $0x10] sm:$0xff]
        %v1562 = vld [vmem:[%s469 + $0x18] sm:$0xff]
        %v1563 = vld [vmem:[%s469 + $0x20] sm:$0xff]
        %v1564 = vld [vmem:[%s469 + $0x28] sm:$0xff]
        %v1565 = vld [vmem:[%s469 + $0x30] sm:$0xff]
        %v1566 = vld [vmem:[%s469 + $0x38] sm:$0xff]
        %v1567 = vld [vmem:[%s469 + $0x40] sm:$0xff]
        %v1568 = vld [vmem:[%s469 + $0x48] sm:$0xff]
        %v1569 = vld [vmem:[%s469 + $0x50] sm:$0xff]
        %v1570 = vld [vmem:[%s469 + $0x58] sm:$0xff]
        %v1571 = vld [vmem:[%s469 + $0x60] sm:$0xff]
        %v1572 = vld [vmem:[%s469 + $0x68] sm:$0xff]
        %v1573 = vld [vmem:[%s469 + $0x70] sm:$0xff]
        %v1574 = vld [vmem:[%s469 + $0x78] sm:$0xff]
        %v1575 = vld [vmem:[%s478] sm:$0xff]
        %v1576 = vld [vmem:[%s478 + $0x8] sm:$0xff]
        %v1577 = vld [vmem:[%s478 + $0x10] sm:$0xff]
        %v1578 = vld [vmem:[%s478 + $0x18] sm:$0xff]
        %v1579 = vld [vmem:[%s478 + $0x20] sm:$0xff]
        %v1580 = vld [vmem:[%s478 + $0x28] sm:$0xff]
        %v1581 = vld [vmem:[%s478 + $0x30] sm:$0xff]
        %v1582 = vld [vmem:[%s478 + $0x38] sm:$0xff]
        %v1583 = vld [vmem:[%s478 + $0x40] sm:$0xff]
        %v1584 = vld [vmem:[%s478 + $0x48] sm:$0xff]
        %v1585 = vld [vmem:[%s478 + $0x50] sm:$0xff]
        %v1586 = vld [vmem:[%s478 + $0x58] sm:$0xff]
        %v1587 = vld [vmem:[%s478 + $0x60] sm:$0xff]
        %v1588 = vld [vmem:[%s478 + $0x68] sm:$0xff]
        %v1589 = vld [vmem:[%s478 + $0x70] sm:$0xff]
        %v1590 = vld [vmem:[%s478 + $0x78] sm:$0xff]
        %v1591 = vld [vmem:[%s584] sm:$0x1]
        %v1593 = vlaneseq
        %v1594 = vshrl.u32 %v1593, 7
        %v1595 = vsub.s32 0, %v1594
        %v1596 = vrot.slane %v1591, %v1595
        %1598 = vmatprep.subr.mxu0 0.0
        %1599 = vmatpush1.msra.mxu0 %v1575
        %1600 = vmatprep.subr.mxu0 0.0
        %1601 = vmatpush1.msra.mxu0 %v1576
        %1602 = vmatprep.subr.mxu0 0.0
        %1603 = vmatpush1.msra.mxu0 %v1577
        %1604 = vmatprep.subr.mxu0 0.0
        %1605 = vmatpush1.msra.mxu0 %v1578
        %1606 = vmatprep.subr.mxu0 0.0
        %1607 = vmatpush1.msra.mxu0 %v1579
        %1608 = vmatprep.subr.mxu0 0.0
        %1609 = vmatpush1.msra.mxu0 %v1580
        %1610 = vmatprep.subr.mxu0 0.0
        %1611 = vmatpush1.msra.mxu0 %v1581
        %1612 = vmatprep.subr.mxu0 0.0
        %1613 = vmatpush1.msra.mxu0 %v1582
        %1614 = vmatprep.subr.mxu0 0.0
        %1615 = vmatpush1.msra.mxu0 %v1583
        %1616 = vmatprep.subr.mxu0 0.0
        %1617 = vmatpush1.msra.mxu0 %v1584
        %1618 = vmatprep.subr.mxu0 0.0
        %1619 = vmatpush1.msra.mxu0 %v1585
        %1620 = vmatprep.subr.mxu0 0.0
        %1621 = vmatpush1.msra.mxu0 %v1586
        %1622 = vmatprep.subr.mxu0 0.0
        %1623 = vmatpush1.msra.mxu0 %v1587
        %1624 = vmatprep.subr.mxu0 0.0
        %1625 = vmatpush1.msra.mxu0 %v1588
        %1626 = vmatprep.subr.mxu0 0.0
        %1627 = vmatpush1.msra.mxu0 %v1589
        %1628 = vmatprep.subr.mxu0 0.0
        %1629 = vmatpush1.msra.mxu0 %v1590
        %1630 = vmatprep.subr.mxu0 0.0
        %1631 = vmatpush1.msra.mxu0 0.0
        %1632 = vmatprep.subr.mxu0 0.0
        %1633 = vmatpush1.msra.mxu0 0.0
        %1634 = vmatprep.subr.mxu0 0.0
        %1635 = vmatpush1.msra.mxu0 0.0
        %1636 = vmatprep.subr.mxu0 0.0
        %1637 = vmatpush1.msra.mxu0 0.0
        %1638 = vmatprep.subr.mxu0 0.0
        %1639 = vmatpush1.msra.mxu0 0.0
        %1640 = vmatprep.subr.mxu0 0.0
        %1641 = vmatpush1.msra.mxu0 0.0
        %1642 = vmatprep.subr.mxu0 0.0
        %1643 = vmatpush1.msra.mxu0 0.0
        %1644 = vmatprep.subr.mxu0 0.0
        %1645 = vmatpush1.msra.mxu0 0.0
        %1646 = vmatprep.subr.mxu0 0.0
        %1647 = vmatpush1.msra.mxu0 0.0
        %1648 = vmatprep.subr.mxu0 0.0
        %1649 = vmatpush1.msra.mxu0 0.0
        %1650 = vmatprep.subr.mxu0 0.0
        %1651 = vmatpush1.msra.mxu0 0.0
        %1652 = vmatprep.subr.mxu0 0.0
        %1653 = vmatpush1.msra.mxu0 0.0
        %1654 = vmatprep.subr.mxu0 0.0
        %1655 = vmatpush1.msra.mxu0 0.0
        %1656 = vmatprep.subr.mxu0 0.0
        %1657 = vmatpush1.msra.mxu0 0.0
        %1658 = vmatprep.subr.mxu0 0.0
        %1659 = vmatpush1.msra.mxu0 0.0
        %1660 = vmatprep.subr.mxu0 0.0
        %1661 = vmatpush1.msra.mxu0 0.0
        %1662 = vmatprep.mubr.f32.mxu0 0.0
        %1663 = vmatmul.mubr.f32.gmra.mrb[0].mxu0 %v1559
        %v1664 = vpop.f32.mrb[0].mxu0
        %v1665 = vadd.f32 %v1596, %v1664
        %v1666 = vpop.f32.mrb[0].mxu0
        %1667 = vmatprep.mubr.f32.mxu0 0.0
        %1668 = vmatmul.mubr.f32.gmra.mrb[0].mxu0 %v1560
        %v1669 = vpop.f32.mrb[0].mxu0
        %v1670 = vadd.f32 %v1596, %v1669
        %v1671 = vpop.f32.mrb[0].mxu0
        %1672 = vmatprep.mubr.f32.mxu0 0.0
        %1673 = vmatmul.mubr.f32.gmra.mrb[0].mxu0 %v1561
        %v1674 = vpop.f32.mrb[0].mxu0
        %v1675 = vadd.f32 %v1596, %v1674
        %v1676 = vpop.f32.mrb[0].mxu0
        %1677 = vmatprep.mubr.f32.mxu0 0.0
        %1678 = vmatmul.mubr.f32.gmra.mrb[0].mxu0 %v1562
        %v1679 = vpop.f32.mrb[0].mxu0
        %v1680 = vadd.f32 %v1596, %v1679
        %v1681 = vpop.f32.mrb[0].mxu0
        %1682 = vmatprep.mubr.f32.mxu0 0.0
        %1683 = vmatmul.mubr.f32.gmra.mrb[0].mxu0 %v1563
        %v1684 = vpop.f32.mrb[0].mxu0
        %v1685 = vadd.f32 %v1596, %v1684
        %v1686 = vpop.f32.mrb[0].mxu0
        %1687 = vmatprep.mubr.f32.mxu0 0.0
        %1688 = vmatmul.mubr.f32.gmra.mrb[0].mxu0 %v1564
        %v1689 = vpop.f32.mrb[0].mxu0
        %v1690 = vadd.f32 %v1596, %v1689
        %v1691 = vpop.f32.mrb[0].mxu0
        %1692 = vmatprep.mubr.f32.mxu0 0.0
        %1693 = vmatmul.mubr.f32.gmra.mrb[0].mxu0 %v1565
        %v1694 = vpop.f32.mrb[0].mxu0
        %v1695 = vadd.f32 %v1596, %v1694
        %v1696 = vpop.f32.mrb[0].mxu0
        %1697 = vmatprep.mubr.f32.mxu0 0.0
        %1698 = vmatmul.mubr.f32.gmra.mrb[0].mxu0 %v1566
        %v1699 = vpop.f32.mrb[0].mxu0
        %v1700 = vadd.f32 %v1596, %v1699
        %v1701 = vpop.f32.mrb[0].mxu0
        %1702 = vmatprep.mubr.f32.mxu0 0.0
        %1703 = vmatmul.mubr.f32.gmra.mrb[0].mxu0 %v1567
        %v1704 = vpop.f32.mrb[0].mxu0
        %v1705 = vadd.f32 %v1596, %v1704
        %v1706 = vpop.f32.mrb[0].mxu0
        %1707 = vmatprep.mubr.f32.mxu0 0.0
        %1708 = vmatmul.mubr.f32.gmra.mrb[0].mxu0 %v1568
        %v1709 = vpop.f32.mrb[0].mxu0
        %v1710 = vadd.f32 %v1596, %v1709
        %v1711 = vpop.f32.mrb[0].mxu0
        %1712 = vmatprep.mubr.f32.mxu0 0.0
        %1713 = vmatmul.mubr.f32.gmra.mrb[0].mxu0 %v1569
        %v1714 = vpop.f32.mrb[0].mxu0
        %v1715 = vadd.f32 %v1596, %v1714
        %v1716 = vpop.f32.mrb[0].mxu0
        %1717 = vmatprep.mubr.f32.mxu0 0.0
        %1718 = vmatmul.mubr.f32.gmra.mrb[0].mxu0 %v1570
        %v1719 = vpop.f32.mrb[0].mxu0
        %v1720 = vadd.f32 %v1596, %v1719
        %v1721 = vpop.f32.mrb[0].mxu0
        %1722 = vmatprep.mubr.f32.mxu0 0.0
        %1723 = vmatmul.mubr.f32.gmra.mrb[0].mxu0 %v1571
        %v1724 = vpop.f32.mrb[0].mxu0
        %v1725 = vadd.f32 %v1596, %v1724
        %v1726 = vpop.f32.mrb[0].mxu0
        %1727 = vmatprep.mubr.f32.mxu0 0.0
        %1728 = vmatmul.mubr.f32.gmra.mrb[0].mxu0 %v1572
        %v1729 = vpop.f32.mrb[0].mxu0
        %v1730 = vadd.f32 %v1596, %v1729
        %v1731 = vpop.f32.mrb[0].mxu0
        %1732 = vmatprep.mubr.f32.mxu0 0.0
        %1733 = vmatmul.mubr.f32.gmra.mrb[0].mxu0 %v1573
        %v1734 = vpop.f32.mrb[0].mxu0
        %v1735 = vadd.f32 %v1596, %v1734
        %v1736 = vpop.f32.mrb[0].mxu0
        %1737 = vmatprep.mubr.f32.mxu0 0.0
        %1738 = vmatmul.mubr.f32.gmra.mrb[0].mxu0 %v1574
        %v1739 = vpop.f32.mrb[0].mxu0
        %v1740 = vadd.f32 %v1596, %v1739
        %v1741 = vpop.f32.mrb[0].mxu0
        %1742 = vdwg.mxu0
        %v1743 = vmax.f32 %v1665, 0.0
        %v1744 = vmax.f32 %v1670, 0.0
        %v1745 = vmax.f32 %v1675, 0.0
        %v1746 = vmax.f32 %v1680, 0.0
        %v1747 = vmax.f32 %v1685, 0.0
        %v1748 = vmax.f32 %v1690, 0.0
        %v1749 = vmax.f32 %v1695, 0.0
        %v1750 = vmax.f32 %v1700, 0.0
        %v1751 = vmax.f32 %v1705, 0.0
        %v1752 = vmax.f32 %v1710, 0.0
        %v1753 = vmax.f32 %v1715, 0.0
        %v1754 = vmax.f32 %v1720, 0.0
        %v1755 = vmax.f32 %v1725, 0.0
        %v1756 = vmax.f32 %v1730, 0.0
        %v1757 = vmax.f32 %v1735, 0.0
        %v1758 = vmax.f32 %v1740, 0.0
        %vm1759 = vcmp.gt.f32.partialorder %v1743, 0.0
        %vm1760 = vcmp.gt.f32.partialorder %v1744, 0.0
        %vm1761 = vcmp.gt.f32.partialorder %v1745, 0.0
        %vm1762 = vcmp.gt.f32.partialorder %v1746, 0.0
        %vm1763 = vcmp.gt.f32.partialorder %v1747, 0.0
        %vm1764 = vcmp.gt.f32.partialorder %v1748, 0.0
        %vm1765 = vcmp.gt.f32.partialorder %v1749, 0.0
        %vm1766 = vcmp.gt.f32.partialorder %v1750, 0.0
        %vm1767 = vcmp.gt.f32.partialorder %v1751, 0.0
        %vm1768 = vcmp.gt.f32.partialorder %v1752, 0.0
        %vm1769 = vcmp.gt.f32.partialorder %v1753, 0.0
        %vm1770 = vcmp.gt.f32.partialorder %v1754, 0.0
        %vm1771 = vcmp.gt.f32.partialorder %v1755, 0.0
        %vm1772 = vcmp.gt.f32.partialorder %v1756, 0.0
        %vm1773 = vcmp.gt.f32.partialorder %v1757, 0.0
        %vm1774 = vcmp.gt.f32.partialorder %v1758, 0.0
        %v1775 = vsel %vm1759, 1, 0
        %v1776 = vsel %vm1760, 1, 0
        %v1777 = vsel %vm1761, 1, 0
        %v1778 = vsel %vm1762, 1, 0
        %v1779 = vsel %vm1763, 1, 0
        %v1780 = vsel %vm1764, 1, 0
        %v1781 = vsel %vm1765, 1, 0
        %v1782 = vsel %vm1766, 1, 0
        %v1783 = vsel %vm1767, 1, 0
        %v1784 = vsel %vm1768, 1, 0
        %v1785 = vsel %vm1769, 1, 0
        %v1786 = vsel %vm1770, 1, 0
        %v1787 = vsel %vm1771, 1, 0
        %v1788 = vsel %vm1772, 1, 0
        %v1789 = vsel %vm1773, 1, 0
        %v1790 = vsel %vm1774, 1, 0
        %v1791 = vcvt.s32.f32 %v1775
        %v1792 = vcvt.s32.f32 %v1776
        %v1793 = vcvt.s32.f32 %v1777
        %v1794 = vcvt.s32.f32 %v1778
        %v1795 = vcvt.s32.f32 %v1779
        %v1796 = vcvt.s32.f32 %v1780
        %v1797 = vcvt.s32.f32 %v1781
        %v1798 = vcvt.s32.f32 %v1782
        %v1799 = vcvt.s32.f32 %v1783
        %v1800 = vcvt.s32.f32 %v1784
        %v1801 = vcvt.s32.f32 %v1785
        %v1802 = vcvt.s32.f32 %v1786
        %v1803 = vcvt.s32.f32 %v1787
        %v1804 = vcvt.s32.f32 %v1788
        %v1805 = vcvt.s32.f32 %v1789
        %v1806 = vcvt.s32.f32 %v1790
        %v1807 = vpack.c.bf16 %v1792, %v1791
        %v1808 = vpack.c.bf16 %v1794, %v1793
        %v1809 = vpack.c.bf16 %v1796, %v1795
        %v1810 = vpack.c.bf16 %v1798, %v1797
        %v1811 = vpack.c.bf16 %v1800, %v1799
        %v1812 = vpack.c.bf16 %v1802, %v1801
        %v1813 = vpack.c.bf16 %v1804, %v1803
        %v1814 = vpack.c.bf16 %v1806, %v1805
        %v1815 = vld [vmem:[%s580] sm:$0xff]
        %v1816 = vld [vmem:[%s580 + $0x8] sm:$0xff]
        %v1817 = vld [vmem:[%s580 + $0x10] sm:$0xff]
        %v1818 = vld [vmem:[%s580 + $0x18] sm:$0xff]
        %v1819 = vld [vmem:[%s580 + $0x20] sm:$0xff]
        %v1820 = vld [vmem:[%s580 + $0x28] sm:$0xff]
        %v1821 = vld [vmem:[%s580 + $0x30] sm:$0xff]
        %v1822 = vld [vmem:[%s580 + $0x38] sm:$0xff]
        %v1823 = vld [vmem:[%s580 + $0x40] sm:$0xff]
        %v1824 = vld [vmem:[%s580 + $0x48] sm:$0xff]
        %v1825 = vld [vmem:[%s580 + $0x50] sm:$0xff]
        %v1826 = vld [vmem:[%s580 + $0x58] sm:$0xff]
        %v1827 = vld [vmem:[%s580 + $0x60] sm:$0xff]
        %v1828 = vld [vmem:[%s580 + $0x68] sm:$0xff]
        %v1829 = vld [vmem:[%s580 + $0x70] sm:$0xff]
        %v1830 = vld [vmem:[%s580 + $0x78] sm:$0xff]
        %v1831 = vpack.c.bf16 %v1744, %v1743
        %v1832 = vpack.c.bf16 %v1746, %v1745
        %v1833 = vpack.c.bf16 %v1748, %v1747
        %v1834 = vpack.c.bf16 %v1750, %v1749
        %v1835 = vpack.c.bf16 %v1752, %v1751
        %v1836 = vpack.c.bf16 %v1754, %v1753
        %v1837 = vpack.c.bf16 %v1756, %v1755
        %v1838 = vpack.c.bf16 %v1758, %v1757
        %v1839 = vld [vmem:[%s487] sm:$0xf]
        %v1840 = vld [vmem:[%s487 + $0x4] sm:$0xf]
        %v1841 = vld [vmem:[%s487 + $0x8] sm:$0xf]
        %v1842 = vld [vmem:[%s487 + $0xc] sm:$0xf]
        %v1843 = vld [vmem:[%s487 + $0x10] sm:$0xf]
        %v1844 = vld [vmem:[%s487 + $0x14] sm:$0xf]
        %v1845 = vld [vmem:[%s487 + $0x18] sm:$0xf]
        %v1846 = vld [vmem:[%s487 + $0x1c] sm:$0xf]
        %v1847 = vld [vmem:[%s487 + $0x20] sm:$0xf]
        %v1848 = vld [vmem:[%s487 + $0x24] sm:$0xf]
        %v1849 = vld [vmem:[%s487 + $0x28] sm:$0xf]
        %v1850 = vld [vmem:[%s487 + $0x2c] sm:$0xf]
        %v1851 = vld [vmem:[%s487 + $0x30] sm:$0xf]
        %v1852 = vld [vmem:[%s487 + $0x34] sm:$0xf]
        %v1853 = vld [vmem:[%s487 + $0x38] sm:$0xf]
        %v1854 = vld [vmem:[%s487 + $0x3c] sm:$0xf]
        %v1871 = vunpack.c.l.b16 %v1839
        %v1872 = vunpack.c.l.b16 %v1840
        %v1873 = vunpack.c.l.b16 %v1841
        %v1874 = vunpack.c.l.b16 %v1842
        %v1875 = vunpack.c.l.b16 %v1843
        %v1876 = vunpack.c.l.b16 %v1844
        %v1877 = vunpack.c.l.b16 %v1845
        %v1878 = vunpack.c.l.b16 %v1846
        %v1879 = vunpack.c.l.b16 %v1847
        %v1880 = vunpack.c.l.b16 %v1848
        %v1881 = vunpack.c.l.b16 %v1849
        %v1882 = vunpack.c.l.b16 %v1850
        %v1883 = vunpack.c.l.b16 %v1851
        %v1884 = vunpack.c.l.b16 %v1852
        %v1885 = vunpack.c.l.b16 %v1853
        %v1886 = vunpack.c.l.b16 %v1854
        %v1887 = vpack.c.b16 %v1872, %v1871
        %v1888 = vpack.c.b16 %v1874, %v1873
        %v1889 = vpack.c.b16 %v1876, %v1875
        %v1890 = vpack.c.b16 %v1878, %v1877
        %v1891 = vpack.c.b16 %v1880, %v1879
        %v1892 = vpack.c.b16 %v1882, %v1881
        %v1893 = vpack.c.b16 %v1884, %v1883
        %v1894 = vpack.c.b16 %v1886, %v1885
        %1903 = vmatprep.subr.bf16.mxu0 0
        %1904 = vmatpush1.bf16.msra.mxu0 %v1887
        %1905 = vmatprep.subr.bf16.mxu0 0
        %1906 = vmatpush1.bf16.msra.mxu0 %v1888
        %1907 = vmatprep.subr.bf16.mxu0 0
        %1908 = vmatpush1.bf16.msra.mxu0 %v1889
        %1909 = vmatprep.subr.bf16.mxu0 0
        %1910 = vmatpush1.bf16.msra.mxu0 %v1890
        %1911 = vmatprep.subr.bf16.mxu0 0
        %1912 = vmatpush1.bf16.msra.mxu0 %v1891
        %1913 = vmatprep.subr.bf16.mxu0 0
        %1914 = vmatpush1.bf16.msra.mxu0 %v1892
        %1915 = vmatprep.subr.bf16.mxu0 0
        %1916 = vmatpush1.bf16.msra.mxu0 %v1893
        %1917 = vmatprep.subr.bf16.mxu0 0
        %1918 = vmatpush1.bf16.msra.mxu0 %v1894
        %1919 = vmatprep.subr.bf16.mxu0 0
        %1920 = vmatpush1.bf16.msra.mxu0 0
        %1921 = vmatprep.subr.bf16.mxu0 0
        %1922 = vmatpush1.bf16.msra.mxu0 0
        %1923 = vmatprep.subr.bf16.mxu0 0
        %1924 = vmatpush1.bf16.msra.mxu0 0
        %1925 = vmatprep.subr.bf16.mxu0 0
        %1926 = vmatpush1.bf16.msra.mxu0 0
        %1927 = vmatprep.subr.bf16.mxu0 0
        %1928 = vmatpush1.bf16.msra.mxu0 0
        %1929 = vmatprep.subr.bf16.mxu0 0
        %1930 = vmatpush1.bf16.msra.mxu0 0
        %1931 = vmatprep.subr.bf16.mxu0 0
        %1932 = vmatpush1.bf16.msra.mxu0 0
        %1933 = vmatprep.subr.bf16.mxu0 0
        %1934 = vmatpush1.bf16.msra.mxu0 0
        %1935 = vmatprep.mubr.bf16.mxu0 0
        %1936 = vmatmul.mubr.bf16.gmra.mrb[0].mxu0 %v1831
        %v1937 = vpop.f32.mrb[0].mxu0
        %v1938 = vadd.f32 0.0, %v1937
        %v1939 = vpop.f32.mrb[0].mxu0
        %v1940 = vpop.f32.mrb[0].mxu0
        %v1941 = vadd.f32 0.0, %v1940
        %v1942 = vpop.f32.mrb[0].mxu0
        %1943 = vmatprep.mubr.bf16.mxu0 0
        %1944 = vmatmul.mubr.bf16.gmra.mrb[0].mxu0 %v1832
        %v1945 = vpop.f32.mrb[0].mxu0
        %v1946 = vadd.f32 0.0, %v1945
        %v1947 = vpop.f32.mrb[0].mxu0
        %v1948 = vpop.f32.mrb[0].mxu0
        %v1949 = vadd.f32 0.0, %v1948
        %v1950 = vpop.f32.mrb[0].mxu0
        %1951 = vmatprep.mubr.bf16.mxu0 0
        %1952 = vmatmul.mubr.bf16.gmra.mrb[0].mxu0 %v1833
        %v1953 = vpop.f32.mrb[0].mxu0
        %v1954 = vadd.f32 0.0, %v1953
        %v1955 = vpop.f32.mrb[0].mxu0
        %v1956 = vpop.f32.mrb[0].mxu0
        %v1957 = vadd.f32 0.0, %v1956
        %v1958 = vpop.f32.mrb[0].mxu0
        %1959 = vmatprep.mubr.bf16.mxu0 0
        %1960 = vmatmul.mubr.bf16.gmra.mrb[0].mxu0 %v1834
        %v1961 = vpop.f32.mrb[0].mxu0
        %v1962 = vadd.f32 0.0, %v1961
        %v1963 = vpop.f32.mrb[0].mxu0
        %v1964 = vpop.f32.mrb[0].mxu0
        %v1965 = vadd.f32 0.0, %v1964
        %v1966 = vpop.f32.mrb[0].mxu0
        %1967 = vmatprep.mubr.bf16.mxu0 0
        %1968 = vmatmul.mubr.bf16.gmra.mrb[0].mxu0 %v1835
        %v1969 = vpop.f32.mrb[0].mxu0
        %v1970 = vadd.f32 0.0, %v1969
        %v1971 = vpop.f32.mrb[0].mxu0
        %v1972 = vpop.f32.mrb[0].mxu0
        %v1973 = vadd.f32 0.0, %v1972
        %v1974 = vpop.f32.mrb[0].mxu0
        %1975 = vmatprep.mubr.bf16.mxu0 0
        %1976 = vmatmul.mubr.bf16.gmra.mrb[0].mxu0 %v1836
        %v1977 = vpop.f32.mrb[0].mxu0
        %v1978 = vadd.f32 0.0, %v1977
        %v1979 = vpop.f32.mrb[0].mxu0
        %v1980 = vpop.f32.mrb[0].mxu0
        %v1981 = vadd.f32 0.0, %v1980
        %v1982 = vpop.f32.mrb[0].mxu0
        %1983 = vmatprep.mubr.bf16.mxu0 0
        %1984 = vmatmul.mubr.bf16.gmra.mrb[0].mxu0 %v1837
        %v1985 = vpop.f32.mrb[0].mxu0
        %v1986 = vadd.f32 0.0, %v1985
        %v1987 = vpop.f32.mrb[0].mxu0
        %v1988 = vpop.f32.mrb[0].mxu0
        %v1989 = vadd.f32 0.0, %v1988
        %v1990 = vpop.f32.mrb[0].mxu0
        %1991 = vmatprep.mubr.bf16.mxu0 0
        %1992 = vmatmul.mubr.bf16.gmra.mrb[0].mxu0 %v1838
        %v1993 = vpop.f32.mrb[0].mxu0
        %v1994 = vadd.f32 0.0, %v1993
        %v1995 = vpop.f32.mrb[0].mxu0
        %v1996 = vpop.f32.mrb[0].mxu0
        %v1997 = vadd.f32 0.0, %v1996
        %v1998 = vpop.f32.mrb[0].mxu0
        %1999 = vdwg.mxu0
        %v2000 = vadd.f32 %v1815, %v1938
        %v2001 = vadd.f32 %v1816, %v1941
        %v2002 = vadd.f32 %v1817, %v1946
        %v2003 = vadd.f32 %v1818, %v1949
        %v2004 = vadd.f32 %v1819, %v1954
        %v2005 = vadd.f32 %v1820, %v1957
        %v2006 = vadd.f32 %v1821, %v1962
        %v2007 = vadd.f32 %v1822, %v1965
        %v2008 = vadd.f32 %v1823, %v1970
        %v2009 = vadd.f32 %v1824, %v1973
        %v2010 = vadd.f32 %v1825, %v1978
        %v2011 = vadd.f32 %v1826, %v1981
        %v2012 = vadd.f32 %v1827, %v1986
        %v2013 = vadd.f32 %v1828, %v1989
        %v2014 = vadd.f32 %v1829, %v1994
        %v2015 = vadd.f32 %v1830, %v1997
        %v2016 = vpack.c.bf16 %v1560, %v1559
        %v2017 = vpack.c.bf16 %v1562, %v1561
        %v2018 = vpack.c.bf16 %v1564, %v1563
        %v2019 = vpack.c.bf16 %v1566, %v1565
        %v2020 = vpack.c.bf16 %v1568, %v1567
        %v2021 = vpack.c.bf16 %v1570, %v1569
        %v2022 = vpack.c.bf16 %v1572, %v1571
        %v2023 = vpack.c.bf16 %v1574, %v1573
        %v2024 = vld [vmem:[%s496] sm:$0xff]
        %v2025 = vld [vmem:[%s496 + $0x8] sm:$0xff]
        %v2026 = vld [vmem:[%s496 + $0x10] sm:$0xff]
        %v2027 = vld [vmem:[%s496 + $0x18] sm:$0xff]
        %v2028 = vld [vmem:[%s496 + $0x20] sm:$0xff]
        %v2029 = vld [vmem:[%s496 + $0x28] sm:$0xff]
        %v2030 = vld [vmem:[%s496 + $0x30] sm:$0xff]
        %v2031 = vld [vmem:[%s496 + $0x38] sm:$0xff]
        %v2032 = vld [vmem:[%s496 + $0x40] sm:$0xff]
        %v2033 = vld [vmem:[%s496 + $0x48] sm:$0xff]
        %v2034 = vld [vmem:[%s496 + $0x50] sm:$0xff]
        %v2035 = vld [vmem:[%s496 + $0x58] sm:$0xff]
        %v2036 = vld [vmem:[%s496 + $0x60] sm:$0xff]
        %v2037 = vld [vmem:[%s496 + $0x68] sm:$0xff]
        %v2038 = vld [vmem:[%s496 + $0x70] sm:$0xff]
        %v2039 = vld [vmem:[%s496 + $0x78] sm:$0xff]
        %v2040 = vld [vmem:[%s496 + $0x80] sm:$0xff]
        %v2041 = vld [vmem:[%s496 + $0x88] sm:$0xff]
        %v2042 = vld [vmem:[%s496 + $0x90] sm:$0xff]
        %v2043 = vld [vmem:[%s496 + $0x98] sm:$0xff]
        %v2044 = vld [vmem:[%s496 + $0xa0] sm:$0xff]
        %v2045 = vld [vmem:[%s496 + $0xa8] sm:$0xff]
        %v2046 = vld [vmem:[%s496 + $0xb0] sm:$0xff]
        %v2047 = vld [vmem:[%s496 + $0xb8] sm:$0xff]
        %v2048 = vld [vmem:[%s496 + $0xc0] sm:$0xff]
        %v2049 = vld [vmem:[%s496 + $0xc8] sm:$0xff]
        %v2050 = vld [vmem:[%s496 + $0xd0] sm:$0xff]
        %v2051 = vld [vmem:[%s496 + $0xd8] sm:$0xff]
        %v2052 = vld [vmem:[%s496 + $0xe0] sm:$0xff]
        %v2053 = vld [vmem:[%s496 + $0xe8] sm:$0xff]
        %v2054 = vld [vmem:[%s496 + $0xf0] sm:$0xff]
        %v2055 = vld [vmem:[%s496 + $0xf8] sm:$0xff]
        %v2056 = vld [vmem:[%s496 + $0x100] sm:$0xff]
        %v2057 = vld [vmem:[%s496 + $0x108] sm:$0xff]
        %v2058 = vld [vmem:[%s496 + $0x110] sm:$0xff]
        %v2059 = vld [vmem:[%s496 + $0x118] sm:$0xff]
        %v2060 = vld [vmem:[%s496 + $0x120] sm:$0xff]
        %v2061 = vld [vmem:[%s496 + $0x128] sm:$0xff]
        %v2062 = vld [vmem:[%s496 + $0x130] sm:$0xff]
        %v2063 = vld [vmem:[%s496 + $0x138] sm:$0xff]
        %v2064 = vld [vmem:[%s496 + $0x140] sm:$0xff]
        %v2065 = vld [vmem:[%s496 + $0x148] sm:$0xff]
        %v2066 = vld [vmem:[%s496 + $0x150] sm:$0xff]
        %v2067 = vld [vmem:[%s496 + $0x158] sm:$0xff]
        %v2068 = vld [vmem:[%s496 + $0x160] sm:$0xff]
        %v2069 = vld [vmem:[%s496 + $0x168] sm:$0xff]
        %v2070 = vld [vmem:[%s496 + $0x170] sm:$0xff]
        %v2071 = vld [vmem:[%s496 + $0x178] sm:$0xff]
        %v2072 = vld [vmem:[%s496 + $0x180] sm:$0xff]
        %v2073 = vld [vmem:[%s496 + $0x188] sm:$0xff]
        %v2074 = vld [vmem:[%s496 + $0x190] sm:$0xff]
        %v2075 = vld [vmem:[%s496 + $0x198] sm:$0xff]
        %v2076 = vld [vmem:[%s496 + $0x1a0] sm:$0xff]
        %v2077 = vld [vmem:[%s496 + $0x1a8] sm:$0xff]
        %v2078 = vld [vmem:[%s496 + $0x1b0] sm:$0xff]
        %v2079 = vld [vmem:[%s496 + $0x1b8] sm:$0xff]
        %v2080 = vld [vmem:[%s496 + $0x1c0] sm:$0xff]
        %v2081 = vld [vmem:[%s496 + $0x1c8] sm:$0xff]
        %v2082 = vld [vmem:[%s496 + $0x1d0] sm:$0xff]
        %v2083 = vld [vmem:[%s496 + $0x1d8] sm:$0xff]
        %v2084 = vld [vmem:[%s496 + $0x1e0] sm:$0xff]
        %v2085 = vld [vmem:[%s496 + $0x1e8] sm:$0xff]
        %v2086 = vld [vmem:[%s496 + $0x1f0] sm:$0xff]
        %v2087 = vld [vmem:[%s496 + $0x1f8] sm:$0xff]
        %v2088 = vld [vmem:[%s589] sm:$0xff]
        %v2090 = vlaneseq
        %v2091 = vshrl.u32 %v2090, 7
        %v2092 = vsub.s32 0, %v2091
        %v2093 = vrot.slane %v2088, %v2092
        %v2094 = vlaneseq
        %v2095 = vshrl.u32 %v2094, 7
        %v2096 = vsub.s32 1, %v2095
        %v2097 = vrot.slane %v2088, %v2096
        %v2098 = vlaneseq
        %v2099 = vshrl.u32 %v2098, 7
        %v2100 = vsub.s32 2, %v2099
        %v2101 = vrot.slane %v2088, %v2100
        %v2102 = vlaneseq
        %v2103 = vshrl.u32 %v2102, 7
        %v2104 = vsub.s32 3, %v2103
        %v2105 = vrot.slane %v2088, %v2104
        %v2106 = vlaneseq
        %v2107 = vshrl.u32 %v2106, 7
        %v2108 = vsub.s32 4, %v2107
        %v2109 = vrot.slane %v2088, %v2108
        %v2110 = vlaneseq
        %v2111 = vshrl.u32 %v2110, 7
        %v2112 = vsub.s32 5, %v2111
        %v2113 = vrot.slane %v2088, %v2112
        %v2114 = vlaneseq
        %v2115 = vshrl.u32 %v2114, 7
        %v2116 = vsub.s32 6, %v2115
        %v2117 = vrot.slane %v2088, %v2116
        %v2118 = vlaneseq
        %v2119 = vshrl.u32 %v2118, 7
        %v2120 = vsub.s32 7, %v2119
        %v2121 = vrot.slane %v2088, %v2120
        %v2194 = vunpack.c.l.b16 %v2024
        %v2195 = vunpack.c.h.b16 %v2024
        %v2196 = vunpack.c.l.b16 %v2025
        %v2197 = vunpack.c.h.b16 %v2025
        %v2198 = vunpack.c.l.b16 %v2026
        %v2199 = vunpack.c.h.b16 %v2026
        %v2200 = vunpack.c.l.b16 %v2027
        %v2201 = vunpack.c.h.b16 %v2027
        %v2202 = vunpack.c.l.b16 %v2028
        %v2203 = vunpack.c.h.b16 %v2028
        %v2204 = vunpack.c.l.b16 %v2029
        %v2205 = vunpack.c.h.b16 %v2029
        %v2206 = vunpack.c.l.b16 %v2030
        %v2207 = vunpack.c.h.b16 %v2030
        %v2208 = vunpack.c.l.b16 %v2031
        %v2209 = vunpack.c.h.b16 %v2031
        %v2210 = vunpack.c.l.b16 %v2032
        %v2211 = vunpack.c.h.b16 %v2032
        %v2212 = vunpack.c.l.b16 %v2033
        %v2213 = vunpack.c.h.b16 %v2033
        %v2214 = vunpack.c.l.b16 %v2034
        %v2215 = vunpack.c.h.b16 %v2034
        %v2216 = vunpack.c.l.b16 %v2035
        %v2217 = vunpack.c.h.b16 %v2035
        %v2218 = vunpack.c.l.b16 %v2036
        %v2219 = vunpack.c.h.b16 %v2036
        %v2220 = vunpack.c.l.b16 %v2037
        %v2221 = vunpack.c.h.b16 %v2037
        %v2222 = vunpack.c.l.b16 %v2038
        %v2223 = vunpack.c.h.b16 %v2038
        %v2224 = vunpack.c.l.b16 %v2039
        %v2225 = vunpack.c.h.b16 %v2039
        %v2226 = vunpack.c.l.b16 %v2040
        %v2227 = vunpack.c.h.b16 %v2040
        %v2228 = vunpack.c.l.b16 %v2041
        %v2229 = vunpack.c.h.b16 %v2041
        %v2230 = vunpack.c.l.b16 %v2042
        %v2231 = vunpack.c.h.b16 %v2042
        %v2232 = vunpack.c.l.b16 %v2043
        %v2233 = vunpack.c.h.b16 %v2043
        %v2234 = vunpack.c.l.b16 %v2044
        %v2235 = vunpack.c.h.b16 %v2044
        %v2236 = vunpack.c.l.b16 %v2045
        %v2237 = vunpack.c.h.b16 %v2045
        %v2238 = vunpack.c.l.b16 %v2046
        %v2239 = vunpack.c.h.b16 %v2046
        %v2240 = vunpack.c.l.b16 %v2047
        %v2241 = vunpack.c.h.b16 %v2047
        %v2242 = vunpack.c.l.b16 %v2048
        %v2243 = vunpack.c.h.b16 %v2048
        %v2244 = vunpack.c.l.b16 %v2049
        %v2245 = vunpack.c.h.b16 %v2049
        %v2246 = vunpack.c.l.b16 %v2050
        %v2247 = vunpack.c.h.b16 %v2050
        %v2248 = vunpack.c.l.b16 %v2051
        %v2249 = vunpack.c.h.b16 %v2051
        %v2250 = vunpack.c.l.b16 %v2052
        %v2251 = vunpack.c.h.b16 %v2052
        %v2252 = vunpack.c.l.b16 %v2053
        %v2253 = vunpack.c.h.b16 %v2053
        %v2254 = vunpack.c.l.b16 %v2054
        %v2255 = vunpack.c.h.b16 %v2054
        %v2256 = vunpack.c.l.b16 %v2055
        %v2257 = vunpack.c.h.b16 %v2055
        %v2258 = vunpack.c.l.b16 %v2056
        %v2259 = vunpack.c.h.b16 %v2056
        %v2260 = vunpack.c.l.b16 %v2057
        %v2261 = vunpack.c.h.b16 %v2057
        %v2262 = vunpack.c.l.b16 %v2058
        %v2263 = vunpack.c.h.b16 %v2058
        %v2264 = vunpack.c.l.b16 %v2059
        %v2265 = vunpack.c.h.b16 %v2059
        %v2266 = vunpack.c.l.b16 %v2060
        %v2267 = vunpack.c.h.b16 %v2060
        %v2268 = vunpack.c.l.b16 %v2061
        %v2269 = vunpack.c.h.b16 %v2061
        %v2270 = vunpack.c.l.b16 %v2062
        %v2271 = vunpack.c.h.b16 %v2062
        %v2272 = vunpack.c.l.b16 %v2063
        %v2273 = vunpack.c.h.b16 %v2063
        %v2274 = vunpack.c.l.b16 %v2064
        %v2275 = vunpack.c.h.b16 %v2064
        %v2276 = vunpack.c.l.b16 %v2065
        %v2277 = vunpack.c.h.b16 %v2065
        %v2278 = vunpack.c.l.b16 %v2066
        %v2279 = vunpack.c.h.b16 %v2066
        %v2280 = vunpack.c.l.b16 %v2067
        %v2281 = vunpack.c.h.b16 %v2067
        %v2282 = vunpack.c.l.b16 %v2068
        %v2283 = vunpack.c.h.b16 %v2068
        %v2284 = vunpack.c.l.b16 %v2069
        %v2285 = vunpack.c.h.b16 %v2069
        %v2286 = vunpack.c.l.b16 %v2070
        %v2287 = vunpack.c.h.b16 %v2070
        %v2288 = vunpack.c.l.b16 %v2071
        %v2289 = vunpack.c.h.b16 %v2071
        %v2290 = vunpack.c.l.b16 %v2072
        %v2291 = vunpack.c.h.b16 %v2072
        %v2292 = vunpack.c.l.b16 %v2073
        %v2293 = vunpack.c.h.b16 %v2073
        %v2294 = vunpack.c.l.b16 %v2074
        %v2295 = vunpack.c.h.b16 %v2074
        %v2296 = vunpack.c.l.b16 %v2075
        %v2297 = vunpack.c.h.b16 %v2075
        %v2298 = vunpack.c.l.b16 %v2076
        %v2299 = vunpack.c.h.b16 %v2076
        %v2300 = vunpack.c.l.b16 %v2077
        %v2301 = vunpack.c.h.b16 %v2077
        %v2302 = vunpack.c.l.b16 %v2078
        %v2303 = vunpack.c.h.b16 %v2078
        %v2304 = vunpack.c.l.b16 %v2079
        %v2305 = vunpack.c.h.b16 %v2079
        %v2306 = vunpack.c.l.b16 %v2080
        %v2307 = vunpack.c.h.b16 %v2080
        %v2308 = vunpack.c.l.b16 %v2081
        %v2309 = vunpack.c.h.b16 %v2081
        %v2310 = vunpack.c.l.b16 %v2082
        %v2311 = vunpack.c.h.b16 %v2082
        %v2312 = vunpack.c.l.b16 %v2083
        %v2313 = vunpack.c.h.b16 %v2083
        %v2314 = vunpack.c.l.b16 %v2084
        %v2315 = vunpack.c.h.b16 %v2084
        %v2316 = vunpack.c.l.b16 %v2085
        %v2317 = vunpack.c.h.b16 %v2085
        %v2318 = vunpack.c.l.b16 %v2086
        %v2319 = vunpack.c.h.b16 %v2086
        %v2320 = vunpack.c.l.b16 %v2087
        %v2321 = vunpack.c.h.b16 %v2087
        %v2322 = vpack.c.b16 %v2202, %v2194
        %v2323 = vpack.c.b16 %v2203, %v2195
        %v2324 = vpack.c.b16 %v2204, %v2196
        %v2325 = vpack.c.b16 %v2205, %v2197
        %v2326 = vpack.c.b16 %v2206, %v2198
        %v2327 = vpack.c.b16 %v2207, %v2199
        %v2328 = vpack.c.b16 %v2208, %v2200
        %v2329 = vpack.c.b16 %v2209, %v2201
        %v2330 = vpack.c.b16 %v2218, %v2210
        %v2331 = vpack.c.b16 %v2219, %v2211
        %v2332 = vpack.c.b16 %v2220, %v2212
        %v2333 = vpack.c.b16 %v2221, %v2213
        %v2334 = vpack.c.b16 %v2222, %v2214
        %v2335 = vpack.c.b16 %v2223, %v2215
        %v2336 = vpack.c.b16 %v2224, %v2216
        %v2337 = vpack.c.b16 %v2225, %v2217
        %v2338 = vpack.c.b16 %v2234, %v2226
        %v2339 = vpack.c.b16 %v2235, %v2227
        %v2340 = vpack.c.b16 %v2236, %v2228
        %v2341 = vpack.c.b16 %v2237, %v2229
        %v2342 = vpack.c.b16 %v2238, %v2230
        %v2343 = vpack.c.b16 %v2239, %v2231
        %v2344 = vpack.c.b16 %v2240, %v2232
        %v2345 = vpack.c.b16 %v2241, %v2233
        %v2346 = vpack.c.b16 %v2250, %v2242
        %v2347 = vpack.c.b16 %v2251, %v2243
        %v2348 = vpack.c.b16 %v2252, %v2244
        %v2349 = vpack.c.b16 %v2253, %v2245
        %v2350 = vpack.c.b16 %v2254, %v2246
        %v2351 = vpack.c.b16 %v2255, %v2247
        %v2352 = vpack.c.b16 %v2256, %v2248
        %v2353 = vpack.c.b16 %v2257, %v2249
        %v2354 = vpack.c.b16 %v2266, %v2258
        %v2355 = vpack.c.b16 %v2267, %v2259
        %v2356 = vpack.c.b16 %v2268, %v2260
        %v2357 = vpack.c.b16 %v2269, %v2261
        %v2358 = vpack.c.b16 %v2270, %v2262
        %v2359 = vpack.c.b16 %v2271, %v2263
        %v2360 = vpack.c.b16 %v2272, %v2264
        %v2361 = vpack.c.b16 %v2273, %v2265
        %v2362 = vpack.c.b16 %v2282, %v2274
        %v2363 = vpack.c.b16 %v2283, %v2275
        %v2364 = vpack.c.b16 %v2284, %v2276
        %v2365 = vpack.c.b16 %v2285, %v2277
        %v2366 = vpack.c.b16 %v2286, %v2278
        %v2367 = vpack.c.b16 %v2287, %v2279
        %v2368 = vpack.c.b16 %v2288, %v2280
        %v2369 = vpack.c.b16 %v2289, %v2281
        %v2370 = vpack.c.b16 %v2298, %v2290
        %v2371 = vpack.c.b16 %v2299, %v2291
        %v2372 = vpack.c.b16 %v2300, %v2292
        %v2373 = vpack.c.b16 %v2301, %v2293
        %v2374 = vpack.c.b16 %v2302, %v2294
        %v2375 = vpack.c.b16 %v2303, %v2295
        %v2376 = vpack.c.b16 %v2304, %v2296
        %v2377 = vpack.c.b16 %v2305, %v2297
        %v2378 = vpack.c.b16 %v2314, %v2306
        %v2379 = vpack.c.b16 %v2315, %v2307
        %v2380 = vpack.c.b16 %v2316, %v2308
        %v2381 = vpack.c.b16 %v2317, %v2309
        %v2382 = vpack.c.b16 %v2318, %v2310
        %v2383 = vpack.c.b16 %v2319, %v2311
        %v2384 = vpack.c.b16 %v2320, %v2312
        %v2385 = vpack.c.b16 %v2321, %v2313
        %2450 = vmatprep.subr.bf16.mxu0 %v2323
        %2451 = vmatpush1.bf16.msra.mxu0 %v2322
        %2452 = vmatprep.subr.bf16.mxu0 %v2331
        %2453 = vmatpush1.bf16.msra.mxu0 %v2330
        %2454 = vmatprep.subr.bf16.mxu0 %v2339
        %2455 = vmatpush1.bf16.msra.mxu0 %v2338
        %2456 = vmatprep.subr.bf16.mxu0 %v2347
        %2457 = vmatpush1.bf16.msra.mxu0 %v2346
        %2458 = vmatprep.subr.bf16.mxu0 %v2355
        %2459 = vmatpush1.bf16.msra.mxu0 %v2354
        %2460 = vmatprep.subr.bf16.mxu0 %v2363
        %2461 = vmatpush1.bf16.msra.mxu0 %v2362
        %2462 = vmatprep.subr.bf16.mxu0 %v2371
        %2463 = vmatpush1.bf16.msra.mxu0 %v2370
        %2464 = vmatprep.subr.bf16.mxu0 %v2379
        %2465 = vmatpush1.bf16.msra.mxu0 %v2378
        %2466 = vmatprep.subr.bf16.mxu0 0
        %2467 = vmatpush1.bf16.msra.mxu0 0
        %2468 = vmatprep.subr.bf16.mxu0 0
        %2469 = vmatpush1.bf16.msra.mxu0 0
        %2470 = vmatprep.subr.bf16.mxu0 0
        %2471 = vmatpush1.bf16.msra.mxu0 0
        %2472 = vmatprep.subr.bf16.mxu0 0
        %2473 = vmatpush1.bf16.msra.mxu0 0
        %2474 = vmatprep.subr.bf16.mxu0 0
        %2475 = vmatpush1.bf16.msra.mxu0 0
        %2476 = vmatprep.subr.bf16.mxu0 0
        %2477 = vmatpush1.bf16.msra.mxu0 0
        %2478 = vmatprep.subr.bf16.mxu0 0
        %2479 = vmatpush1.bf16.msra.mxu0 0
        %2480 = vmatprep.subr.bf16.mxu0 0
        %2481 = vmatpush1.bf16.msra.mxu0 0
        %2482 = vmatprep.mubr.bf16.mxu0 0
        %2483 = vmatmul.mubr.bf16.gmra.mrb[0].mxu0 %v2016
        %v2484 = vpop.f32.mrb[0].mxu0
        %v2485 = vadd.f32 %v2093, %v2484
        %v2486 = vpop.f32.mrb[0].mxu0
        %v2487 = vadd.f32 %v2097, %v2486
        %v2488 = vpop.f32.mrb[0].mxu0
        %v2489 = vadd.f32 %v2093, %v2488
        %v2490 = vpop.f32.mrb[0].mxu0
        %v2491 = vadd.f32 %v2097, %v2490
        %2492 = vmatprep.mubr.bf16.mxu0 0
        %2493 = vmatmul.mubr.bf16.gmra.mrb[0].mxu0 %v2017
        %v2494 = vpop.f32.mrb[0].mxu0
        %v2495 = vadd.f32 %v2093, %v2494
        %v2496 = vpop.f32.mrb[0].mxu0
        %v2497 = vadd.f32 %v2097, %v2496
        %v2498 = vpop.f32.mrb[0].mxu0
        %v2499 = vadd.f32 %v2093, %v2498
        %v2500 = vpop.f32.mrb[0].mxu0
        %v2501 = vadd.f32 %v2097, %v2500
        %2502 = vmatprep.mubr.bf16.mxu0 0
        %2503 = vmatmul.mubr.bf16.gmra.mrb[0].mxu0 %v2018
        %v2504 = vpop.f32.mrb[0].mxu0
        %v2505 = vadd.f32 %v2093, %v2504
        %v2506 = vpop.f32.mrb[0].mxu0
        %v2507 = vadd.f32 %v2097, %v2506
        %v2508 = vpop.f32.mrb[0].mxu0
        %v2509 = vadd.f32 %v2093, %v2508
        %v2510 = vpop.f32.mrb[0].mxu0
        %v2511 = vadd.f32 %v2097, %v2510
        %2512 = vmatprep.mubr.bf16.mxu0 0
        %2513 = vmatmul.mubr.bf16.gmra.mrb[0].mxu0 %v2019
        %v2514 = vpop.f32.mrb[0].mxu0
        %v2515 = vadd.f32 %v2093, %v2514
        %v2516 = vpop.f32.mrb[0].mxu0
        %v2517 = vadd.f32 %v2097, %v2516
        %v2518 = vpop.f32.mrb[0].mxu0
        %v2519 = vadd.f32 %v2093, %v2518
        %v2520 = vpop.f32.mrb[0].mxu0
        %v2521 = vadd.f32 %v2097, %v2520
        %2522 = vmatprep.mubr.bf16.mxu0 0
        %2523 = vmatmul.mubr.bf16.gmra.mrb[0].mxu0 %v2020
        %v2524 = vpop.f32.mrb[0].mxu0
        %v2525 = vadd.f32 %v2093, %v2524
        %v2526 = vpop.f32.mrb[0].mxu0
        %v2527 = vadd.f32 %v2097, %v2526
        %v2528 = vpop.f32.mrb[0].mxu0
        %v2529 = vadd.f32 %v2093, %v2528
        %v2530 = vpop.f32.mrb[0].mxu0
        %v2531 = vadd.f32 %v2097, %v2530
        %2532 = vmatprep.mubr.bf16.mxu0 0
        %2533 = vmatmul.mubr.bf16.gmra.mrb[0].mxu0 %v2021
        %v2534 = vpop.f32.mrb[0].mxu0
        %v2535 = vadd.f32 %v2093, %v2534
        %v2536 = vpop.f32.mrb[0].mxu0
        %v2537 = vadd.f32 %v2097, %v2536
        %v2538 = vpop.f32.mrb[0].mxu0
        %v2539 = vadd.f32 %v2093, %v2538
        %v2540 = vpop.f32.mrb[0].mxu0
        %v2541 = vadd.f32 %v2097, %v2540
        %2542 = vmatprep.mubr.bf16.mxu0 0
        %2543 = vmatmul.mubr.bf16.gmra.mrb[0].mxu0 %v2022
        %v2544 = vpop.f32.mrb[0].mxu0
        %v2545 = vadd.f32 %v2093, %v2544
        %v2546 = vpop.f32.mrb[0].mxu0
        %v2547 = vadd.f32 %v2097, %v2546
        %v2548 = vpop.f32.mrb[0].mxu0
        %v2549 = vadd.f32 %v2093, %v2548
        %v2550 = vpop.f32.mrb[0].mxu0
        %v2551 = vadd.f32 %v2097, %v2550
        %2552 = vmatprep.mubr.bf16.mxu0 0
        %2553 = vmatmul.mubr.bf16.gmra.mrb[0].mxu0 %v2023
        %v2554 = vpop.f32.mrb[0].mxu0
        %v2555 = vadd.f32 %v2093, %v2554
        %v2556 = vpop.f32.mrb[0].mxu0
        %v2557 = vadd.f32 %v2097, %v2556
        %v2558 = vpop.f32.mrb[0].mxu0
        %v2559 = vadd.f32 %v2093, %v2558
        %v2560 = vpop.f32.mrb[0].mxu0
        %v2561 = vadd.f32 %v2097, %v2560
        %2562 = vdwg.mxu0
        %2563 = vmatprep.subr.bf16.mxu0 %v2325
        %2564 = vmatpush1.bf16.msra.mxu0 %v2324
        %2565 = vmatprep.subr.bf16.mxu0 %v2333
        %2566 = vmatpush1.bf16.msra.mxu0 %v2332
        %2567 = vmatprep.subr.bf16.mxu0 %v2341
        %2568 = vmatpush1.bf16.msra.mxu0 %v2340
        %2569 = vmatprep.subr.bf16.mxu0 %v2349
        %2570 = vmatpush1.bf16.msra.mxu0 %v2348
        %2571 = vmatprep.subr.bf16.mxu0 %v2357
        %2572 = vmatpush1.bf16.msra.mxu0 %v2356
        %2573 = vmatprep.subr.bf16.mxu0 %v2365
        %2574 = vmatpush1.bf16.msra.mxu0 %v2364
        %2575 = vmatprep.subr.bf16.mxu0 %v2373
        %2576 = vmatpush1.bf16.msra.mxu0 %v2372
        %2577 = vmatprep.subr.bf16.mxu0 %v2381
        %2578 = vmatpush1.bf16.msra.mxu0 %v2380
        %2579 = vmatprep.subr.bf16.mxu0 0
        %2580 = vmatpush1.bf16.msra.mxu0 0
        %2581 = vmatprep.subr.bf16.mxu0 0
        %2582 = vmatpush1.bf16.msra.mxu0 0
        %2583 = vmatprep.subr.bf16.mxu0 0
        %2584 = vmatpush1.bf16.msra.mxu0 0
        %2585 = vmatprep.subr.bf16.mxu0 0
        %2586 = vmatpush1.bf16.msra.mxu0 0
        %2587 = vmatprep.subr.bf16.mxu0 0
        %2588 = vmatpush1.bf16.msra.mxu0 0
        %2589 = vmatprep.subr.bf16.mxu0 0
        %2590 = vmatpush1.bf16.msra.mxu0 0
        %2591 = vmatprep.subr.bf16.mxu0 0
        %2592 = vmatpush1.bf16.msra.mxu0 0
        %2593 = vmatprep.subr.bf16.mxu0 0
        %2594 = vmatpush1.bf16.msra.mxu0 0
        %2595 = vmatprep.mubr.bf16.mxu0 0
        %2596 = vmatmul.mubr.bf16.gmra.mrb[0].mxu0 %v2016
        %v2597 = vpop.f32.mrb[0].mxu0
        %v2598 = vadd.f32 %v2101, %v2597
        %v2599 = vpop.f32.mrb[0].mxu0
        %v2600 = vadd.f32 %v2105, %v2599
        %v2601 = vpop.f32.mrb[0].mxu0
        %v2602 = vadd.f32 %v2101, %v2601
        %v2603 = vpop.f32.mrb[0].mxu0
        %v2604 = vadd.f32 %v2105, %v2603
        %2605 = vmatprep.mubr.bf16.mxu0 0
        %2606 = vmatmul.mubr.bf16.gmra.mrb[0].mxu0 %v2017
        %v2607 = vpop.f32.mrb[0].mxu0
        %v2608 = vadd.f32 %v2101, %v2607
        %v2609 = vpop.f32.mrb[0].mxu0
        %v2610 = vadd.f32 %v2105, %v2609
        %v2611 = vpop.f32.mrb[0].mxu0
        %v2612 = vadd.f32 %v2101, %v2611
        %v2613 = vpop.f32.mrb[0].mxu0
        %v2614 = vadd.f32 %v2105, %v2613
        %2615 = vmatprep.mubr.bf16.mxu0 0
        %2616 = vmatmul.mubr.bf16.gmra.mrb[0].mxu0 %v2018
        %v2617 = vpop.f32.mrb[0].mxu0
        %v2618 = vadd.f32 %v2101, %v2617
        %v2619 = vpop.f32.mrb[0].mxu0
        %v2620 = vadd.f32 %v2105, %v2619
        %v2621 = vpop.f32.mrb[0].mxu0
        %v2622 = vadd.f32 %v2101, %v2621
        %v2623 = vpop.f32.mrb[0].mxu0
        %v2624 = vadd.f32 %v2105, %v2623
        %2625 = vmatprep.mubr.bf16.mxu0 0
        %2626 = vmatmul.mubr.bf16.gmra.mrb[0].mxu0 %v2019
        %v2627 = vpop.f32.mrb[0].mxu0
        %v2628 = vadd.f32 %v2101, %v2627
        %v2629 = vpop.f32.mrb[0].mxu0
        %v2630 = vadd.f32 %v2105, %v2629
        %v2631 = vpop.f32.mrb[0].mxu0
        %v2632 = vadd.f32 %v2101, %v2631
        %v2633 = vpop.f32.mrb[0].mxu0
        %v2634 = vadd.f32 %v2105, %v2633
        %2635 = vmatprep.mubr.bf16.mxu0 0
        %2636 = vmatmul.mubr.bf16.gmra.mrb[0].mxu0 %v2020
        %v2637 = vpop.f32.mrb[0].mxu0
        %v2638 = vadd.f32 %v2101, %v2637
        %v2639 = vpop.f32.mrb[0].mxu0
        %v2640 = vadd.f32 %v2105, %v2639
        %v2641 = vpop.f32.mrb[0].mxu0
        %v2642 = vadd.f32 %v2101, %v2641
        %v2643 = vpop.f32.mrb[0].mxu0
        %v2644 = vadd.f32 %v2105, %v2643
        %2645 = vmatprep.mubr.bf16.mxu0 0
        %2646 = vmatmul.mubr.bf16.gmra.mrb[0].mxu0 %v2021
        %v2647 = vpop.f32.mrb[0].mxu0
        %v2648 = vadd.f32 %v2101, %v2647
        %v2649 = vpop.f32.mrb[0].mxu0
        %v2650 = vadd.f32 %v2105, %v2649
        %v2651 = vpop.f32.mrb[0].mxu0
        %v2652 = vadd.f32 %v2101, %v2651
        %v2653 = vpop.f32.mrb[0].mxu0
        %v2654 = vadd.f32 %v2105, %v2653
        %2655 = vmatprep.mubr.bf16.mxu0 0
        %2656 = vmatmul.mubr.bf16.gmra.mrb[0].mxu0 %v2022
        %v2657 = vpop.f32.mrb[0].mxu0
        %v2658 = vadd.f32 %v2101, %v2657
        %v2659 = vpop.f32.mrb[0].mxu0
        %v2660 = vadd.f32 %v2105, %v2659
        %v2661 = vpop.f32.mrb[0].mxu0
        %v2662 = vadd.f32 %v2101, %v2661
        %v2663 = vpop.f32.mrb[0].mxu0
        %v2664 = vadd.f32 %v2105, %v2663
        %2665 = vmatprep.mubr.bf16.mxu0 0
        %2666 = vmatmul.mubr.bf16.gmra.mrb[0].mxu0 %v2023
        %v2667 = vpop.f32.mrb[0].mxu0
        %v2668 = vadd.f32 %v2101, %v2667
        %v2669 = vpop.f32.mrb[0].mxu0
        %v2670 = vadd.f32 %v2105, %v2669
        %v2671 = vpop.f32.mrb[0].mxu0
        %v2672 = vadd.f32 %v2101, %v2671
        %v2673 = vpop.f32.mrb[0].mxu0
        %v2674 = vadd.f32 %v2105, %v2673
        %2675 = vdwg.mxu0
        %2676 = vmatprep.subr.bf16.mxu0 %v2327
        %2677 = vmatpush1.bf16.msra.mxu0 %v2326
        %2678 = vmatprep.subr.bf16.mxu0 %v2335
        %2679 = vmatpush1.bf16.msra.mxu0 %v2334
        %2680 = vmatprep.subr.bf16.mxu0 %v2343
        %2681 = vmatpush1.bf16.msra.mxu0 %v2342
        %2682 = vmatprep.subr.bf16.mxu0 %v2351
        %2683 = vmatpush1.bf16.msra.mxu0 %v2350
        %2684 = vmatprep.subr.bf16.mxu0 %v2359
        %2685 = vmatpush1.bf16.msra.mxu0 %v2358
        %2686 = vmatprep.subr.bf16.mxu0 %v2367
        %2687 = vmatpush1.bf16.msra.mxu0 %v2366
        %2688 = vmatprep.subr.bf16.mxu0 %v2375
        %2689 = vmatpush1.bf16.msra.mxu0 %v2374
        %2690 = vmatprep.subr.bf16.mxu0 %v2383
        %2691 = vmatpush1.bf16.msra.mxu0 %v2382
        %2692 = vmatprep.subr.bf16.mxu0 0
        %2693 = vmatpush1.bf16.msra.mxu0 0
        %2694 = vmatprep.subr.bf16.mxu0 0
        %2695 = vmatpush1.bf16.msra.mxu0 0
        %2696 = vmatprep.subr.bf16.mxu0 0
        %2697 = vmatpush1.bf16.msra.mxu0 0
        %2698 = vmatprep.subr.bf16.mxu0 0
        %2699 = vmatpush1.bf16.msra.mxu0 0
        %2700 = vmatprep.subr.bf16.mxu0 0
        %2701 = vmatpush1.bf16.msra.mxu0 0
        %2702 = vmatprep.subr.bf16.mxu0 0
        %2703 = vmatpush1.bf16.msra.mxu0 0
        %2704 = vmatprep.subr.bf16.mxu0 0
        %2705 = vmatpush1.bf16.msra.mxu0 0
        %2706 = vmatprep.subr.bf16.mxu0 0
        %2707 = vmatpush1.bf16.msra.mxu0 0
        %2708 = vmatprep.mubr.bf16.mxu0 0
        %2709 = vmatmul.mubr.bf16.gmra.mrb[0].mxu0 %v2016
        %v2710 = vpop.f32.mrb[0].mxu0
        %v2711 = vadd.f32 %v2109, %v2710
        %v2712 = vpop.f32.mrb[0].mxu0
        %v2713 = vadd.f32 %v2113, %v2712
        %v2714 = vpop.f32.mrb[0].mxu0
        %v2715 = vadd.f32 %v2109, %v2714
        %v2716 = vpop.f32.mrb[0].mxu0
        %v2717 = vadd.f32 %v2113, %v2716
        %2718 = vmatprep.mubr.bf16.mxu0 0
        %2719 = vmatmul.mubr.bf16.gmra.mrb[0].mxu0 %v2017
        %v2720 = vpop.f32.mrb[0].mxu0
        %v2721 = vadd.f32 %v2109, %v2720
        %v2722 = vpop.f32.mrb[0].mxu0
        %v2723 = vadd.f32 %v2113, %v2722
        %v2724 = vpop.f32.mrb[0].mxu0
        %v2725 = vadd.f32 %v2109, %v2724
        %v2726 = vpop.f32.mrb[0].mxu0
        %v2727 = vadd.f32 %v2113, %v2726
        %2728 = vmatprep.mubr.bf16.mxu0 0
        %2729 = vmatmul.mubr.bf16.gmra.mrb[0].mxu0 %v2018
        %v2730 = vpop.f32.mrb[0].mxu0
        %v2731 = vadd.f32 %v2109, %v2730
        %v2732 = vpop.f32.mrb[0].mxu0
        %v2733 = vadd.f32 %v2113, %v2732
        %v2734 = vpop.f32.mrb[0].mxu0
        %v2735 = vadd.f32 %v2109, %v2734
        %v2736 = vpop.f32.mrb[0].mxu0
        %v2737 = vadd.f32 %v2113, %v2736
        %2738 = vmatprep.mubr.bf16.mxu0 0
        %2739 = vmatmul.mubr.bf16.gmra.mrb[0].mxu0 %v2019
        %v2740 = vpop.f32.mrb[0].mxu0
        %v2741 = vadd.f32 %v2109, %v2740
        %v2742 = vpop.f32.mrb[0].mxu0
        %v2743 = vadd.f32 %v2113, %v2742
        %v2744 = vpop.f32.mrb[0].mxu0
        %v2745 = vadd.f32 %v2109, %v2744
        %v2746 = vpop.f32.mrb[0].mxu0
        %v2747 = vadd.f32 %v2113, %v2746
        %2748 = vmatprep.mubr.bf16.mxu0 0
        %2749 = vmatmul.mubr.bf16.gmra.mrb[0].mxu0 %v2020
        %v2750 = vpop.f32.mrb[0].mxu0
        %v2751 = vadd.f32 %v2109, %v2750
        %v2752 = vpop.f32.mrb[0].mxu0
        %v2753 = vadd.f32 %v2113, %v2752
        %v2754 = vpop.f32.mrb[0].mxu0
        %v2755 = vadd.f32 %v2109, %v2754
        %v2756 = vpop.f32.mrb[0].mxu0
        %v2757 = vadd.f32 %v2113, %v2756
        %2758 = vmatprep.mubr.bf16.mxu0 0
        %2759 = vmatmul.mubr.bf16.gmra.mrb[0].mxu0 %v2021
        %v2760 = vpop.f32.mrb[0].mxu0
        %v2761 = vadd.f32 %v2109, %v2760
        %v2762 = vpop.f32.mrb[0].mxu0
        %v2763 = vadd.f32 %v2113, %v2762
        %v2764 = vpop.f32.mrb[0].mxu0
        %v2765 = vadd.f32 %v2109, %v2764
        %v2766 = vpop.f32.mrb[0].mxu0
        %v2767 = vadd.f32 %v2113, %v2766
        %2768 = vmatprep.mubr.bf16.mxu0 0
        %2769 = vmatmul.mubr.bf16.gmra.mrb[0].mxu0 %v2022
        %v2770 = vpop.f32.mrb[0].mxu0
        %v2771 = vadd.f32 %v2109, %v2770
        %v2772 = vpop.f32.mrb[0].mxu0
        %v2773 = vadd.f32 %v2113, %v2772
        %v2774 = vpop.f32.mrb[0].mxu0
        %v2775 = vadd.f32 %v2109, %v2774
        %v2776 = vpop.f32.mrb[0].mxu0
        %v2777 = vadd.f32 %v2113, %v2776
        %2778 = vmatprep.mubr.bf16.mxu0 0
        %2779 = vmatmul.mubr.bf16.gmra.mrb[0].mxu0 %v2023
        %v2780 = vpop.f32.mrb[0].mxu0
        %v2781 = vadd.f32 %v2109, %v2780
        %v2782 = vpop.f32.mrb[0].mxu0
        %v2783 = vadd.f32 %v2113, %v2782
        %v2784 = vpop.f32.mrb[0].mxu0
        %v2785 = vadd.f32 %v2109, %v2784
        %v2786 = vpop.f32.mrb[0].mxu0
        %v2787 = vadd.f32 %v2113, %v2786
        %2788 = vdwg.mxu0
        %2789 = vmatprep.subr.bf16.mxu0 %v2329
        %2790 = vmatpush1.bf16.msra.mxu0 %v2328
        %2791 = vmatprep.subr.bf16.mxu0 %v2337
        %2792 = vmatpush1.bf16.msra.mxu0 %v2336
        %2793 = vmatprep.subr.bf16.mxu0 %v2345
        %2794 = vmatpush1.bf16.msra.mxu0 %v2344
        %2795 = vmatprep.subr.bf16.mxu0 %v2353
        %2796 = vmatpush1.bf16.msra.mxu0 %v2352
        %2797 = vmatprep.subr.bf16.mxu0 %v2361
        %2798 = vmatpush1.bf16.msra.mxu0 %v2360
        %2799 = vmatprep.subr.bf16.mxu0 %v2369
        %2800 = vmatpush1.bf16.msra.mxu0 %v2368
        %2801 = vmatprep.subr.bf16.mxu0 %v2377
        %2802 = vmatpush1.bf16.msra.mxu0 %v2376
        %2803 = vmatprep.subr.bf16.mxu0 %v2385
        %2804 = vmatpush1.bf16.msra.mxu0 %v2384
        %2805 = vmatprep.subr.bf16.mxu0 0
        %2806 = vmatpush1.bf16.msra.mxu0 0
        %2807 = vmatprep.subr.bf16.mxu0 0
        %2808 = vmatpush1.bf16.msra.mxu0 0
        %2809 = vmatprep.subr.bf16.mxu0 0
        %2810 = vmatpush1.bf16.msra.mxu0 0
        %2811 = vmatprep.subr.bf16.mxu0 0
        %2812 = vmatpush1.bf16.msra.mxu0 0
        %2813 = vmatprep.subr.bf16.mxu0 0
        %2814 = vmatpush1.bf16.msra.mxu0 0
        %2815 = vmatprep.subr.bf16.mxu0 0
        %2816 = vmatpush1.bf16.msra.mxu0 0
        %2817 = vmatprep.subr.bf16.mxu0 0
        %2818 = vmatpush1.bf16.msra.mxu0 0
        %2819 = vmatprep.subr.bf16.mxu0 0
        %2820 = vmatpush1.bf16.msra.mxu0 0
        %2821 = vmatprep.mubr.bf16.mxu0 0
        %2822 = vmatmul.mubr.bf16.gmra.mrb[0].mxu0 %v2016
        %v2823 = vpop.f32.mrb[0].mxu0
        %v2824 = vadd.f32 %v2117, %v2823
        %v2825 = vpop.f32.mrb[0].mxu0
        %v2826 = vadd.f32 %v2121, %v2825
        %v2827 = vpop.f32.mrb[0].mxu0
        %v2828 = vadd.f32 %v2117, %v2827
        %v2829 = vpop.f32.mrb[0].mxu0
        %v2830 = vadd.f32 %v2121, %v2829
        %2831 = vmatprep.mubr.bf16.mxu0 0
        %2832 = vmatmul.mubr.bf16.gmra.mrb[0].mxu0 %v2017
        %v2833 = vpop.f32.mrb[0].mxu0
        %v2834 = vadd.f32 %v2117, %v2833
        %v2835 = vpop.f32.mrb[0].mxu0
        %v2836 = vadd.f32 %v2121, %v2835
        %v2837 = vpop.f32.mrb[0].mxu0
        %v2838 = vadd.f32 %v2117, %v2837
        %v2839 = vpop.f32.mrb[0].mxu0
        %v2840 = vadd.f32 %v2121, %v2839
        %2841 = vmatprep.mubr.bf16.mxu0 0
        %2842 = vmatmul.mubr.bf16.gmra.mrb[0].mxu0 %v2018
        %v2843 = vpop.f32.mrb[0].mxu0
        %v2844 = vadd.f32 %v2117, %v2843
        %v2845 = vpop.f32.mrb[0].mxu0
        %v2846 = vadd.f32 %v2121, %v2845
        %v2847 = vpop.f32.mrb[0].mxu0
        %v2848 = vadd.f32 %v2117, %v2847
        %v2849 = vpop.f32.mrb[0].mxu0
        %v2850 = vadd.f32 %v2121, %v2849
        %2851 = vmatprep.mubr.bf16.mxu0 0
        %2852 = vmatmul.mubr.bf16.gmra.mrb[0].mxu0 %v2019
        %v2853 = vpop.f32.mrb[0].mxu0
        %v2854 = vadd.f32 %v2117, %v2853
        %v2855 = vpop.f32.mrb[0].mxu0
        %v2856 = vadd.f32 %v2121, %v2855
        %v2857 = vpop.f32.mrb[0].mxu0
        %v2858 = vadd.f32 %v2117, %v2857
        %v2859 = vpop.f32.mrb[0].mxu0
        %v2860 = vadd.f32 %v2121, %v2859
        %2861 = vmatprep.mubr.bf16.mxu0 0
        %2862 = vmatmul.mubr.bf16.gmra.mrb[0].mxu0 %v2020
        %v2863 = vpop.f32.mrb[0].mxu0
        %v2864 = vadd.f32 %v2117, %v2863
        %v2865 = vpop.f32.mrb[0].mxu0
        %v2866 = vadd.f32 %v2121, %v2865
        %v2867 = vpop.f32.mrb[0].mxu0
        %v2868 = vadd.f32 %v2117, %v2867
        %v2869 = vpop.f32.mrb[0].mxu0
        %v2870 = vadd.f32 %v2121, %v2869
        %2871 = vmatprep.mubr.bf16.mxu0 0
        %2872 = vmatmul.mubr.bf16.gmra.mrb[0].mxu0 %v2021
        %v2873 = vpop.f32.mrb[0].mxu0
        %v2874 = vadd.f32 %v2117, %v2873
        %v2875 = vpop.f32.mrb[0].mxu0
        %v2876 = vadd.f32 %v2121, %v2875
        %v2877 = vpop.f32.mrb[0].mxu0
        %v2878 = vadd.f32 %v2117, %v2877
        %v2879 = vpop.f32.mrb[0].mxu0
        %v2880 = vadd.f32 %v2121, %v2879
        %2881 = vmatprep.mubr.bf16.mxu0 0
        %2882 = vmatmul.mubr.bf16.gmra.mrb[0].mxu0 %v2022
        %v2883 = vpop.f32.mrb[0].mxu0
        %v2884 = vadd.f32 %v2117, %v2883
        %v2885 = vpop.f32.mrb[0].mxu0
        %v2886 = vadd.f32 %v2121, %v2885
        %v2887 = vpop.f32.mrb[0].mxu0
        %v2888 = vadd.f32 %v2117, %v2887
        %v2889 = vpop.f32.mrb[0].mxu0
        %v2890 = vadd.f32 %v2121, %v2889
        %2891 = vmatprep.mubr.bf16.mxu0 0
        %2892 = vmatmul.mubr.bf16.gmra.mrb[0].mxu0 %v2023
        %v2893 = vpop.f32.mrb[0].mxu0
        %v2894 = vadd.f32 %v2117, %v2893
        %v2895 = vpop.f32.mrb[0].mxu0
        %v2896 = vadd.f32 %v2121, %v2895
        %v2897 = vpop.f32.mrb[0].mxu0
        %v2898 = vadd.f32 %v2117, %v2897
        %v2899 = vpop.f32.mrb[0].mxu0
        %v2900 = vadd.f32 %v2121, %v2899
        %2901 = vdwg.mxu0
        %v2902 = vld [vmem:[#allocation2] sm:$0xff]
        %v2903 = vld [vmem:[#allocation2 + $0x8] sm:$0xff]
        %v2904 = vld [vmem:[#allocation2 + $0x10] sm:$0xff]
        %v2905 = vld [vmem:[#allocation2 + $0x18] sm:$0xff]
        %v2906 = vld [vmem:[#allocation2 + $0x20] sm:$0xff]
        %v2907 = vld [vmem:[#allocation2 + $0x28] sm:$0xff]
        %v2908 = vld [vmem:[#allocation2 + $0x30] sm:$0xff]
        %v2909 = vld [vmem:[#allocation2 + $0x38] sm:$0xff]
        %v2910 = vld [vmem:[#allocation2 + $0x40] sm:$0xff]
        %v2911 = vld [vmem:[#allocation2 + $0x48] sm:$0xff]
        %v2912 = vld [vmem:[#allocation2 + $0x50] sm:$0xff]
        %v2913 = vld [vmem:[#allocation2 + $0x58] sm:$0xff]
        %v2914 = vld [vmem:[#allocation2 + $0x60] sm:$0xff]
        %v2915 = vld [vmem:[#allocation2 + $0x68] sm:$0xff]
        %v2916 = vld [vmem:[#allocation2 + $0x70] sm:$0xff]
        %v2917 = vld [vmem:[#allocation2 + $0x78] sm:$0xff]
        %v2918 = vld [vmem:[#allocation2 + $0x80] sm:$0xff]
        %v2919 = vld [vmem:[#allocation2 + $0x88] sm:$0xff]
        %v2920 = vld [vmem:[#allocation2 + $0x90] sm:$0xff]
        %v2921 = vld [vmem:[#allocation2 + $0x98] sm:$0xff]
        %v2922 = vld [vmem:[#allocation2 + $0xa0] sm:$0xff]
        %v2923 = vld [vmem:[#allocation2 + $0xa8] sm:$0xff]
        %v2924 = vld [vmem:[#allocation2 + $0xb0] sm:$0xff]
        %v2925 = vld [vmem:[#allocation2 + $0xb8] sm:$0xff]
        %v2926 = vld [vmem:[#allocation2 + $0xc0] sm:$0xff]
        %v2927 = vld [vmem:[#allocation2 + $0xc8] sm:$0xff]
        %v2928 = vld [vmem:[#allocation2 + $0xd0] sm:$0xff]
        %v2929 = vld [vmem:[#allocation2 + $0xd8] sm:$0xff]
        %v2930 = vld [vmem:[#allocation2 + $0xe0] sm:$0xff]
        %v2931 = vld [vmem:[#allocation2 + $0xe8] sm:$0xff]
        %v2932 = vld [vmem:[#allocation2 + $0xf0] sm:$0xff]
        %v2933 = vld [vmem:[#allocation2 + $0xf8] sm:$0xff]
        %v2934 = vld [vmem:[#allocation2 + $0x100] sm:$0xff]
        %v2935 = vld [vmem:[#allocation2 + $0x108] sm:$0xff]
        %v2936 = vld [vmem:[#allocation2 + $0x110] sm:$0xff]
        %v2937 = vld [vmem:[#allocation2 + $0x118] sm:$0xff]
        %v2938 = vld [vmem:[#allocation2 + $0x120] sm:$0xff]
        %v2939 = vld [vmem:[#allocation2 + $0x128] sm:$0xff]
        %v2940 = vld [vmem:[#allocation2 + $0x130] sm:$0xff]
        %v2941 = vld [vmem:[#allocation2 + $0x138] sm:$0xff]
        %v2942 = vld [vmem:[#allocation2 + $0x140] sm:$0xff]
        %v2943 = vld [vmem:[#allocation2 + $0x148] sm:$0xff]
        %v2944 = vld [vmem:[#allocation2 + $0x150] sm:$0xff]
        %v2945 = vld [vmem:[#allocation2 + $0x158] sm:$0xff]
        %v2946 = vld [vmem:[#allocation2 + $0x160] sm:$0xff]
        %v2947 = vld [vmem:[#allocation2 + $0x168] sm:$0xff]
        %v2948 = vld [vmem:[#allocation2 + $0x170] sm:$0xff]
        %v2949 = vld [vmem:[#allocation2 + $0x178] sm:$0xff]
        %v2950 = vld [vmem:[#allocation2 + $0x180] sm:$0xff]
        %v2951 = vld [vmem:[#allocation2 + $0x188] sm:$0xff]
        %v2952 = vld [vmem:[#allocation2 + $0x190] sm:$0xff]
        %v2953 = vld [vmem:[#allocation2 + $0x198] sm:$0xff]
        %v2954 = vld [vmem:[#allocation2 + $0x1a0] sm:$0xff]
        %v2955 = vld [vmem:[#allocation2 + $0x1a8] sm:$0xff]
        %v2956 = vld [vmem:[#allocation2 + $0x1b0] sm:$0xff]
        %v2957 = vld [vmem:[#allocation2 + $0x1b8] sm:$0xff]
        %v2958 = vld [vmem:[#allocation2 + $0x1c0] sm:$0xff]
        %v2959 = vld [vmem:[#allocation2 + $0x1c8] sm:$0xff]
        %v2960 = vld [vmem:[#allocation2 + $0x1d0] sm:$0xff]
        %v2961 = vld [vmem:[#allocation2 + $0x1d8] sm:$0xff]
        %v2962 = vld [vmem:[#allocation2 + $0x1e0] sm:$0xff]
        %v2963 = vld [vmem:[#allocation2 + $0x1e8] sm:$0xff]
        %v2964 = vld [vmem:[#allocation2 + $0x1f0] sm:$0xff]
        %v2965 = vld [vmem:[#allocation2 + $0x1f8] sm:$0xff]
        %2966 = vmatprep.subr.bf16.mxu0 %v2903
        %2967 = vmatpush1.bf16.msra.mxu0 %v2902
        %2968 = vmatprep.subr.bf16.mxu0 %v2911
        %2969 = vmatpush1.bf16.msra.mxu0 %v2910
        %2970 = vmatprep.subr.bf16.mxu0 %v2919
        %2971 = vmatpush1.bf16.msra.mxu0 %v2918
        %2972 = vmatprep.subr.bf16.mxu0 %v2927
        %2973 = vmatpush1.bf16.msra.mxu0 %v2926
        %2974 = vmatprep.subr.bf16.mxu0 %v2935
        %2975 = vmatpush1.bf16.msra.mxu0 %v2934
        %2976 = vmatprep.subr.bf16.mxu0 %v2943
        %2977 = vmatpush1.bf16.msra.mxu0 %v2942
        %2978 = vmatprep.subr.bf16.mxu0 %v2951
        %2979 = vmatpush1.bf16.msra.mxu0 %v2950
        %2980 = vmatprep.subr.bf16.mxu0 %v2959
        %2981 = vmatpush1.bf16.msra.mxu0 %v2958
        %2982 = vmatprep.subr.bf16.mxu0 0
        %2983 = vmatpush1.bf16.msra.mxu0 0
        %2984 = vmatprep.subr.bf16.mxu0 0
        %2985 = vmatpush1.bf16.msra.mxu0 0
        %2986 = vmatprep.subr.bf16.mxu0 0
        %2987 = vmatpush1.bf16.msra.mxu0 0
        %2988 = vmatprep.subr.bf16.mxu0 0
        %2989 = vmatpush1.bf16.msra.mxu0 0
        %2990 = vmatprep.subr.bf16.mxu0 0
        %2991 = vmatpush1.bf16.msra.mxu0 0
        %2992 = vmatprep.subr.bf16.mxu0 0
        %2993 = vmatpush1.bf16.msra.mxu0 0
        %2994 = vmatprep.subr.bf16.mxu0 0
        %2995 = vmatpush1.bf16.msra.mxu0 0
        %2996 = vmatprep.subr.bf16.mxu0 0
        %2997 = vmatpush1.bf16.msra.mxu0 0
        %2998 = vmatprep.mubr.bf16.mxu0 0
        %2999 = vmatmul.mubr.bf16.gmra.mrb[0].mxu0 %v1807
        %v3000 = vpop.f32.mrb[0].mxu0
        %v3001 = vadd.f32 0.0, %v3000
        %v3002 = vpop.f32.mrb[0].mxu0
        %v3003 = vadd.f32 0.0, %v3002
        %v3004 = vpop.f32.mrb[0].mxu0
        %v3005 = vadd.f32 0.0, %v3004
        %v3006 = vpop.f32.mrb[0].mxu0
        %v3007 = vadd.f32 0.0, %v3006
        %3008 = vmatprep.mubr.bf16.mxu0 0
        %3009 = vmatmul.mubr.bf16.gmra.mrb[0].mxu0 %v1808
        %v3010 = vpop.f32.mrb[0].mxu0
        %v3011 = vadd.f32 0.0, %v3010
        %v3012 = vpop.f32.mrb[0].mxu0
        %v3013 = vadd.f32 0.0, %v3012
        %v3014 = vpop.f32.mrb[0].mxu0
        %v3015 = vadd.f32 0.0, %v3014
        %v3016 = vpop.f32.mrb[0].mxu0
        %v3017 = vadd.f32 0.0, %v3016
        %3018 = vmatprep.mubr.bf16.mxu0 0
        %3019 = vmatmul.mubr.bf16.gmra.mrb[0].mxu0 %v1809
        %v3020 = vpop.f32.mrb[0].mxu0
        %v3021 = vadd.f32 0.0, %v3020
        %v3022 = vpop.f32.mrb[0].mxu0
        %v3023 = vadd.f32 0.0, %v3022
        %v3024 = vpop.f32.mrb[0].mxu0
        %v3025 = vadd.f32 0.0, %v3024
        %v3026 = vpop.f32.mrb[0].mxu0
        %v3027 = vadd.f32 0.0, %v3026
        %3028 = vmatprep.mubr.bf16.mxu0 0
        %3029 = vmatmul.mubr.bf16.gmra.mrb[0].mxu0 %v1810
        %v3030 = vpop.f32.mrb[0].mxu0
        %v3031 = vadd.f32 0.0, %v3030
        %v3032 = vpop.f32.mrb[0].mxu0
        %v3033 = vadd.f32 0.0, %v3032
        %v3034 = vpop.f32.mrb[0].mxu0
        %v3035 = vadd.f32 0.0, %v3034
        %v3036 = vpop.f32.mrb[0].mxu0
        %v3037 = vadd.f32 0.0, %v3036
        %3038 = vmatprep.mubr.bf16.mxu0 0
        %3039 = vmatmul.mubr.bf16.gmra.mrb[0].mxu0 %v1811
        %v3040 = vpop.f32.mrb[0].mxu0
        %v3041 = vadd.f32 0.0, %v3040
        %v3042 = vpop.f32.mrb[0].mxu0
        %v3043 = vadd.f32 0.0, %v3042
        %v3044 = vpop.f32.mrb[0].mxu0
        %v3045 = vadd.f32 0.0, %v3044
        %v3046 = vpop.f32.mrb[0].mxu0
        %v3047 = vadd.f32 0.0, %v3046
        %3048 = vmatprep.mubr.bf16.mxu0 0
        %3049 = vmatmul.mubr.bf16.gmra.mrb[0].mxu0 %v1812
        %v3050 = vpop.f32.mrb[0].mxu0
        %v3051 = vadd.f32 0.0, %v3050
        %v3052 = vpop.f32.mrb[0].mxu0
        %v3053 = vadd.f32 0.0, %v3052
        %v3054 = vpop.f32.mrb[0].mxu0
        %v3055 = vadd.f32 0.0, %v3054
        %v3056 = vpop.f32.mrb[0].mxu0
        %v3057 = vadd.f32 0.0, %v3056
        %3058 = vmatprep.mubr.bf16.mxu0 0
        %3059 = vmatmul.mubr.bf16.gmra.mrb[0].mxu0 %v1813
        %v3060 = vpop.f32.mrb[0].mxu0
        %v3061 = vadd.f32 0.0, %v3060
        %v3062 = vpop.f32.mrb[0].mxu0
        %v3063 = vadd.f32 0.0, %v3062
        %v3064 = vpop.f32.mrb[0].mxu0
        %v3065 = vadd.f32 0.0, %v3064
        %v3066 = vpop.f32.mrb[0].mxu0
        %v3067 = vadd.f32 0.0, %v3066
        %3068 = vmatprep.mubr.bf16.mxu0 0
        %3069 = vmatmul.mubr.bf16.gmra.mrb[0].mxu0 %v1814
        %v3070 = vpop.f32.mrb[0].mxu0
        %v3071 = vadd.f32 0.0, %v3070
        %v3072 = vpop.f32.mrb[0].mxu0
        %v3073 = vadd.f32 0.0, %v3072
        %v3074 = vpop.f32.mrb[0].mxu0
        %v3075 = vadd.f32 0.0, %v3074
        %v3076 = vpop.f32.mrb[0].mxu0
        %v3077 = vadd.f32 0.0, %v3076
        %3078 = vdwg.mxu0
        %3079 = vmatprep.subr.bf16.mxu0 %v2905
        %3080 = vmatpush1.bf16.msra.mxu0 %v2904
        %3081 = vmatprep.subr.bf16.mxu0 %v2913
        %3082 = vmatpush1.bf16.msra.mxu0 %v2912
        %3083 = vmatprep.subr.bf16.mxu0 %v2921
        %3084 = vmatpush1.bf16.msra.mxu0 %v2920
        %3085 = vmatprep.subr.bf16.mxu0 %v2929
        %3086 = vmatpush1.bf16.msra.mxu0 %v2928
        %3087 = vmatprep.subr.bf16.mxu0 %v2937
        %3088 = vmatpush1.bf16.msra.mxu0 %v2936
        %3089 = vmatprep.subr.bf16.mxu0 %v2945
        %3090 = vmatpush1.bf16.msra.mxu0 %v2944
        %3091 = vmatprep.subr.bf16.mxu0 %v2953
        %3092 = vmatpush1.bf16.msra.mxu0 %v2952
        %3093 = vmatprep.subr.bf16.mxu0 %v2961
        %3094 = vmatpush1.bf16.msra.mxu0 %v2960
        %3095 = vmatprep.subr.bf16.mxu0 0
        %3096 = vmatpush1.bf16.msra.mxu0 0
        %3097 = vmatprep.subr.bf16.mxu0 0
        %3098 = vmatpush1.bf16.msra.mxu0 0
        %3099 = vmatprep.subr.bf16.mxu0 0
        %3100 = vmatpush1.bf16.msra.mxu0 0
        %3101 = vmatprep.subr.bf16.mxu0 0
        %3102 = vmatpush1.bf16.msra.mxu0 0
        %3103 = vmatprep.subr.bf16.mxu0 0
        %3104 = vmatpush1.bf16.msra.mxu0 0
        %3105 = vmatprep.subr.bf16.mxu0 0
        %3106 = vmatpush1.bf16.msra.mxu0 0
        %3107 = vmatprep.subr.bf16.mxu0 0
        %3108 = vmatpush1.bf16.msra.mxu0 0
        %3109 = vmatprep.subr.bf16.mxu0 0
        %3110 = vmatpush1.bf16.msra.mxu0 0
        %3111 = vmatprep.mubr.bf16.mxu0 0
        %3112 = vmatmul.mubr.bf16.gmra.mrb[0].mxu0 %v1807
        %v3113 = vpop.f32.mrb[0].mxu0
        %v3114 = vadd.f32 0.0, %v3113
        %v3115 = vpop.f32.mrb[0].mxu0
        %v3116 = vadd.f32 0.0, %v3115
        %v3117 = vpop.f32.mrb[0].mxu0
        %v3118 = vadd.f32 0.0, %v3117
        %v3119 = vpop.f32.mrb[0].mxu0
        %v3120 = vadd.f32 0.0, %v3119
        %3121 = vmatprep.mubr.bf16.mxu0 0
        %3122 = vmatmul.mubr.bf16.gmra.mrb[0].mxu0 %v1808
        %v3123 = vpop.f32.mrb[0].mxu0
        %v3124 = vadd.f32 0.0, %v3123
        %v3125 = vpop.f32.mrb[0].mxu0
        %v3126 = vadd.f32 0.0, %v3125
        %v3127 = vpop.f32.mrb[0].mxu0
        %v3128 = vadd.f32 0.0, %v3127
        %v3129 = vpop.f32.mrb[0].mxu0
        %v3130 = vadd.f32 0.0, %v3129
        %3131 = vmatprep.mubr.bf16.mxu0 0
        %3132 = vmatmul.mubr.bf16.gmra.mrb[0].mxu0 %v1809
        %v3133 = vpop.f32.mrb[0].mxu0
        %v3134 = vadd.f32 0.0, %v3133
        %v3135 = vpop.f32.mrb[0].mxu0
        %v3136 = vadd.f32 0.0, %v3135
        %v3137 = vpop.f32.mrb[0].mxu0
        %v3138 = vadd.f32 0.0, %v3137
        %v3139 = vpop.f32.mrb[0].mxu0
        %v3140 = vadd.f32 0.0, %v3139
        %3141 = vmatprep.mubr.bf16.mxu0 0
        %3142 = vmatmul.mubr.bf16.gmra.mrb[0].mxu0 %v1810
        %v3143 = vpop.f32.mrb[0].mxu0
        %v3144 = vadd.f32 0.0, %v3143
        %v3145 = vpop.f32.mrb[0].mxu0
        %v3146 = vadd.f32 0.0, %v3145
        %v3147 = vpop.f32.mrb[0].mxu0
        %v3148 = vadd.f32 0.0, %v3147
        %v3149 = vpop.f32.mrb[0].mxu0
        %v3150 = vadd.f32 0.0, %v3149
        %3151 = vmatprep.mubr.bf16.mxu0 0
        %3152 = vmatmul.mubr.bf16.gmra.mrb[0].mxu0 %v1811
        %v3153 = vpop.f32.mrb[0].mxu0
        %v3154 = vadd.f32 0.0, %v3153
        %v3155 = vpop.f32.mrb[0].mxu0
        %v3156 = vadd.f32 0.0, %v3155
        %v3157 = vpop.f32.mrb[0].mxu0
        %v3158 = vadd.f32 0.0, %v3157
        %v3159 = vpop.f32.mrb[0].mxu0
        %v3160 = vadd.f32 0.0, %v3159
        %3161 = vmatprep.mubr.bf16.mxu0 0
        %3162 = vmatmul.mubr.bf16.gmra.mrb[0].mxu0 %v1812
        %v3163 = vpop.f32.mrb[0].mxu0
        %v3164 = vadd.f32 0.0, %v3163
        %v3165 = vpop.f32.mrb[0].mxu0
        %v3166 = vadd.f32 0.0, %v3165
        %v3167 = vpop.f32.mrb[0].mxu0
        %v3168 = vadd.f32 0.0, %v3167
        %v3169 = vpop.f32.mrb[0].mxu0
        %v3170 = vadd.f32 0.0, %v3169
        %3171 = vmatprep.mubr.bf16.mxu0 0
        %3172 = vmatmul.mubr.bf16.gmra.mrb[0].mxu0 %v1813
        %v3173 = vpop.f32.mrb[0].mxu0
        %v3174 = vadd.f32 0.0, %v3173
        %v3175 = vpop.f32.mrb[0].mxu0
        %v3176 = vadd.f32 0.0, %v3175
        %v3177 = vpop.f32.mrb[0].mxu0
        %v3178 = vadd.f32 0.0, %v3177
        %v3179 = vpop.f32.mrb[0].mxu0
        %v3180 = vadd.f32 0.0, %v3179
        %3181 = vmatprep.mubr.bf16.mxu0 0
        %3182 = vmatmul.mubr.bf16.gmra.mrb[0].mxu0 %v1814
        %v3183 = vpop.f32.mrb[0].mxu0
        %v3184 = vadd.f32 0.0, %v3183
        %v3185 = vpop.f32.mrb[0].mxu0
        %v3186 = vadd.f32 0.0, %v3185
        %v3187 = vpop.f32.mrb[0].mxu0
        %v3188 = vadd.f32 0.0, %v3187
        %v3189 = vpop.f32.mrb[0].mxu0
        %v3190 = vadd.f32 0.0, %v3189
        %3191 = vdwg.mxu0
        %3192 = vmatprep.subr.bf16.mxu0 %v2907
        %3193 = vmatpush1.bf16.msra.mxu0 %v2906
        %3194 = vmatprep.subr.bf16.mxu0 %v2915
        %3195 = vmatpush1.bf16.msra.mxu0 %v2914
        %3196 = vmatprep.subr.bf16.mxu0 %v2923
        %3197 = vmatpush1.bf16.msra.mxu0 %v2922
        %3198 = vmatprep.subr.bf16.mxu0 %v2931
        %3199 = vmatpush1.bf16.msra.mxu0 %v2930
        %3200 = vmatprep.subr.bf16.mxu0 %v2939
        %3201 = vmatpush1.bf16.msra.mxu0 %v2938
        %3202 = vmatprep.subr.bf16.mxu0 %v2947
        %3203 = vmatpush1.bf16.msra.mxu0 %v2946
        %3204 = vmatprep.subr.bf16.mxu0 %v2955
        %3205 = vmatpush1.bf16.msra.mxu0 %v2954
        %3206 = vmatprep.subr.bf16.mxu0 %v2963
        %3207 = vmatpush1.bf16.msra.mxu0 %v2962
        %3208 = vmatprep.subr.bf16.mxu0 0
        %3209 = vmatpush1.bf16.msra.mxu0 0
        %3210 = vmatprep.subr.bf16.mxu0 0
        %3211 = vmatpush1.bf16.msra.mxu0 0
        %3212 = vmatprep.subr.bf16.mxu0 0
        %3213 = vmatpush1.bf16.msra.mxu0 0
        %3214 = vmatprep.subr.bf16.mxu0 0
        %3215 = vmatpush1.bf16.msra.mxu0 0
        %3216 = vmatprep.subr.bf16.mxu0 0
        %3217 = vmatpush1.bf16.msra.mxu0 0
        %3218 = vmatprep.subr.bf16.mxu0 0
        %3219 = vmatpush1.bf16.msra.mxu0 0
        %3220 = vmatprep.subr.bf16.mxu0 0
        %3221 = vmatpush1.bf16.msra.mxu0 0
        %3222 = vmatprep.subr.bf16.mxu0 0
        %3223 = vmatpush1.bf16.msra.mxu0 0
        %3224 = vmatprep.mubr.bf16.mxu0 0
        %3225 = vmatmul.mubr.bf16.gmra.mrb[0].mxu0 %v1807
        %v3226 = vpop.f32.mrb[0].mxu0
        %v3227 = vadd.f32 0.0, %v3226
        %v3228 = vpop.f32.mrb[0].mxu0
        %v3229 = vadd.f32 0.0, %v3228
        %v3230 = vpop.f32.mrb[0].mxu0
        %v3231 = vadd.f32 0.0, %v3230
        %v3232 = vpop.f32.mrb[0].mxu0
        %v3233 = vadd.f32 0.0, %v3232
        %3234 = vmatprep.mubr.bf16.mxu0 0
        %3235 = vmatmul.mubr.bf16.gmra.mrb[0].mxu0 %v1808
        %v3236 = vpop.f32.mrb[0].mxu0
        %v3237 = vadd.f32 0.0, %v3236
        %v3238 = vpop.f32.mrb[0].mxu0
        %v3239 = vadd.f32 0.0, %v3238
        %v3240 = vpop.f32.mrb[0].mxu0
        %v3241 = vadd.f32 0.0, %v3240
        %v3242 = vpop.f32.mrb[0].mxu0
        %v3243 = vadd.f32 0.0, %v3242
        %3244 = vmatprep.mubr.bf16.mxu0 0
        %3245 = vmatmul.mubr.bf16.gmra.mrb[0].mxu0 %v1809
        %v3246 = vpop.f32.mrb[0].mxu0
        %v3247 = vadd.f32 0.0, %v3246
        %v3248 = vpop.f32.mrb[0].mxu0
        %v3249 = vadd.f32 0.0, %v3248
        %v3250 = vpop.f32.mrb[0].mxu0
        %v3251 = vadd.f32 0.0, %v3250
        %v3252 = vpop.f32.mrb[0].mxu0
        %v3253 = vadd.f32 0.0, %v3252
        %3254 = vmatprep.mubr.bf16.mxu0 0
        %3255 = vmatmul.mubr.bf16.gmra.mrb[0].mxu0 %v1810
        %v3256 = vpop.f32.mrb[0].mxu0
        %v3257 = vadd.f32 0.0, %v3256
        %v3258 = vpop.f32.mrb[0].mxu0
        %v3259 = vadd.f32 0.0, %v3258
        %v3260 = vpop.f32.mrb[0].mxu0
        %v3261 = vadd.f32 0.0, %v3260
        %v3262 = vpop.f32.mrb[0].mxu0
        %v3263 = vadd.f32 0.0, %v3262
        %3264 = vmatprep.mubr.bf16.mxu0 0
        %3265 = vmatmul.mubr.bf16.gmra.mrb[0].mxu0 %v1811
        %v3266 = vpop.f32.mrb[0].mxu0
        %v3267 = vadd.f32 0.0, %v3266
        %v3268 = vpop.f32.mrb[0].mxu0
        %v3269 = vadd.f32 0.0, %v3268
        %v3270 = vpop.f32.mrb[0].mxu0
        %v3271 = vadd.f32 0.0, %v3270
        %v3272 = vpop.f32.mrb[0].mxu0
        %v3273 = vadd.f32 0.0, %v3272
        %3274 = vmatprep.mubr.bf16.mxu0 0
        %3275 = vmatmul.mubr.bf16.gmra.mrb[0].mxu0 %v1812
        %v3276 = vpop.f32.mrb[0].mxu0
        %v3277 = vadd.f32 0.0, %v3276
        %v3278 = vpop.f32.mrb[0].mxu0
        %v3279 = vadd.f32 0.0, %v3278
        %v3280 = vpop.f32.mrb[0].mxu0
        %v3281 = vadd.f32 0.0, %v3280
        %v3282 = vpop.f32.mrb[0].mxu0
        %v3283 = vadd.f32 0.0, %v3282
        %3284 = vmatprep.mubr.bf16.mxu0 0
        %3285 = vmatmul.mubr.bf16.gmra.mrb[0].mxu0 %v1813
        %v3286 = vpop.f32.mrb[0].mxu0
        %v3287 = vadd.f32 0.0, %v3286
        %v3288 = vpop.f32.mrb[0].mxu0
        %v3289 = vadd.f32 0.0, %v3288
        %v3290 = vpop.f32.mrb[0].mxu0
        %v3291 = vadd.f32 0.0, %v3290
        %v3292 = vpop.f32.mrb[0].mxu0
        %v3293 = vadd.f32 0.0, %v3292
        %3294 = vmatprep.mubr.bf16.mxu0 0
        %3295 = vmatmul.mubr.bf16.gmra.mrb[0].mxu0 %v1814
        %v3296 = vpop.f32.mrb[0].mxu0
        %v3297 = vadd.f32 0.0, %v3296
        %v3298 = vpop.f32.mrb[0].mxu0
        %v3299 = vadd.f32 0.0, %v3298
        %v3300 = vpop.f32.mrb[0].mxu0
        %v3301 = vadd.f32 0.0, %v3300
        %v3302 = vpop.f32.mrb[0].mxu0
        %v3303 = vadd.f32 0.0, %v3302
        %3304 = vdwg.mxu0
        %3305 = vmatprep.subr.bf16.mxu0 %v2909
        %3306 = vmatpush1.bf16.msra.mxu0 %v2908
        %3307 = vmatprep.subr.bf16.mxu0 %v2917
        %3308 = vmatpush1.bf16.msra.mxu0 %v2916
        %3309 = vmatprep.subr.bf16.mxu0 %v2925
        %3310 = vmatpush1.bf16.msra.mxu0 %v2924
        %3311 = vmatprep.subr.bf16.mxu0 %v2933
        %3312 = vmatpush1.bf16.msra.mxu0 %v2932
        %3313 = vmatprep.subr.bf16.mxu0 %v2941
        %3314 = vmatpush1.bf16.msra.mxu0 %v2940
        %3315 = vmatprep.subr.bf16.mxu0 %v2949
        %3316 = vmatpush1.bf16.msra.mxu0 %v2948
        %3317 = vmatprep.subr.bf16.mxu0 %v2957
        %3318 = vmatpush1.bf16.msra.mxu0 %v2956
        %3319 = vmatprep.subr.bf16.mxu0 %v2965
        %3320 = vmatpush1.bf16.msra.mxu0 %v2964
        %3321 = vmatprep.subr.bf16.mxu0 0
        %3322 = vmatpush1.bf16.msra.mxu0 0
        %3323 = vmatprep.subr.bf16.mxu0 0
        %3324 = vmatpush1.bf16.msra.mxu0 0
        %3325 = vmatprep.subr.bf16.mxu0 0
        %3326 = vmatpush1.bf16.msra.mxu0 0
        %3327 = vmatprep.subr.bf16.mxu0 0
        %3328 = vmatpush1.bf16.msra.mxu0 0
        %3329 = vmatprep.subr.bf16.mxu0 0
        %3330 = vmatpush1.bf16.msra.mxu0 0
        %3331 = vmatprep.subr.bf16.mxu0 0
        %3332 = vmatpush1.bf16.msra.mxu0 0
        %3333 = vmatprep.subr.bf16.mxu0 0
        %3334 = vmatpush1.bf16.msra.mxu0 0
        %3335 = vmatprep.subr.bf16.mxu0 0
        %3336 = vmatpush1.bf16.msra.mxu0 0
        %3337 = vmatprep.mubr.bf16.mxu0 0
        %3338 = vmatmul.mubr.bf16.gmra.mrb[0].mxu0 %v1807
        %v3339 = vpop.f32.mrb[0].mxu0
        %v3340 = vadd.f32 0.0, %v3339
        %v3341 = vpop.f32.mrb[0].mxu0
        %v3342 = vadd.f32 0.0, %v3341
        %v3343 = vpop.f32.mrb[0].mxu0
        %v3344 = vadd.f32 0.0, %v3343
        %v3345 = vpop.f32.mrb[0].mxu0
        %v3346 = vadd.f32 0.0, %v3345
        %3347 = vmatprep.mubr.bf16.mxu0 0
        %3348 = vmatmul.mubr.bf16.gmra.mrb[0].mxu0 %v1808
        %v3349 = vpop.f32.mrb[0].mxu0
        %v3350 = vadd.f32 0.0, %v3349
        %v3351 = vpop.f32.mrb[0].mxu0
        %v3352 = vadd.f32 0.0, %v3351
        %v3353 = vpop.f32.mrb[0].mxu0
        %v3354 = vadd.f32 0.0, %v3353
        %v3355 = vpop.f32.mrb[0].mxu0
        %v3356 = vadd.f32 0.0, %v3355
        %3357 = vmatprep.mubr.bf16.mxu0 0
        %3358 = vmatmul.mubr.bf16.gmra.mrb[0].mxu0 %v1809
        %v3359 = vpop.f32.mrb[0].mxu0
        %v3360 = vadd.f32 0.0, %v3359
        %v3361 = vpop.f32.mrb[0].mxu0
        %v3362 = vadd.f32 0.0, %v3361
        %v3363 = vpop.f32.mrb[0].mxu0
        %v3364 = vadd.f32 0.0, %v3363
        %v3365 = vpop.f32.mrb[0].mxu0
        %v3366 = vadd.f32 0.0, %v3365
        %3367 = vmatprep.mubr.bf16.mxu0 0
        %3368 = vmatmul.mubr.bf16.gmra.mrb[0].mxu0 %v1810
        %v3369 = vpop.f32.mrb[0].mxu0
        %v3370 = vadd.f32 0.0, %v3369
        %v3371 = vpop.f32.mrb[0].mxu0
        %v3372 = vadd.f32 0.0, %v3371
        %v3373 = vpop.f32.mrb[0].mxu0
        %v3374 = vadd.f32 0.0, %v3373
        %v3375 = vpop.f32.mrb[0].mxu0
        %v3376 = vadd.f32 0.0, %v3375
        %3377 = vmatprep.mubr.bf16.mxu0 0
        %3378 = vmatmul.mubr.bf16.gmra.mrb[0].mxu0 %v1811
        %v3379 = vpop.f32.mrb[0].mxu0
        %v3380 = vadd.f32 0.0, %v3379
        %v3381 = vpop.f32.mrb[0].mxu0
        %v3382 = vadd.f32 0.0, %v3381
        %v3383 = vpop.f32.mrb[0].mxu0
        %v3384 = vadd.f32 0.0, %v3383
        %v3385 = vpop.f32.mrb[0].mxu0
        %v3386 = vadd.f32 0.0, %v3385
        %3387 = vmatprep.mubr.bf16.mxu0 0
        %3388 = vmatmul.mubr.bf16.gmra.mrb[0].mxu0 %v1812
        %v3389 = vpop.f32.mrb[0].mxu0
        %v3390 = vadd.f32 0.0, %v3389
        %v3391 = vpop.f32.mrb[0].mxu0
        %v3392 = vadd.f32 0.0, %v3391
        %v3393 = vpop.f32.mrb[0].mxu0
        %v3394 = vadd.f32 0.0, %v3393
        %v3395 = vpop.f32.mrb[0].mxu0
        %v3396 = vadd.f32 0.0, %v3395
        %3397 = vmatprep.mubr.bf16.mxu0 0
        %3398 = vmatmul.mubr.bf16.gmra.mrb[0].mxu0 %v1813
        %v3399 = vpop.f32.mrb[0].mxu0
        %v3400 = vadd.f32 0.0, %v3399
        %v3401 = vpop.f32.mrb[0].mxu0
        %v3402 = vadd.f32 0.0, %v3401
        %v3403 = vpop.f32.mrb[0].mxu0
        %v3404 = vadd.f32 0.0, %v3403
        %v3405 = vpop.f32.mrb[0].mxu0
        %v3406 = vadd.f32 0.0, %v3405
        %3407 = vmatprep.mubr.bf16.mxu0 0
        %3408 = vmatmul.mubr.bf16.gmra.mrb[0].mxu0 %v1814
        %v3409 = vpop.f32.mrb[0].mxu0
        %v3410 = vadd.f32 0.0, %v3409
        %v3411 = vpop.f32.mrb[0].mxu0
        %v3412 = vadd.f32 0.0, %v3411
        %v3413 = vpop.f32.mrb[0].mxu0
        %v3414 = vadd.f32 0.0, %v3413
        %v3415 = vpop.f32.mrb[0].mxu0
        %v3416 = vadd.f32 0.0, %v3415
        %3417 = vdwg.mxu0
        %v3418 = vmax.f32 %v2485, 0.0
        %v3419 = vmax.f32 %v2487, 0.0
        %v3420 = vmax.f32 %v2598, 0.0
        %v3421 = vmax.f32 %v2600, 0.0
        %v3422 = vmax.f32 %v2711, 0.0
        %v3423 = vmax.f32 %v2713, 0.0
        %v3424 = vmax.f32 %v2824, 0.0
        %v3425 = vmax.f32 %v2826, 0.0
        %v3426 = vmax.f32 %v2489, 0.0
        %v3427 = vmax.f32 %v2491, 0.0
        %v3428 = vmax.f32 %v2602, 0.0
        %v3429 = vmax.f32 %v2604, 0.0
        %v3430 = vmax.f32 %v2715, 0.0
        %v3431 = vmax.f32 %v2717, 0.0
        %v3432 = vmax.f32 %v2828, 0.0
        %v3433 = vmax.f32 %v2830, 0.0
        %v3434 = vmax.f32 %v2495, 0.0
        %v3435 = vmax.f32 %v2497, 0.0
        %v3436 = vmax.f32 %v2608, 0.0
        %v3437 = vmax.f32 %v2610, 0.0
        %v3438 = vmax.f32 %v2721, 0.0
        %v3439 = vmax.f32 %v2723, 0.0
        %v3440 = vmax.f32 %v2834, 0.0
        %v3441 = vmax.f32 %v2836, 0.0
        %v3442 = vmax.f32 %v2499, 0.0
        %v3443 = vmax.f32 %v2501, 0.0
        %v3444 = vmax.f32 %v2612, 0.0
        %v3445 = vmax.f32 %v2614, 0.0
        %v3446 = vmax.f32 %v2725, 0.0
        %v3447 = vmax.f32 %v2727, 0.0
        %v3448 = vmax.f32 %v2838, 0.0
        %v3449 = vmax.f32 %v2840, 0.0
        %v3450 = vmax.f32 %v2505, 0.0
        %v3451 = vmax.f32 %v2507, 0.0
        %v3452 = vmax.f32 %v2618, 0.0
        %v3453 = vmax.f32 %v2620, 0.0
        %v3454 = vmax.f32 %v2731, 0.0
        %v3455 = vmax.f32 %v2733, 0.0
        %v3456 = vmax.f32 %v2844, 0.0
        %v3457 = vmax.f32 %v2846, 0.0
        %v3458 = vmax.f32 %v2509, 0.0
        %v3459 = vmax.f32 %v2511, 0.0
        %v3460 = vmax.f32 %v2622, 0.0
        %v3461 = vmax.f32 %v2624, 0.0
        %v3462 = vmax.f32 %v2735, 0.0
        %v3463 = vmax.f32 %v2737, 0.0
        %v3464 = vmax.f32 %v2848, 0.0
        %v3465 = vmax.f32 %v2850, 0.0
        %v3466 = vmax.f32 %v2515, 0.0
        %v3467 = vmax.f32 %v2517, 0.0
        %v3468 = vmax.f32 %v2628, 0.0
        %v3469 = vmax.f32 %v2630, 0.0
        %v3470 = vmax.f32 %v2741, 0.0
        %v3471 = vmax.f32 %v2743, 0.0
        %v3472 = vmax.f32 %v2854, 0.0
        %v3473 = vmax.f32 %v2856, 0.0
        %v3474 = vmax.f32 %v2519, 0.0
        %v3475 = vmax.f32 %v2521, 0.0
        %v3476 = vmax.f32 %v2632, 0.0
        %v3477 = vmax.f32 %v2634, 0.0
        %v3478 = vmax.f32 %v2745, 0.0
        %v3479 = vmax.f32 %v2747, 0.0
        %v3480 = vmax.f32 %v2858, 0.0
        %v3481 = vmax.f32 %v2860, 0.0
        %v3482 = vmax.f32 %v2525, 0.0
        %v3483 = vmax.f32 %v2527, 0.0
        %v3484 = vmax.f32 %v2638, 0.0
        %v3485 = vmax.f32 %v2640, 0.0
        %v3486 = vmax.f32 %v2751, 0.0
        %v3487 = vmax.f32 %v2753, 0.0
        %v3488 = vmax.f32 %v2864, 0.0
        %v3489 = vmax.f32 %v2866, 0.0
        %v3490 = vmax.f32 %v2529, 0.0
        %v3491 = vmax.f32 %v2531, 0.0
        %v3492 = vmax.f32 %v2642, 0.0
        %v3493 = vmax.f32 %v2644, 0.0
        %v3494 = vmax.f32 %v2755, 0.0
        %v3495 = vmax.f32 %v2757, 0.0
        %v3496 = vmax.f32 %v2868, 0.0
        %v3497 = vmax.f32 %v2870, 0.0
        %v3498 = vmax.f32 %v2535, 0.0
        %v3499 = vmax.f32 %v2537, 0.0
        %v3500 = vmax.f32 %v2648, 0.0
        %v3501 = vmax.f32 %v2650, 0.0
        %v3502 = vmax.f32 %v2761, 0.0
        %v3503 = vmax.f32 %v2763, 0.0
        %v3504 = vmax.f32 %v2874, 0.0
        %v3505 = vmax.f32 %v2876, 0.0
        %v3506 = vmax.f32 %v2539, 0.0
        %v3507 = vmax.f32 %v2541, 0.0
        %v3508 = vmax.f32 %v2652, 0.0
        %v3509 = vmax.f32 %v2654, 0.0
        %v3510 = vmax.f32 %v2765, 0.0
        %v3511 = vmax.f32 %v2767, 0.0
        %v3512 = vmax.f32 %v2878, 0.0
        %v3513 = vmax.f32 %v2880, 0.0
        %v3514 = vmax.f32 %v2545, 0.0
        %v3515 = vmax.f32 %v2547, 0.0
        %v3516 = vmax.f32 %v2658, 0.0
        %v3517 = vmax.f32 %v2660, 0.0
        %v3518 = vmax.f32 %v2771, 0.0
        %v3519 = vmax.f32 %v2773, 0.0
        %v3520 = vmax.f32 %v2884, 0.0
        %v3521 = vmax.f32 %v2886, 0.0
        %v3522 = vmax.f32 %v2549, 0.0
        %v3523 = vmax.f32 %v2551, 0.0
        %v3524 = vmax.f32 %v2662, 0.0
        %v3525 = vmax.f32 %v2664, 0.0
        %v3526 = vmax.f32 %v2775, 0.0
        %v3527 = vmax.f32 %v2777, 0.0
        %v3528 = vmax.f32 %v2888, 0.0
        %v3529 = vmax.f32 %v2890, 0.0
        %v3530 = vmax.f32 %v2555, 0.0
        %v3531 = vmax.f32 %v2557, 0.0
        %v3532 = vmax.f32 %v2668, 0.0
        %v3533 = vmax.f32 %v2670, 0.0
        %v3534 = vmax.f32 %v2781, 0.0
        %v3535 = vmax.f32 %v2783, 0.0
        %v3536 = vmax.f32 %v2894, 0.0
        %v3537 = vmax.f32 %v2896, 0.0
        %v3538 = vmax.f32 %v2559, 0.0
        %v3539 = vmax.f32 %v2561, 0.0
        %v3540 = vmax.f32 %v2672, 0.0
        %v3541 = vmax.f32 %v2674, 0.0
        %v3542 = vmax.f32 %v2785, 0.0
        %v3543 = vmax.f32 %v2787, 0.0
        %v3544 = vmax.f32 %v2898, 0.0
        %v3545 = vmax.f32 %v2900, 0.0
        %v3546 = vmul.f32 %v3418, %v3001
        %v3547 = vmul.f32 %v3419, %v3003
        %v3548 = vmul.f32 %v3420, %v3114
        %v3549 = vmul.f32 %v3421, %v3116
        %v3550 = vmul.f32 %v3422, %v3227
        %v3551 = vmul.f32 %v3423, %v3229
        %v3552 = vmul.f32 %v3424, %v3340
        %v3553 = vmul.f32 %v3425, %v3342
        %v3554 = vmul.f32 %v3426, %v3005
        %v3555 = vmul.f32 %v3427, %v3007
        %v3556 = vmul.f32 %v3428, %v3118
        %v3557 = vmul.f32 %v3429, %v3120
        %v3558 = vmul.f32 %v3430, %v3231
        %v3559 = vmul.f32 %v3431, %v3233
        %v3560 = vmul.f32 %v3432, %v3344
        %v3561 = vmul.f32 %v3433, %v3346
        %v3562 = vmul.f32 %v3434, %v3011
        %v3563 = vmul.f32 %v3435, %v3013
        %v3564 = vmul.f32 %v3436, %v3124
        %v3565 = vmul.f32 %v3437, %v3126
        %v3566 = vmul.f32 %v3438, %v3237
        %v3567 = vmul.f32 %v3439, %v3239
        %v3568 = vmul.f32 %v3440, %v3350
        %v3569 = vmul.f32 %v3441, %v3352
        %v3570 = vmul.f32 %v3442, %v3015
        %v3571 = vmul.f32 %v3443, %v3017
        %v3572 = vmul.f32 %v3444, %v3128
        %v3573 = vmul.f32 %v3445, %v3130
        %v3574 = vmul.f32 %v3446, %v3241
        %v3575 = vmul.f32 %v3447, %v3243
        %v3576 = vmul.f32 %v3448, %v3354
        %v3577 = vmul.f32 %v3449, %v3356
        %v3578 = vmul.f32 %v3450, %v3021
        %v3579 = vmul.f32 %v3451, %v3023
        %v3580 = vmul.f32 %v3452, %v3134
        %v3581 = vmul.f32 %v3453, %v3136
        %v3582 = vmul.f32 %v3454, %v3247
        %v3583 = vmul.f32 %v3455, %v3249
        %v3584 = vmul.f32 %v3456, %v3360
        %v3585 = vmul.f32 %v3457, %v3362
        %v3586 = vmul.f32 %v3458, %v3025
        %v3587 = vmul.f32 %v3459, %v3027
        %v3588 = vmul.f32 %v3460, %v3138
        %v3589 = vmul.f32 %v3461, %v3140
        %v3590 = vmul.f32 %v3462, %v3251
        %v3591 = vmul.f32 %v3463, %v3253
        %v3592 = vmul.f32 %v3464, %v3364
        %v3593 = vmul.f32 %v3465, %v3366
        %v3594 = vmul.f32 %v3466, %v3031
        %v3595 = vmul.f32 %v3467, %v3033
        %v3596 = vmul.f32 %v3468, %v3144
        %v3597 = vmul.f32 %v3469, %v3146
        %v3598 = vmul.f32 %v3470, %v3257
        %v3599 = vmul.f32 %v3471, %v3259
        %v3600 = vmul.f32 %v3472, %v3370
        %v3601 = vmul.f32 %v3473, %v3372
        %v3602 = vmul.f32 %v3474, %v3035
        %v3603 = vmul.f32 %v3475, %v3037
        %v3604 = vmul.f32 %v3476, %v3148
        %v3605 = vmul.f32 %v3477, %v3150
        %v3606 = vmul.f32 %v3478, %v3261
        %v3607 = vmul.f32 %v3479, %v3263
        %v3608 = vmul.f32 %v3480, %v3374
        %v3609 = vmul.f32 %v3481, %v3376
        %v3610 = vmul.f32 %v3482, %v3041
        %v3611 = vmul.f32 %v3483, %v3043
        %v3612 = vmul.f32 %v3484, %v3154
        %v3613 = vmul.f32 %v3485, %v3156
        %v3614 = vmul.f32 %v3486, %v3267
        %v3615 = vmul.f32 %v3487, %v3269
        %v3616 = vmul.f32 %v3488, %v3380
        %v3617 = vmul.f32 %v3489, %v3382
        %v3618 = vmul.f32 %v3490, %v3045
        %v3619 = vmul.f32 %v3491, %v3047
        %v3620 = vmul.f32 %v3492, %v3158
        %v3621 = vmul.f32 %v3493, %v3160
        %v3622 = vmul.f32 %v3494, %v3271
        %v3623 = vmul.f32 %v3495, %v3273
        %v3624 = vmul.f32 %v3496, %v3384
        %v3625 = vmul.f32 %v3497, %v3386
        %v3626 = vmul.f32 %v3498, %v3051
        %v3627 = vmul.f32 %v3499, %v3053
        %v3628 = vmul.f32 %v3500, %v3164
        %v3629 = vmul.f32 %v3501, %v3166
        %v3630 = vmul.f32 %v3502, %v3277
        %v3631 = vmul.f32 %v3503, %v3279
        %v3632 = vmul.f32 %v3504, %v3390
        %v3633 = vmul.f32 %v3505, %v3392
        %v3634 = vmul.f32 %v3506, %v3055
        %v3635 = vmul.f32 %v3507, %v3057
        %v3636 = vmul.f32 %v3508, %v3168
        %v3637 = vmul.f32 %v3509, %v3170
        %v3638 = vmul.f32 %v3510, %v3281
        %v3639 = vmul.f32 %v3511, %v3283
        %v3640 = vmul.f32 %v3512, %v3394
        %v3641 = vmul.f32 %v3513, %v3396
        %v3642 = vmul.f32 %v3514, %v3061
        %v3643 = vmul.f32 %v3515, %v3063
        %v3644 = vmul.f32 %v3516, %v3174
        %v3645 = vmul.f32 %v3517, %v3176
        %v3646 = vmul.f32 %v3518, %v3287
        %v3647 = vmul.f32 %v3519, %v3289
        %v3648 = vmul.f32 %v3520, %v3400
        %v3649 = vmul.f32 %v3521, %v3402
        %v3650 = vmul.f32 %v3522, %v3065
        %v3651 = vmul.f32 %v3523, %v3067
        %v3652 = vmul.f32 %v3524, %v3178
        %v3653 = vmul.f32 %v3525, %v3180
        %v3654 = vmul.f32 %v3526, %v3291
        %v3655 = vmul.f32 %v3527, %v3293
        %v3656 = vmul.f32 %v3528, %v3404
        %v3657 = vmul.f32 %v3529, %v3406
        %v3658 = vmul.f32 %v3530, %v3071
        %v3659 = vmul.f32 %v3531, %v3073
        %v3660 = vmul.f32 %v3532, %v3184
        %v3661 = vmul.f32 %v3533, %v3186
        %v3662 = vmul.f32 %v3534, %v3297
        %v3663 = vmul.f32 %v3535, %v3299
        %v3664 = vmul.f32 %v3536, %v3410
        %v3665 = vmul.f32 %v3537, %v3412
        %v3666 = vmul.f32 %v3538, %v3075
        %v3667 = vmul.f32 %v3539, %v3077
        %v3668 = vmul.f32 %v3540, %v3188
        %v3669 = vmul.f32 %v3541, %v3190
        %v3670 = vmul.f32 %v3542, %v3301
        %v3671 = vmul.f32 %v3543, %v3303
        %v3672 = vmul.f32 %v3544, %v3414
        %v3673 = vmul.f32 %v3545, %v3416
        %v3674 = vpack.c.bf16 %v3554, %v3546
        %v3675 = vpack.c.bf16 %v3555, %v3547
        %v3676 = vpack.c.bf16 %v3556, %v3548
        %v3677 = vpack.c.bf16 %v3557, %v3549
        %v3678 = vpack.c.bf16 %v3558, %v3550
        %v3679 = vpack.c.bf16 %v3559, %v3551
        %v3680 = vpack.c.bf16 %v3560, %v3552
        %v3681 = vpack.c.bf16 %v3561, %v3553
        %v3682 = vpack.c.bf16 %v3570, %v3562
        %v3683 = vpack.c.bf16 %v3571, %v3563
        %v3684 = vpack.c.bf16 %v3572, %v3564
        %v3685 = vpack.c.bf16 %v3573, %v3565
        %v3686 = vpack.c.bf16 %v3574, %v3566
        %v3687 = vpack.c.bf16 %v3575, %v3567
        %v3688 = vpack.c.bf16 %v3576, %v3568
        %v3689 = vpack.c.bf16 %v3577, %v3569
        %v3690 = vpack.c.bf16 %v3586, %v3578
        %v3691 = vpack.c.bf16 %v3587, %v3579
        %v3692 = vpack.c.bf16 %v3588, %v3580
        %v3693 = vpack.c.bf16 %v3589, %v3581
        %v3694 = vpack.c.bf16 %v3590, %v3582
        %v3695 = vpack.c.bf16 %v3591, %v3583
        %v3696 = vpack.c.bf16 %v3592, %v3584
        %v3697 = vpack.c.bf16 %v3593, %v3585
        %v3698 = vpack.c.bf16 %v3602, %v3594
        %v3699 = vpack.c.bf16 %v3603, %v3595
        %v3700 = vpack.c.bf16 %v3604, %v3596
        %v3701 = vpack.c.bf16 %v3605, %v3597
        %v3702 = vpack.c.bf16 %v3606, %v3598
        %v3703 = vpack.c.bf16 %v3607, %v3599
        %v3704 = vpack.c.bf16 %v3608, %v3600
        %v3705 = vpack.c.bf16 %v3609, %v3601
        %v3706 = vpack.c.bf16 %v3618, %v3610
        %v3707 = vpack.c.bf16 %v3619, %v3611
        %v3708 = vpack.c.bf16 %v3620, %v3612
        %v3709 = vpack.c.bf16 %v3621, %v3613
        %v3710 = vpack.c.bf16 %v3622, %v3614
        %v3711 = vpack.c.bf16 %v3623, %v3615
        %v3712 = vpack.c.bf16 %v3624, %v3616
        %v3713 = vpack.c.bf16 %v3625, %v3617
        %v3714 = vpack.c.bf16 %v3634, %v3626
        %v3715 = vpack.c.bf16 %v3635, %v3627
        %v3716 = vpack.c.bf16 %v3636, %v3628
        %v3717 = vpack.c.bf16 %v3637, %v3629
        %v3718 = vpack.c.bf16 %v3638, %v3630
        %v3719 = vpack.c.bf16 %v3639, %v3631
        %v3720 = vpack.c.bf16 %v3640, %v3632
        %v3721 = vpack.c.bf16 %v3641, %v3633
        %v3722 = vpack.c.bf16 %v3650, %v3642
        %v3723 = vpack.c.bf16 %v3651, %v3643
        %v3724 = vpack.c.bf16 %v3652, %v3644
        %v3725 = vpack.c.bf16 %v3653, %v3645
        %v3726 = vpack.c.bf16 %v3654, %v3646
        %v3727 = vpack.c.bf16 %v3655, %v3647
        %v3728 = vpack.c.bf16 %v3656, %v3648
        %v3729 = vpack.c.bf16 %v3657, %v3649
        %v3730 = vpack.c.bf16 %v3666, %v3658
        %v3731 = vpack.c.bf16 %v3667, %v3659
        %v3732 = vpack.c.bf16 %v3668, %v3660
        %v3733 = vpack.c.bf16 %v3669, %v3661
        %v3734 = vpack.c.bf16 %v3670, %v3662
        %v3735 = vpack.c.bf16 %v3671, %v3663
        %v3736 = vpack.c.bf16 %v3672, %v3664
        %v3737 = vpack.c.bf16 %v3673, %v3665
        %v3738 = vld [vmem:[%s505] sm:$0xf]
        %v3739 = vld [vmem:[%s505 + $0x4] sm:$0xf]
        %v3740 = vld [vmem:[%s505 + $0x8] sm:$0xf]
        %v3741 = vld [vmem:[%s505 + $0xc] sm:$0xf]
        %v3742 = vld [vmem:[%s505 + $0x10] sm:$0xf]
        %v3743 = vld [vmem:[%s505 + $0x14] sm:$0xf]
        %v3744 = vld [vmem:[%s505 + $0x18] sm:$0xf]
        %v3745 = vld [vmem:[%s505 + $0x1c] sm:$0xf]
        %v3746 = vld [vmem:[%s505 + $0x20] sm:$0xf]
        %v3747 = vld [vmem:[%s505 + $0x24] sm:$0xf]
        %v3748 = vld [vmem:[%s505 + $0x28] sm:$0xf]
        %v3749 = vld [vmem:[%s505 + $0x2c] sm:$0xf]
        %v3750 = vld [vmem:[%s505 + $0x30] sm:$0xf]
        %v3751 = vld [vmem:[%s505 + $0x34] sm:$0xf]
        %v3752 = vld [vmem:[%s505 + $0x38] sm:$0xf]
        %v3753 = vld [vmem:[%s505 + $0x3c] sm:$0xf]
        %v3754 = vld [vmem:[%s505 + $0x40] sm:$0xf]
        %v3755 = vld [vmem:[%s505 + $0x44] sm:$0xf]
        %v3756 = vld [vmem:[%s505 + $0x48] sm:$0xf]
        %v3757 = vld [vmem:[%s505 + $0x4c] sm:$0xf]
        %v3758 = vld [vmem:[%s505 + $0x50] sm:$0xf]
        %v3759 = vld [vmem:[%s505 + $0x54] sm:$0xf]
        %v3760 = vld [vmem:[%s505 + $0x58] sm:$0xf]
        %v3761 = vld [vmem:[%s505 + $0x5c] sm:$0xf]
        %v3762 = vld [vmem:[%s505 + $0x60] sm:$0xf]
        %v3763 = vld [vmem:[%s505 + $0x64] sm:$0xf]
        %v3764 = vld [vmem:[%s505 + $0x68] sm:$0xf]
        %v3765 = vld [vmem:[%s505 + $0x6c] sm:$0xf]
        %v3766 = vld [vmem:[%s505 + $0x70] sm:$0xf]
        %v3767 = vld [vmem:[%s505 + $0x74] sm:$0xf]
        %v3768 = vld [vmem:[%s505 + $0x78] sm:$0xf]
        %v3769 = vld [vmem:[%s505 + $0x7c] sm:$0xf]
        %v3770 = vld [vmem:[%s505 + $0x80] sm:$0xf]
        %v3771 = vld [vmem:[%s505 + $0x84] sm:$0xf]
        %v3772 = vld [vmem:[%s505 + $0x88] sm:$0xf]
        %v3773 = vld [vmem:[%s505 + $0x8c] sm:$0xf]
        %v3774 = vld [vmem:[%s505 + $0x90] sm:$0xf]
        %v3775 = vld [vmem:[%s505 + $0x94] sm:$0xf]
        %v3776 = vld [vmem:[%s505 + $0x98] sm:$0xf]
        %v3777 = vld [vmem:[%s505 + $0x9c] sm:$0xf]
        %v3778 = vld [vmem:[%s505 + $0xa0] sm:$0xf]
        %v3779 = vld [vmem:[%s505 + $0xa4] sm:$0xf]
        %v3780 = vld [vmem:[%s505 + $0xa8] sm:$0xf]
        %v3781 = vld [vmem:[%s505 + $0xac] sm:$0xf]
        %v3782 = vld [vmem:[%s505 + $0xb0] sm:$0xf]
        %v3783 = vld [vmem:[%s505 + $0xb4] sm:$0xf]
        %v3784 = vld [vmem:[%s505 + $0xb8] sm:$0xf]
        %v3785 = vld [vmem:[%s505 + $0xbc] sm:$0xf]
        %v3786 = vld [vmem:[%s505 + $0xc0] sm:$0xf]
        %v3787 = vld [vmem:[%s505 + $0xc4] sm:$0xf]
        %v3788 = vld [vmem:[%s505 + $0xc8] sm:$0xf]
        %v3789 = vld [vmem:[%s505 + $0xcc] sm:$0xf]
        %v3790 = vld [vmem:[%s505 + $0xd0] sm:$0xf]
        %v3791 = vld [vmem:[%s505 + $0xd4] sm:$0xf]
        %v3792 = vld [vmem:[%s505 + $0xd8] sm:$0xf]
        %v3793 = vld [vmem:[%s505 + $0xdc] sm:$0xf]
        %v3794 = vld [vmem:[%s505 + $0xe0] sm:$0xf]
        %v3795 = vld [vmem:[%s505 + $0xe4] sm:$0xf]
        %v3796 = vld [vmem:[%s505 + $0xe8] sm:$0xf]
        %v3797 = vld [vmem:[%s505 + $0xec] sm:$0xf]
        %v3798 = vld [vmem:[%s505 + $0xf0] sm:$0xf]
        %v3799 = vld [vmem:[%s505 + $0xf4] sm:$0xf]
        %v3800 = vld [vmem:[%s505 + $0xf8] sm:$0xf]
        %v3801 = vld [vmem:[%s505 + $0xfc] sm:$0xf]
        %v3802 = vld [vmem:[%s505 + $0x100] sm:$0xf]
        %v3803 = vld [vmem:[%s505 + $0x104] sm:$0xf]
        %v3804 = vld [vmem:[%s505 + $0x108] sm:$0xf]
        %v3805 = vld [vmem:[%s505 + $0x10c] sm:$0xf]
        %v3806 = vld [vmem:[%s505 + $0x110] sm:$0xf]
        %v3807 = vld [vmem:[%s505 + $0x114] sm:$0xf]
        %v3808 = vld [vmem:[%s505 + $0x118] sm:$0xf]
        %v3809 = vld [vmem:[%s505 + $0x11c] sm:$0xf]
        %v3810 = vld [vmem:[%s505 + $0x120] sm:$0xf]
        %v3811 = vld [vmem:[%s505 + $0x124] sm:$0xf]
        %v3812 = vld [vmem:[%s505 + $0x128] sm:$0xf]
        %v3813 = vld [vmem:[%s505 + $0x12c] sm:$0xf]
        %v3814 = vld [vmem:[%s505 + $0x130] sm:$0xf]
        %v3815 = vld [vmem:[%s505 + $0x134] sm:$0xf]
        %v3816 = vld [vmem:[%s505 + $0x138] sm:$0xf]
        %v3817 = vld [vmem:[%s505 + $0x13c] sm:$0xf]
        %v3818 = vld [vmem:[%s505 + $0x140] sm:$0xf]
        %v3819 = vld [vmem:[%s505 + $0x144] sm:$0xf]
        %v3820 = vld [vmem:[%s505 + $0x148] sm:$0xf]
        %v3821 = vld [vmem:[%s505 + $0x14c] sm:$0xf]
        %v3822 = vld [vmem:[%s505 + $0x150] sm:$0xf]
        %v3823 = vld [vmem:[%s505 + $0x154] sm:$0xf]
        %v3824 = vld [vmem:[%s505 + $0x158] sm:$0xf]
        %v3825 = vld [vmem:[%s505 + $0x15c] sm:$0xf]
        %v3826 = vld [vmem:[%s505 + $0x160] sm:$0xf]
        %v3827 = vld [vmem:[%s505 + $0x164] sm:$0xf]
        %v3828 = vld [vmem:[%s505 + $0x168] sm:$0xf]
        %v3829 = vld [vmem:[%s505 + $0x16c] sm:$0xf]
        %v3830 = vld [vmem:[%s505 + $0x170] sm:$0xf]
        %v3831 = vld [vmem:[%s505 + $0x174] sm:$0xf]
        %v3832 = vld [vmem:[%s505 + $0x178] sm:$0xf]
        %v3833 = vld [vmem:[%s505 + $0x17c] sm:$0xf]
        %v3834 = vld [vmem:[%s505 + $0x180] sm:$0xf]
        %v3835 = vld [vmem:[%s505 + $0x184] sm:$0xf]
        %v3836 = vld [vmem:[%s505 + $0x188] sm:$0xf]
        %v3837 = vld [vmem:[%s505 + $0x18c] sm:$0xf]
        %v3838 = vld [vmem:[%s505 + $0x190] sm:$0xf]
        %v3839 = vld [vmem:[%s505 + $0x194] sm:$0xf]
        %v3840 = vld [vmem:[%s505 + $0x198] sm:$0xf]
        %v3841 = vld [vmem:[%s505 + $0x19c] sm:$0xf]
        %v3842 = vld [vmem:[%s505 + $0x1a0] sm:$0xf]
        %v3843 = vld [vmem:[%s505 + $0x1a4] sm:$0xf]
        %v3844 = vld [vmem:[%s505 + $0x1a8] sm:$0xf]
        %v3845 = vld [vmem:[%s505 + $0x1ac] sm:$0xf]
        %v3846 = vld [vmem:[%s505 + $0x1b0] sm:$0xf]
        %v3847 = vld [vmem:[%s505 + $0x1b4] sm:$0xf]
        %v3848 = vld [vmem:[%s505 + $0x1b8] sm:$0xf]
        %v3849 = vld [vmem:[%s505 + $0x1bc] sm:$0xf]
        %v3850 = vld [vmem:[%s505 + $0x1c0] sm:$0xf]
        %v3851 = vld [vmem:[%s505 + $0x1c4] sm:$0xf]
        %v3852 = vld [vmem:[%s505 + $0x1c8] sm:$0xf]
        %v3853 = vld [vmem:[%s505 + $0x1cc] sm:$0xf]
        %v3854 = vld [vmem:[%s505 + $0x1d0] sm:$0xf]
        %v3855 = vld [vmem:[%s505 + $0x1d4] sm:$0xf]
        %v3856 = vld [vmem:[%s505 + $0x1d8] sm:$0xf]
        %v3857 = vld [vmem:[%s505 + $0x1dc] sm:$0xf]
        %v3858 = vld [vmem:[%s505 + $0x1e0] sm:$0xf]
        %v3859 = vld [vmem:[%s505 + $0x1e4] sm:$0xf]
        %v3860 = vld [vmem:[%s505 + $0x1e8] sm:$0xf]
        %v3861 = vld [vmem:[%s505 + $0x1ec] sm:$0xf]
        %v3862 = vld [vmem:[%s505 + $0x1f0] sm:$0xf]
        %v3863 = vld [vmem:[%s505 + $0x1f4] sm:$0xf]
        %v3864 = vld [vmem:[%s505 + $0x1f8] sm:$0xf]
        %v3865 = vld [vmem:[%s505 + $0x1fc] sm:$0xf]
        %v3994 = vunpack.c.l.b16 %v3738
        %v3995 = vunpack.c.l.b16 %v3739
        %v3996 = vunpack.c.l.b16 %v3740
        %v3997 = vunpack.c.l.b16 %v3741
        %v3998 = vunpack.c.l.b16 %v3742
        %v3999 = vunpack.c.l.b16 %v3743
        %v4000 = vunpack.c.l.b16 %v3744
        %v4001 = vunpack.c.l.b16 %v3745
        %v4002 = vunpack.c.l.b16 %v3746
        %v4003 = vunpack.c.l.b16 %v3747
        %v4004 = vunpack.c.l.b16 %v3748
        %v4005 = vunpack.c.l.b16 %v3749
        %v4006 = vunpack.c.l.b16 %v3750
        %v4007 = vunpack.c.l.b16 %v3751
        %v4008 = vunpack.c.l.b16 %v3752
        %v4009 = vunpack.c.l.b16 %v3753
        %v4010 = vunpack.c.l.b16 %v3754
        %v4011 = vunpack.c.l.b16 %v3755
        %v4012 = vunpack.c.l.b16 %v3756
        %v4013 = vunpack.c.l.b16 %v3757
        %v4014 = vunpack.c.l.b16 %v3758
        %v4015 = vunpack.c.l.b16 %v3759
        %v4016 = vunpack.c.l.b16 %v3760
        %v4017 = vunpack.c.l.b16 %v3761
        %v4018 = vunpack.c.l.b16 %v3762
        %v4019 = vunpack.c.l.b16 %v3763
        %v4020 = vunpack.c.l.b16 %v3764
        %v4021 = vunpack.c.l.b16 %v3765
        %v4022 = vunpack.c.l.b16 %v3766
        %v4023 = vunpack.c.l.b16 %v3767
        %v4024 = vunpack.c.l.b16 %v3768
        %v4025 = vunpack.c.l.b16 %v3769
        %v4026 = vunpack.c.l.b16 %v3770
        %v4027 = vunpack.c.l.b16 %v3771
        %v4028 = vunpack.c.l.b16 %v3772
        %v4029 = vunpack.c.l.b16 %v3773
        %v4030 = vunpack.c.l.b16 %v3774
        %v4031 = vunpack.c.l.b16 %v3775
        %v4032 = vunpack.c.l.b16 %v3776
        %v4033 = vunpack.c.l.b16 %v3777
        %v4034 = vunpack.c.l.b16 %v3778
        %v4035 = vunpack.c.l.b16 %v3779
        %v4036 = vunpack.c.l.b16 %v3780
        %v4037 = vunpack.c.l.b16 %v3781
        %v4038 = vunpack.c.l.b16 %v3782
        %v4039 = vunpack.c.l.b16 %v3783
        %v4040 = vunpack.c.l.b16 %v3784
        %v4041 = vunpack.c.l.b16 %v3785
        %v4042 = vunpack.c.l.b16 %v3786
        %v4043 = vunpack.c.l.b16 %v3787
        %v4044 = vunpack.c.l.b16 %v3788
        %v4045 = vunpack.c.l.b16 %v3789
        %v4046 = vunpack.c.l.b16 %v3790
        %v4047 = vunpack.c.l.b16 %v3791
        %v4048 = vunpack.c.l.b16 %v3792
        %v4049 = vunpack.c.l.b16 %v3793
        %v4050 = vunpack.c.l.b16 %v3794
        %v4051 = vunpack.c.l.b16 %v3795
        %v4052 = vunpack.c.l.b16 %v3796
        %v4053 = vunpack.c.l.b16 %v3797
        %v4054 = vunpack.c.l.b16 %v3798
        %v4055 = vunpack.c.l.b16 %v3799
        %v4056 = vunpack.c.l.b16 %v3800
        %v4057 = vunpack.c.l.b16 %v3801
        %v4058 = vunpack.c.l.b16 %v3802
        %v4059 = vunpack.c.l.b16 %v3803
        %v4060 = vunpack.c.l.b16 %v3804
        %v4061 = vunpack.c.l.b16 %v3805
        %v4062 = vunpack.c.l.b16 %v3806
        %v4063 = vunpack.c.l.b16 %v3807
        %v4064 = vunpack.c.l.b16 %v3808
        %v4065 = vunpack.c.l.b16 %v3809
        %v4066 = vunpack.c.l.b16 %v3810
        %v4067 = vunpack.c.l.b16 %v3811
        %v4068 = vunpack.c.l.b16 %v3812
        %v4069 = vunpack.c.l.b16 %v3813
        %v4070 = vunpack.c.l.b16 %v3814
        %v4071 = vunpack.c.l.b16 %v3815
        %v4072 = vunpack.c.l.b16 %v3816
        %v4073 = vunpack.c.l.b16 %v3817
        %v4074 = vunpack.c.l.b16 %v3818
        %v4075 = vunpack.c.l.b16 %v3819
        %v4076 = vunpack.c.l.b16 %v3820
        %v4077 = vunpack.c.l.b16 %v3821
        %v4078 = vunpack.c.l.b16 %v3822
        %v4079 = vunpack.c.l.b16 %v3823
        %v4080 = vunpack.c.l.b16 %v3824
        %v4081 = vunpack.c.l.b16 %v3825
        %v4082 = vunpack.c.l.b16 %v3826
        %v4083 = vunpack.c.l.b16 %v3827
        %v4084 = vunpack.c.l.b16 %v3828
        %v4085 = vunpack.c.l.b16 %v3829
        %v4086 = vunpack.c.l.b16 %v3830
        %v4087 = vunpack.c.l.b16 %v3831
        %v4088 = vunpack.c.l.b16 %v3832
        %v4089 = vunpack.c.l.b16 %v3833
        %v4090 = vunpack.c.l.b16 %v3834
        %v4091 = vunpack.c.l.b16 %v3835
        %v4092 = vunpack.c.l.b16 %v3836
        %v4093 = vunpack.c.l.b16 %v3837
        %v4094 = vunpack.c.l.b16 %v3838
        %v4095 = vunpack.c.l.b16 %v3839
        %v4096 = vunpack.c.l.b16 %v3840
        %v4097 = vunpack.c.l.b16 %v3841
        %v4098 = vunpack.c.l.b16 %v3842
        %v4099 = vunpack.c.l.b16 %v3843
        %v4100 = vunpack.c.l.b16 %v3844
        %v4101 = vunpack.c.l.b16 %v3845
        %v4102 = vunpack.c.l.b16 %v3846
        %v4103 = vunpack.c.l.b16 %v3847
        %v4104 = vunpack.c.l.b16 %v3848
        %v4105 = vunpack.c.l.b16 %v3849
        %v4106 = vunpack.c.l.b16 %v3850
        %v4107 = vunpack.c.l.b16 %v3851
        %v4108 = vunpack.c.l.b16 %v3852
        %v4109 = vunpack.c.l.b16 %v3853
        %v4110 = vunpack.c.l.b16 %v3854
        %v4111 = vunpack.c.l.b16 %v3855
        %v4112 = vunpack.c.l.b16 %v3856
        %v4113 = vunpack.c.l.b16 %v3857
        %v4114 = vunpack.c.l.b16 %v3858
        %v4115 = vunpack.c.l.b16 %v3859
        %v4116 = vunpack.c.l.b16 %v3860
        %v4117 = vunpack.c.l.b16 %v3861
        %v4118 = vunpack.c.l.b16 %v3862
        %v4119 = vunpack.c.l.b16 %v3863
        %v4120 = vunpack.c.l.b16 %v3864
        %v4121 = vunpack.c.l.b16 %v3865
        %v4122 = vpack.c.b16 %v3995, %v3994
        %v4123 = vpack.c.b16 %v3997, %v3996
        %v4124 = vpack.c.b16 %v3999, %v3998
        %v4125 = vpack.c.b16 %v4001, %v4000
        %v4126 = vpack.c.b16 %v4003, %v4002
        %v4127 = vpack.c.b16 %v4005, %v4004
        %v4128 = vpack.c.b16 %v4007, %v4006
        %v4129 = vpack.c.b16 %v4009, %v4008
        %v4130 = vpack.c.b16 %v4011, %v4010
        %v4131 = vpack.c.b16 %v4013, %v4012
        %v4132 = vpack.c.b16 %v4015, %v4014
        %v4133 = vpack.c.b16 %v4017, %v4016
        %v4134 = vpack.c.b16 %v4019, %v4018
        %v4135 = vpack.c.b16 %v4021, %v4020
        %v4136 = vpack.c.b16 %v4023, %v4022
        %v4137 = vpack.c.b16 %v4025, %v4024
        %v4138 = vpack.c.b16 %v4027, %v4026
        %v4139 = vpack.c.b16 %v4029, %v4028
        %v4140 = vpack.c.b16 %v4031, %v4030
        %v4141 = vpack.c.b16 %v4033, %v4032
        %v4142 = vpack.c.b16 %v4035, %v4034
        %v4143 = vpack.c.b16 %v4037, %v4036
        %v4144 = vpack.c.b16 %v4039, %v4038
        %v4145 = vpack.c.b16 %v4041, %v4040
        %v4146 = vpack.c.b16 %v4043, %v4042
        %v4147 = vpack.c.b16 %v4045, %v4044
        %v4148 = vpack.c.b16 %v4047, %v4046
        %v4149 = vpack.c.b16 %v4049, %v4048
        %v4150 = vpack.c.b16 %v4051, %v4050
        %v4151 = vpack.c.b16 %v4053, %v4052
        %v4152 = vpack.c.b16 %v4055, %v4054
        %v4153 = vpack.c.b16 %v4057, %v4056
        %v4154 = vpack.c.b16 %v4059, %v4058
        %v4155 = vpack.c.b16 %v4061, %v4060
        %v4156 = vpack.c.b16 %v4063, %v4062
        %v4157 = vpack.c.b16 %v4065, %v4064
        %v4158 = vpack.c.b16 %v4067, %v4066
        %v4159 = vpack.c.b16 %v4069, %v4068
        %v4160 = vpack.c.b16 %v4071, %v4070
        %v4161 = vpack.c.b16 %v4073, %v4072
        %v4162 = vpack.c.b16 %v4075, %v4074
        %v4163 = vpack.c.b16 %v4077, %v4076
        %v4164 = vpack.c.b16 %v4079, %v4078
        %v4165 = vpack.c.b16 %v4081, %v4080
        %v4166 = vpack.c.b16 %v4083, %v4082
        %v4167 = vpack.c.b16 %v4085, %v4084
        %v4168 = vpack.c.b16 %v4087, %v4086
        %v4169 = vpack.c.b16 %v4089, %v4088
        %v4170 = vpack.c.b16 %v4091, %v4090
        %v4171 = vpack.c.b16 %v4093, %v4092
        %v4172 = vpack.c.b16 %v4095, %v4094
        %v4173 = vpack.c.b16 %v4097, %v4096
        %v4174 = vpack.c.b16 %v4099, %v4098
        %v4175 = vpack.c.b16 %v4101, %v4100
        %v4176 = vpack.c.b16 %v4103, %v4102
        %v4177 = vpack.c.b16 %v4105, %v4104
        %v4178 = vpack.c.b16 %v4107, %v4106
        %v4179 = vpack.c.b16 %v4109, %v4108
        %v4180 = vpack.c.b16 %v4111, %v4110
        %v4181 = vpack.c.b16 %v4113, %v4112
        %v4182 = vpack.c.b16 %v4115, %v4114
        %v4183 = vpack.c.b16 %v4117, %v4116
        %v4184 = vpack.c.b16 %v4119, %v4118
        %v4185 = vpack.c.b16 %v4121, %v4120
        %4250 = vmatprep.subr.bf16.mxu0 0
        %4251 = vmatpush1.bf16.msra.mxu0 %v4122
        %4252 = vmatprep.subr.bf16.mxu0 0
        %4253 = vmatpush1.bf16.msra.mxu0 %v4123
        %4254 = vmatprep.subr.bf16.mxu0 0
        %4255 = vmatpush1.bf16.msra.mxu0 %v4124
        %4256 = vmatprep.subr.bf16.mxu0 0
        %4257 = vmatpush1.bf16.msra.mxu0 %v4125
        %4258 = vmatprep.subr.bf16.mxu0 0
        %4259 = vmatpush1.bf16.msra.mxu0 %v4126
        %4260 = vmatprep.subr.bf16.mxu0 0
        %4261 = vmatpush1.bf16.msra.mxu0 %v4127
        %4262 = vmatprep.subr.bf16.mxu0 0
        %4263 = vmatpush1.bf16.msra.mxu0 %v4128
        %4264 = vmatprep.subr.bf16.mxu0 0
        %4265 = vmatpush1.bf16.msra.mxu0 %v4129
        %4266 = vmatprep.subr.bf16.mxu0 0
        %4267 = vmatpush1.bf16.msra.mxu0 %v4130
        %4268 = vmatprep.subr.bf16.mxu0 0
        %4269 = vmatpush1.bf16.msra.mxu0 %v4131
        %4270 = vmatprep.subr.bf16.mxu0 0
        %4271 = vmatpush1.bf16.msra.mxu0 %v4132
        %4272 = vmatprep.subr.bf16.mxu0 0
        %4273 = vmatpush1.bf16.msra.mxu0 %v4133
        %4274 = vmatprep.subr.bf16.mxu0 0
        %4275 = vmatpush1.bf16.msra.mxu0 %v4134
        %4276 = vmatprep.subr.bf16.mxu0 0
        %4277 = vmatpush1.bf16.msra.mxu0 %v4135
        %4278 = vmatprep.subr.bf16.mxu0 0
        %4279 = vmatpush1.bf16.msra.mxu0 %v4136
        %4280 = vmatprep.subr.bf16.mxu0 0
        %4281 = vmatpush1.bf16.msra.mxu0 %v4137
        %4282 = vmatprep.mubr.bf16.mxu0 %v3675
        %4283 = vmatmul.mubr.bf16.gmra.mrb[0].mxu0 %v3674
        %v4284 = vpop.f32.mrb[0].mxu0
        %v4285 = vadd.f32 0.0, %v4284
        %v4286 = vpop.f32.mrb[0].mxu0
        %v4287 = vpop.f32.mrb[0].mxu0
        %v4288 = vadd.f32 0.0, %v4287
        %v4289 = vpop.f32.mrb[0].mxu0
        %4290 = vmatprep.mubr.bf16.mxu0 %v3683
        %4291 = vmatmul.mubr.bf16.gmra.mrb[0].mxu0 %v3682
        %v4292 = vpop.f32.mrb[0].mxu0
        %v4293 = vadd.f32 0.0, %v4292
        %v4294 = vpop.f32.mrb[0].mxu0
        %v4295 = vpop.f32.mrb[0].mxu0
        %v4296 = vadd.f32 0.0, %v4295
        %v4297 = vpop.f32.mrb[0].mxu0
        %4298 = vmatprep.mubr.bf16.mxu0 %v3691
        %4299 = vmatmul.mubr.bf16.gmra.mrb[0].mxu0 %v3690
        %v4300 = vpop.f32.mrb[0].mxu0
        %v4301 = vadd.f32 0.0, %v4300
        %v4302 = vpop.f32.mrb[0].mxu0
        %v4303 = vpop.f32.mrb[0].mxu0
        %v4304 = vadd.f32 0.0, %v4303
        %v4305 = vpop.f32.mrb[0].mxu0
        %4306 = vmatprep.mubr.bf16.mxu0 %v3699
        %4307 = vmatmul.mubr.bf16.gmra.mrb[0].mxu0 %v3698
        %v4308 = vpop.f32.mrb[0].mxu0
        %v4309 = vadd.f32 0.0, %v4308
        %v4310 = vpop.f32.mrb[0].mxu0
        %v4311 = vpop.f32.mrb[0].mxu0
        %v4312 = vadd.f32 0.0, %v4311
        %v4313 = vpop.f32.mrb[0].mxu0
        %4314 = vmatprep.mubr.bf16.mxu0 %v3707
        %4315 = vmatmul.mubr.bf16.gmra.mrb[0].mxu0 %v3706
        %v4316 = vpop.f32.mrb[0].mxu0
        %v4317 = vadd.f32 0.0, %v4316
        %v4318 = vpop.f32.mrb[0].mxu0
        %v4319 = vpop.f32.mrb[0].mxu0
        %v4320 = vadd.f32 0.0, %v4319
        %v4321 = vpop.f32.mrb[0].mxu0
        %4322 = vmatprep.mubr.bf16.mxu0 %v3715
        %4323 = vmatmul.mubr.bf16.gmra.mrb[0].mxu0 %v3714
        %v4324 = vpop.f32.mrb[0].mxu0
        %v4325 = vadd.f32 0.0, %v4324
        %v4326 = vpop.f32.mrb[0].mxu0
        %v4327 = vpop.f32.mrb[0].mxu0
        %v4328 = vadd.f32 0.0, %v4327
        %v4329 = vpop.f32.mrb[0].mxu0
        %4330 = vmatprep.mubr.bf16.mxu0 %v3723
        %4331 = vmatmul.mubr.bf16.gmra.mrb[0].mxu0 %v3722
        %v4332 = vpop.f32.mrb[0].mxu0
        %v4333 = vadd.f32 0.0, %v4332
        %v4334 = vpop.f32.mrb[0].mxu0
        %v4335 = vpop.f32.mrb[0].mxu0
        %v4336 = vadd.f32 0.0, %v4335
        %v4337 = vpop.f32.mrb[0].mxu0
        %4338 = vmatprep.mubr.bf16.mxu0 %v3731
        %4339 = vmatmul.mubr.bf16.gmra.mrb[0].mxu0 %v3730
        %v4340 = vpop.f32.mrb[0].mxu0
        %v4341 = vadd.f32 0.0, %v4340
        %v4342 = vpop.f32.mrb[0].mxu0
        %v4343 = vpop.f32.mrb[0].mxu0
        %v4344 = vadd.f32 0.0, %v4343
        %v4345 = vpop.f32.mrb[0].mxu0
        %4346 = vdwg.mxu0
        %4347 = vmatprep.subr.bf16.mxu0 0
        %4348 = vmatpush1.bf16.msra.mxu0 %v4138
        %4349 = vmatprep.subr.bf16.mxu0 0
        %4350 = vmatpush1.bf16.msra.mxu0 %v4139
        %4351 = vmatprep.subr.bf16.mxu0 0
        %4352 = vmatpush1.bf16.msra.mxu0 %v4140
        %4353 = vmatprep.subr.bf16.mxu0 0
        %4354 = vmatpush1.bf16.msra.mxu0 %v4141
        %4355 = vmatprep.subr.bf16.mxu0 0
        %4356 = vmatpush1.bf16.msra.mxu0 %v4142
        %4357 = vmatprep.subr.bf16.mxu0 0
        %4358 = vmatpush1.bf16.msra.mxu0 %v4143
        %4359 = vmatprep.subr.bf16.mxu0 0
        %4360 = vmatpush1.bf16.msra.mxu0 %v4144
        %4361 = vmatprep.subr.bf16.mxu0 0
        %4362 = vmatpush1.bf16.msra.mxu0 %v4145
        %4363 = vmatprep.subr.bf16.mxu0 0
        %4364 = vmatpush1.bf16.msra.mxu0 %v4146
        %4365 = vmatprep.subr.bf16.mxu0 0
        %4366 = vmatpush1.bf16.msra.mxu0 %v4147
        %4367 = vmatprep.subr.bf16.mxu0 0
        %4368 = vmatpush1.bf16.msra.mxu0 %v4148
        %4369 = vmatprep.subr.bf16.mxu0 0
        %4370 = vmatpush1.bf16.msra.mxu0 %v4149
        %4371 = vmatprep.subr.bf16.mxu0 0
        %4372 = vmatpush1.bf16.msra.mxu0 %v4150
        %4373 = vmatprep.subr.bf16.mxu0 0
        %4374 = vmatpush1.bf16.msra.mxu0 %v4151
        %4375 = vmatprep.subr.bf16.mxu0 0
        %4376 = vmatpush1.bf16.msra.mxu0 %v4152
        %4377 = vmatprep.subr.bf16.mxu0 0
        %4378 = vmatpush1.bf16.msra.mxu0 %v4153
        %4379 = vmatprep.mubr.bf16.mxu0 %v3677
        %4380 = vmatmul.mubr.bf16.gmra.mrb[0].mxu0 %v3676
        %v4381 = vpop.f32.mrb[0].mxu0
        %v4382 = vadd.f32 %v4285, %v4381
        %v4383 = vpop.f32.mrb[0].mxu0
        %v4384 = vpop.f32.mrb[0].mxu0
        %v4385 = vadd.f32 %v4288, %v4384
        %v4386 = vpop.f32.mrb[0].mxu0
        %4387 = vmatprep.mubr.bf16.mxu0 %v3685
        %4388 = vmatmul.mubr.bf16.gmra.mrb[0].mxu0 %v3684
        %v4389 = vpop.f32.mrb[0].mxu0
        %v4390 = vadd.f32 %v4293, %v4389
        %v4391 = vpop.f32.mrb[0].mxu0
        %v4392 = vpop.f32.mrb[0].mxu0
        %v4393 = vadd.f32 %v4296, %v4392
        %v4394 = vpop.f32.mrb[0].mxu0
        %4395 = vmatprep.mubr.bf16.mxu0 %v3693
        %4396 = vmatmul.mubr.bf16.gmra.mrb[0].mxu0 %v3692
        %v4397 = vpop.f32.mrb[0].mxu0
        %v4398 = vadd.f32 %v4301, %v4397
        %v4399 = vpop.f32.mrb[0].mxu0
        %v4400 = vpop.f32.mrb[0].mxu0
        %v4401 = vadd.f32 %v4304, %v4400
        %v4402 = vpop.f32.mrb[0].mxu0
        %4403 = vmatprep.mubr.bf16.mxu0 %v3701
        %4404 = vmatmul.mubr.bf16.gmra.mrb[0].mxu0 %v3700
        %v4405 = vpop.f32.mrb[0].mxu0
        %v4406 = vadd.f32 %v4309, %v4405
        %v4407 = vpop.f32.mrb[0].mxu0
        %v4408 = vpop.f32.mrb[0].mxu0
        %v4409 = vadd.f32 %v4312, %v4408
        %v4410 = vpop.f32.mrb[0].mxu0
        %4411 = vmatprep.mubr.bf16.mxu0 %v3709
        %4412 = vmatmul.mubr.bf16.gmra.mrb[0].mxu0 %v3708
        %v4413 = vpop.f32.mrb[0].mxu0
        %v4414 = vadd.f32 %v4317, %v4413
        %v4415 = vpop.f32.mrb[0].mxu0
        %v4416 = vpop.f32.mrb[0].mxu0
        %v4417 = vadd.f32 %v4320, %v4416
        %v4418 = vpop.f32.mrb[0].mxu0
        %4419 = vmatprep.mubr.bf16.mxu0 %v3717
        %4420 = vmatmul.mubr.bf16.gmra.mrb[0].mxu0 %v3716
        %v4421 = vpop.f32.mrb[0].mxu0
        %v4422 = vadd.f32 %v4325, %v4421
        %v4423 = vpop.f32.mrb[0].mxu0
        %v4424 = vpop.f32.mrb[0].mxu0
        %v4425 = vadd.f32 %v4328, %v4424
        %v4426 = vpop.f32.mrb[0].mxu0
        %4427 = vmatprep.mubr.bf16.mxu0 %v3725
        %4428 = vmatmul.mubr.bf16.gmra.mrb[0].mxu0 %v3724
        %v4429 = vpop.f32.mrb[0].mxu0
        %v4430 = vadd.f32 %v4333, %v4429
        %v4431 = vpop.f32.mrb[0].mxu0
        %v4432 = vpop.f32.mrb[0].mxu0
        %v4433 = vadd.f32 %v4336, %v4432
        %v4434 = vpop.f32.mrb[0].mxu0
        %4435 = vmatprep.mubr.bf16.mxu0 %v3733
        %4436 = vmatmul.mubr.bf16.gmra.mrb[0].mxu0 %v3732
        %v4437 = vpop.f32.mrb[0].mxu0
        %v4438 = vadd.f32 %v4341, %v4437
        %v4439 = vpop.f32.mrb[0].mxu0
        %v4440 = vpop.f32.mrb[0].mxu0
        %v4441 = vadd.f32 %v4344, %v4440
        %v4442 = vpop.f32.mrb[0].mxu0
        %4443 = vdwg.mxu0
        %4444 = vmatprep.subr.bf16.mxu0 0
        %4445 = vmatpush1.bf16.msra.mxu0 %v4154
        %4446 = vmatprep.subr.bf16.mxu0 0
        %4447 = vmatpush1.bf16.msra.mxu0 %v4155
        %4448 = vmatprep.subr.bf16.mxu0 0
        %4449 = vmatpush1.bf16.msra.mxu0 %v4156
        %4450 = vmatprep.subr.bf16.mxu0 0
        %4451 = vmatpush1.bf16.msra.mxu0 %v4157
        %4452 = vmatprep.subr.bf16.mxu0 0
        %4453 = vmatpush1.bf16.msra.mxu0 %v4158
        %4454 = vmatprep.subr.bf16.mxu0 0
        %4455 = vmatpush1.bf16.msra.mxu0 %v4159
        %4456 = vmatprep.subr.bf16.mxu0 0
        %4457 = vmatpush1.bf16.msra.mxu0 %v4160
        %4458 = vmatprep.subr.bf16.mxu0 0
        %4459 = vmatpush1.bf16.msra.mxu0 %v4161
        %4460 = vmatprep.subr.bf16.mxu0 0
        %4461 = vmatpush1.bf16.msra.mxu0 %v4162
        %4462 = vmatprep.subr.bf16.mxu0 0
        %4463 = vmatpush1.bf16.msra.mxu0 %v4163
        %4464 = vmatprep.subr.bf16.mxu0 0
        %4465 = vmatpush1.bf16.msra.mxu0 %v4164
        %4466 = vmatprep.subr.bf16.mxu0 0
        %4467 = vmatpush1.bf16.msra.mxu0 %v4165
        %4468 = vmatprep.subr.bf16.mxu0 0
        %4469 = vmatpush1.bf16.msra.mxu0 %v4166
        %4470 = vmatprep.subr.bf16.mxu0 0
        %4471 = vmatpush1.bf16.msra.mxu0 %v4167
        %4472 = vmatprep.subr.bf16.mxu0 0
        %4473 = vmatpush1.bf16.msra.mxu0 %v4168
        %4474 = vmatprep.subr.bf16.mxu0 0
        %4475 = vmatpush1.bf16.msra.mxu0 %v4169
        %4476 = vmatprep.mubr.bf16.mxu0 %v3679
        %4477 = vmatmul.mubr.bf16.gmra.mrb[0].mxu0 %v3678
        %v4478 = vpop.f32.mrb[0].mxu0
        %v4479 = vadd.f32 %v4382, %v4478
        %v4480 = vpop.f32.mrb[0].mxu0
        %v4481 = vpop.f32.mrb[0].mxu0
        %v4482 = vadd.f32 %v4385, %v4481
        %v4483 = vpop.f32.mrb[0].mxu0
        %4484 = vmatprep.mubr.bf16.mxu0 %v3687
        %4485 = vmatmul.mubr.bf16.gmra.mrb[0].mxu0 %v3686
        %v4486 = vpop.f32.mrb[0].mxu0
        %v4487 = vadd.f32 %v4390, %v4486
        %v4488 = vpop.f32.mrb[0].mxu0
        %v4489 = vpop.f32.mrb[0].mxu0
        %v4490 = vadd.f32 %v4393, %v4489
        %v4491 = vpop.f32.mrb[0].mxu0
        %4492 = vmatprep.mubr.bf16.mxu0 %v3695
        %4493 = vmatmul.mubr.bf16.gmra.mrb[0].mxu0 %v3694
        %v4494 = vpop.f32.mrb[0].mxu0
        %v4495 = vadd.f32 %v4398, %v4494
        %v4496 = vpop.f32.mrb[0].mxu0
        %v4497 = vpop.f32.mrb[0].mxu0
        %v4498 = vadd.f32 %v4401, %v4497
        %v4499 = vpop.f32.mrb[0].mxu0
        %4500 = vmatprep.mubr.bf16.mxu0 %v3703
        %4501 = vmatmul.mubr.bf16.gmra.mrb[0].mxu0 %v3702
        %v4502 = vpop.f32.mrb[0].mxu0
        %v4503 = vadd.f32 %v4406, %v4502
        %v4504 = vpop.f32.mrb[0].mxu0
        %v4505 = vpop.f32.mrb[0].mxu0
        %v4506 = vadd.f32 %v4409, %v4505
        %v4507 = vpop.f32.mrb[0].mxu0
        %4508 = vmatprep.mubr.bf16.mxu0 %v3711
        %4509 = vmatmul.mubr.bf16.gmra.mrb[0].mxu0 %v3710
        %v4510 = vpop.f32.mrb[0].mxu0
        %v4511 = vadd.f32 %v4414, %v4510
        %v4512 = vpop.f32.mrb[0].mxu0
        %v4513 = vpop.f32.mrb[0].mxu0
        %v4514 = vadd.f32 %v4417, %v4513
        %v4515 = vpop.f32.mrb[0].mxu0
        %4516 = vmatprep.mubr.bf16.mxu0 %v3719
        %4517 = vmatmul.mubr.bf16.gmra.mrb[0].mxu0 %v3718
        %v4518 = vpop.f32.mrb[0].mxu0
        %v4519 = vadd.f32 %v4422, %v4518
        %v4520 = vpop.f32.mrb[0].mxu0
        %v4521 = vpop.f32.mrb[0].mxu0
        %v4522 = vadd.f32 %v4425, %v4521
        %v4523 = vpop.f32.mrb[0].mxu0
        %4524 = vmatprep.mubr.bf16.mxu0 %v3727
        %4525 = vmatmul.mubr.bf16.gmra.mrb[0].mxu0 %v3726
        %v4526 = vpop.f32.mrb[0].mxu0
        %v4527 = vadd.f32 %v4430, %v4526
        %v4528 = vpop.f32.mrb[0].mxu0
        %v4529 = vpop.f32.mrb[0].mxu0
        %v4530 = vadd.f32 %v4433, %v4529
        %v4531 = vpop.f32.mrb[0].mxu0
        %4532 = vmatprep.mubr.bf16.mxu0 %v3735
        %4533 = vmatmul.mubr.bf16.gmra.mrb[0].mxu0 %v3734
        %v4534 = vpop.f32.mrb[0].mxu0
        %v4535 = vadd.f32 %v4438, %v4534
        %v4536 = vpop.f32.mrb[0].mxu0
        %v4537 = vpop.f32.mrb[0].mxu0
        %v4538 = vadd.f32 %v4441, %v4537
        %v4539 = vpop.f32.mrb[0].mxu0
        %4540 = vdwg.mxu0
        %4541 = vmatprep.subr.bf16.mxu0 0
        %4542 = vmatpush1.bf16.msra.mxu0 %v4170
        %4543 = vmatprep.subr.bf16.mxu0 0
        %4544 = vmatpush1.bf16.msra.mxu0 %v4171
        %4545 = vmatprep.subr.bf16.mxu0 0
        %4546 = vmatpush1.bf16.msra.mxu0 %v4172
        %4547 = vmatprep.subr.bf16.mxu0 0
        %4548 = vmatpush1.bf16.msra.mxu0 %v4173
        %4549 = vmatprep.subr.bf16.mxu0 0
        %4550 = vmatpush1.bf16.msra.mxu0 %v4174
        %4551 = vmatprep.subr.bf16.mxu0 0
        %4552 = vmatpush1.bf16.msra.mxu0 %v4175
        %4553 = vmatprep.subr.bf16.mxu0 0
        %4554 = vmatpush1.bf16.msra.mxu0 %v4176
        %4555 = vmatprep.subr.bf16.mxu0 0
        %4556 = vmatpush1.bf16.msra.mxu0 %v4177
        %4557 = vmatprep.subr.bf16.mxu0 0
        %4558 = vmatpush1.bf16.msra.mxu0 %v4178
        %4559 = vmatprep.subr.bf16.mxu0 0
        %4560 = vmatpush1.bf16.msra.mxu0 %v4179
        %4561 = vmatprep.subr.bf16.mxu0 0
        %4562 = vmatpush1.bf16.msra.mxu0 %v4180
        %4563 = vmatprep.subr.bf16.mxu0 0
        %4564 = vmatpush1.bf16.msra.mxu0 %v4181
        %4565 = vmatprep.subr.bf16.mxu0 0
        %4566 = vmatpush1.bf16.msra.mxu0 %v4182
        %4567 = vmatprep.subr.bf16.mxu0 0
        %4568 = vmatpush1.bf16.msra.mxu0 %v4183
        %4569 = vmatprep.subr.bf16.mxu0 0
        %4570 = vmatpush1.bf16.msra.mxu0 %v4184
        %4571 = vmatprep.subr.bf16.mxu0 0
        %4572 = vmatpush1.bf16.msra.mxu0 %v4185
        %4573 = vmatprep.mubr.bf16.mxu0 %v3681
        %4574 = vmatmul.mubr.bf16.gmra.mrb[0].mxu0 %v3680
        %v4575 = vpop.f32.mrb[0].mxu0
        %v4576 = vadd.f32 %v4479, %v4575
        %v4577 = vpop.f32.mrb[0].mxu0
        %v4578 = vpop.f32.mrb[0].mxu0
        %v4579 = vadd.f32 %v4482, %v4578
        %v4580 = vpop.f32.mrb[0].mxu0
        %4581 = vmatprep.mubr.bf16.mxu0 %v3689
        %4582 = vmatmul.mubr.bf16.gmra.mrb[0].mxu0 %v3688
        %v4583 = vpop.f32.mrb[0].mxu0
        %v4584 = vadd.f32 %v4487, %v4583
        %v4585 = vpop.f32.mrb[0].mxu0
        %v4586 = vpop.f32.mrb[0].mxu0
        %v4587 = vadd.f32 %v4490, %v4586
        %v4588 = vpop.f32.mrb[0].mxu0
        %4589 = vmatprep.mubr.bf16.mxu0 %v3697
        %4590 = vmatmul.mubr.bf16.gmra.mrb[0].mxu0 %v3696
        %v4591 = vpop.f32.mrb[0].mxu0
        %v4592 = vadd.f32 %v4495, %v4591
        %v4593 = vpop.f32.mrb[0].mxu0
        %v4594 = vpop.f32.mrb[0].mxu0
        %v4595 = vadd.f32 %v4498, %v4594
        %v4596 = vpop.f32.mrb[0].mxu0
        %4597 = vmatprep.mubr.bf16.mxu0 %v3705
        %4598 = vmatmul.mubr.bf16.gmra.mrb[0].mxu0 %v3704
        %v4599 = vpop.f32.mrb[0].mxu0
        %v4600 = vadd.f32 %v4503, %v4599
        %v4601 = vpop.f32.mrb[0].mxu0
        %v4602 = vpop.f32.mrb[0].mxu0
        %v4603 = vadd.f32 %v4506, %v4602
        %v4604 = vpop.f32.mrb[0].mxu0
        %4605 = vmatprep.mubr.bf16.mxu0 %v3713
        %4606 = vmatmul.mubr.bf16.gmra.mrb[0].mxu0 %v3712
        %v4607 = vpop.f32.mrb[0].mxu0
        %v4608 = vadd.f32 %v4511, %v4607
        %v4609 = vpop.f32.mrb[0].mxu0
        %v4610 = vpop.f32.mrb[0].mxu0
        %v4611 = vadd.f32 %v4514, %v4610
        %v4612 = vpop.f32.mrb[0].mxu0
        %4613 = vmatprep.mubr.bf16.mxu0 %v3721
        %4614 = vmatmul.mubr.bf16.gmra.mrb[0].mxu0 %v3720
        %v4615 = vpop.f32.mrb[0].mxu0
        %v4616 = vadd.f32 %v4519, %v4615
        %v4617 = vpop.f32.mrb[0].mxu0
        %v4618 = vpop.f32.mrb[0].mxu0
        %v4619 = vadd.f32 %v4522, %v4618
        %v4620 = vpop.f32.mrb[0].mxu0
        %4621 = vmatprep.mubr.bf16.mxu0 %v3729
        %4622 = vmatmul.mubr.bf16.gmra.mrb[0].mxu0 %v3728
        %v4623 = vpop.f32.mrb[0].mxu0
        %v4624 = vadd.f32 %v4527, %v4623
        %v4625 = vpop.f32.mrb[0].mxu0
        %v4626 = vpop.f32.mrb[0].mxu0
        %v4627 = vadd.f32 %v4530, %v4626
        %v4628 = vpop.f32.mrb[0].mxu0
        %4629 = vmatprep.mubr.bf16.mxu0 %v3737
        %4630 = vmatmul.mubr.bf16.gmra.mrb[0].mxu0 %v3736
        %v4631 = vpop.f32.mrb[0].mxu0
        %v4632 = vadd.f32 %v4535, %v4631
        %v4633 = vpop.f32.mrb[0].mxu0
        %v4634 = vpop.f32.mrb[0].mxu0
        %v4635 = vadd.f32 %v4538, %v4634
        %v4636 = vpop.f32.mrb[0].mxu0
        %4637 = vdwg.mxu0
        %v4638 = vadd.f32 %v2000, %v4576
        %v4639 = vadd.f32 %v2001, %v4579
        %v4640 = vadd.f32 %v2002, %v4584
        %v4641 = vadd.f32 %v2003, %v4587
        %v4642 = vadd.f32 %v2004, %v4592
        %v4643 = vadd.f32 %v2005, %v4595
        %v4644 = vadd.f32 %v2006, %v4600
        %v4645 = vadd.f32 %v2007, %v4603
        %v4646 = vadd.f32 %v2008, %v4608
        %v4647 = vadd.f32 %v2009, %v4611
        %v4648 = vadd.f32 %v2010, %v4616
        %v4649 = vadd.f32 %v2011, %v4619
        %v4650 = vadd.f32 %v2012, %v4624
        %v4651 = vadd.f32 %v2013, %v4627
        %v4652 = vadd.f32 %v2014, %v4632
        %v4653 = vadd.f32 %v2015, %v4635
        %v4654 = vld [vmem:[%s514] sm:$0xf]
        %v4655 = vld [vmem:[%s514 + $0x4] sm:$0xf]
        %v4656 = vld [vmem:[%s514 + $0x8] sm:$0xf]
        %v4657 = vld [vmem:[%s514 + $0xc] sm:$0xf]
        %v4658 = vld [vmem:[%s514 + $0x10] sm:$0xf]
        %v4659 = vld [vmem:[%s514 + $0x14] sm:$0xf]
        %v4660 = vld [vmem:[%s514 + $0x18] sm:$0xf]
        %v4661 = vld [vmem:[%s514 + $0x1c] sm:$0xf]
        %v4662 = vld [vmem:[%s514 + $0x20] sm:$0xf]
        %v4663 = vld [vmem:[%s514 + $0x24] sm:$0xf]
        %v4664 = vld [vmem:[%s514 + $0x28] sm:$0xf]
        %v4665 = vld [vmem:[%s514 + $0x2c] sm:$0xf]
        %v4666 = vld [vmem:[%s514 + $0x30] sm:$0xf]
        %v4667 = vld [vmem:[%s514 + $0x34] sm:$0xf]
        %v4668 = vld [vmem:[%s514 + $0x38] sm:$0xf]
        %v4669 = vld [vmem:[%s514 + $0x3c] sm:$0xf]
        %v4686 = vunpack.c.l.b16 %v4654
        %v4687 = vunpack.c.l.b16 %v4655
        %v4688 = vunpack.c.l.b16 %v4656
        %v4689 = vunpack.c.l.b16 %v4657
        %v4690 = vunpack.c.l.b16 %v4658
        %v4691 = vunpack.c.l.b16 %v4659
        %v4692 = vunpack.c.l.b16 %v4660
        %v4693 = vunpack.c.l.b16 %v4661
        %v4694 = vunpack.c.l.b16 %v4662
        %v4695 = vunpack.c.l.b16 %v4663
        %v4696 = vunpack.c.l.b16 %v4664
        %v4697 = vunpack.c.l.b16 %v4665
        %v4698 = vunpack.c.l.b16 %v4666
        %v4699 = vunpack.c.l.b16 %v4667
        %v4700 = vunpack.c.l.b16 %v4668
        %v4701 = vunpack.c.l.b16 %v4669
        %v4702 = vpack.c.b16 %v4687, %v4686
        %v4703 = vpack.c.b16 %v4689, %v4688
        %v4704 = vpack.c.b16 %v4691, %v4690
        %v4705 = vpack.c.b16 %v4693, %v4692
        %v4706 = vpack.c.b16 %v4695, %v4694
        %v4707 = vpack.c.b16 %v4697, %v4696
        %v4708 = vpack.c.b16 %v4699, %v4698
        %v4709 = vpack.c.b16 %v4701, %v4700
        %4718 = vmatprep.subr.bf16.mxu0 0
        %4719 = vmatpush1.bf16.msra.mxu0 %v4702
        %4720 = vmatprep.subr.bf16.mxu0 0
        %4721 = vmatpush1.bf16.msra.mxu0 %v4703
        %4722 = vmatprep.subr.bf16.mxu0 0
        %4723 = vmatpush1.bf16.msra.mxu0 %v4704
        %4724 = vmatprep.subr.bf16.mxu0 0
        %4725 = vmatpush1.bf16.msra.mxu0 %v4705
        %4726 = vmatprep.subr.bf16.mxu0 0
        %4727 = vmatpush1.bf16.msra.mxu0 %v4706
        %4728 = vmatprep.subr.bf16.mxu0 0
        %4729 = vmatpush1.bf16.msra.mxu0 %v4707
        %4730 = vmatprep.subr.bf16.mxu0 0
        %4731 = vmatpush1.bf16.msra.mxu0 %v4708
        %4732 = vmatprep.subr.bf16.mxu0 0
        %4733 = vmatpush1.bf16.msra.mxu0 %v4709
        %4734 = vmatprep.subr.bf16.mxu0 0
        %4735 = vmatpush1.bf16.msra.mxu0 0
        %4736 = vmatprep.subr.bf16.mxu0 0
        %4737 = vmatpush1.bf16.msra.mxu0 0
        %4738 = vmatprep.subr.bf16.mxu0 0
        %4739 = vmatpush1.bf16.msra.mxu0 0
        %4740 = vmatprep.subr.bf16.mxu0 0
        %4741 = vmatpush1.bf16.msra.mxu0 0
        %4742 = vmatprep.subr.bf16.mxu0 0
        %4743 = vmatpush1.bf16.msra.mxu0 0
        %4744 = vmatprep.subr.bf16.mxu0 0
        %4745 = vmatpush1.bf16.msra.mxu0 0
        %4746 = vmatprep.subr.bf16.mxu0 0
        %4747 = vmatpush1.bf16.msra.mxu0 0
        %4748 = vmatprep.subr.bf16.mxu0 0
        %4749 = vmatpush1.bf16.msra.mxu0 0
        %4750 = vmatprep.mubr.bf16.mxu0 0
        %4751 = vmatmul.mubr.bf16.gmra.mrb[0].mxu0 %v1807
        %v4752 = vpop.f32.mrb[0].mxu0
        %v4753 = vadd.f32 0.0, %v4752
        %v4754 = vpop.f32.mrb[0].mxu0
        %v4755 = vpop.f32.mrb[0].mxu0
        %v4756 = vadd.f32 0.0, %v4755
        %v4757 = vpop.f32.mrb[0].mxu0
        %4758 = vmatprep.mubr.bf16.mxu0 0
        %4759 = vmatmul.mubr.bf16.gmra.mrb[0].mxu0 %v1808
        %v4760 = vpop.f32.mrb[0].mxu0
        %v4761 = vadd.f32 0.0, %v4760
        %v4762 = vpop.f32.mrb[0].mxu0
        %v4763 = vpop.f32.mrb[0].mxu0
        %v4764 = vadd.f32 0.0, %v4763
        %v4765 = vpop.f32.mrb[0].mxu0
        %4766 = vmatprep.mubr.bf16.mxu0 0
        %4767 = vmatmul.mubr.bf16.gmra.mrb[0].mxu0 %v1809
        %v4768 = vpop.f32.mrb[0].mxu0
        %v4769 = vadd.f32 0.0, %v4768
        %v4770 = vpop.f32.mrb[0].mxu0
        %v4771 = vpop.f32.mrb[0].mxu0
        %v4772 = vadd.f32 0.0, %v4771
        %v4773 = vpop.f32.mrb[0].mxu0
        %4774 = vmatprep.mubr.bf16.mxu0 0
        %4775 = vmatmul.mubr.bf16.gmra.mrb[0].mxu0 %v1810
        %v4776 = vpop.f32.mrb[0].mxu0
        %v4777 = vadd.f32 0.0, %v4776
        %v4778 = vpop.f32.mrb[0].mxu0
        %v4779 = vpop.f32.mrb[0].mxu0
        %v4780 = vadd.f32 0.0, %v4779
        %v4781 = vpop.f32.mrb[0].mxu0
        %4782 = vmatprep.mubr.bf16.mxu0 0
        %4783 = vmatmul.mubr.bf16.gmra.mrb[0].mxu0 %v1811
        %v4784 = vpop.f32.mrb[0].mxu0
        %v4785 = vadd.f32 0.0, %v4784
        %v4786 = vpop.f32.mrb[0].mxu0
        %v4787 = vpop.f32.mrb[0].mxu0
        %v4788 = vadd.f32 0.0, %v4787
        %v4789 = vpop.f32.mrb[0].mxu0
        %4790 = vmatprep.mubr.bf16.mxu0 0
        %4791 = vmatmul.mubr.bf16.gmra.mrb[0].mxu0 %v1812
        %v4792 = vpop.f32.mrb[0].mxu0
        %v4793 = vadd.f32 0.0, %v4792
        %v4794 = vpop.f32.mrb[0].mxu0
        %v4795 = vpop.f32.mrb[0].mxu0
        %v4796 = vadd.f32 0.0, %v4795
        %v4797 = vpop.f32.mrb[0].mxu0
        %4798 = vmatprep.mubr.bf16.mxu0 0
        %4799 = vmatmul.mubr.bf16.gmra.mrb[0].mxu0 %v1813
        %v4800 = vpop.f32.mrb[0].mxu0
        %v4801 = vadd.f32 0.0, %v4800
        %v4802 = vpop.f32.mrb[0].mxu0
        %v4803 = vpop.f32.mrb[0].mxu0
        %v4804 = vadd.f32 0.0, %v4803
        %v4805 = vpop.f32.mrb[0].mxu0
        %4806 = vmatprep.mubr.bf16.mxu0 0
        %4807 = vmatmul.mubr.bf16.gmra.mrb[0].mxu0 %v1814
        %v4808 = vpop.f32.mrb[0].mxu0
        %v4809 = vadd.f32 0.0, %v4808
        %v4810 = vpop.f32.mrb[0].mxu0
        %v4811 = vpop.f32.mrb[0].mxu0
        %v4812 = vadd.f32 0.0, %v4811
        %v4813 = vpop.f32.mrb[0].mxu0
        %4814 = vdwg.mxu0
        %v4815 = vadd.f32 %v4638, %v4753
        %v4816 = vadd.f32 %v4639, %v4756
        %v4817 = vadd.f32 %v4640, %v4761
        %v4818 = vadd.f32 %v4641, %v4764
        %v4819 = vadd.f32 %v4642, %v4769
        %v4820 = vadd.f32 %v4643, %v4772
        %v4821 = vadd.f32 %v4644, %v4777
        %v4822 = vadd.f32 %v4645, %v4780
        %v4823 = vadd.f32 %v4646, %v4785
        %v4824 = vadd.f32 %v4647, %v4788
        %v4825 = vadd.f32 %v4648, %v4793
        %v4826 = vadd.f32 %v4649, %v4796
        %v4827 = vadd.f32 %v4650, %v4801
        %v4828 = vadd.f32 %v4651, %v4804
        %v4829 = vadd.f32 %v4652, %v4809
        %v4830 = vadd.f32 %v4653, %v4812
        %4831 = vst [vmem:[%s580] sm:$0xff] %v4815
        %4832 = vst [vmem:[%s580 + $0x8] sm:$0xff] %v4816
        %4833 = vst [vmem:[%s580 + $0x10] sm:$0xff] %v4817
        %4834 = vst [vmem:[%s580 + $0x18] sm:$0xff] %v4818
        %4835 = vst [vmem:[%s580 + $0x20] sm:$0xff] %v4819
        %4836 = vst [vmem:[%s580 + $0x28] sm:$0xff] %v4820
        %4837 = vst [vmem:[%s580 + $0x30] sm:$0xff] %v4821
        %4838 = vst [vmem:[%s580 + $0x38] sm:$0xff] %v4822
        %4839 = vst [vmem:[%s580 + $0x40] sm:$0xff] %v4823
        %4840 = vst [vmem:[%s580 + $0x48] sm:$0xff] %v4824
        %4841 = vst [vmem:[%s580 + $0x50] sm:$0xff] %v4825
        %4842 = vst [vmem:[%s580 + $0x58] sm:$0xff] %v4826
        %4843 = vst [vmem:[%s580 + $0x60] sm:$0xff] %v4827
        %4844 = vst [vmem:[%s580 + $0x68] sm:$0xff] %v4828
        %4845 = vst [vmem:[%s580 + $0x70] sm:$0xff] %v4829
        %4846 = vst [vmem:[%s580 + $0x78] sm:$0xff] %v4830
        %s4847 = sand.u32 %s284, 1
        %s4848 = scalar_lea.sflag [#allocation5], %s4847
        %s4849 = sand.u32 %s284, 1
        %s4850 = smul.addr %s4849, 128
        %s4851 = scalar_lea.vmem [#allocation14], %s4850
        // Predicated region
        $region85: #{tpu_custom_call.1} parent=55 // pred_check
          %p4852 = pneg %p294
        $region86: #{tpu_custom_call.1} parent=55 // pred_check_branch
          %4854 = sbr.rel (%p4852) target = $region88
        $region87: #{tpu_custom_call.1} parent=55 // pred_region
          %s4855 = smul.u32 16, %s39
          %s4857 = ssub.s32 2048, 2048
          %4858 = vsyncadd %s4848, %s4857
          %s4859 = smul.addr %s4855, 128
          %s4860 = scalar_lea.hbm %s9, %s4859
          %s4861 = sshll.u32 %s4851, 4
          %s4862 = int_to_ptr.vmem [resolvable:$true] %s4861
          %4867 = dma.vmem_to_hbm [thread:$0]  %s4862, 2048, %s4860, %s4848, 128, 128, 8
        $region88: #{tpu_custom_call.1} parent=55 // pred_fallthru
          _
      $region56: #{tpu_custom_call.1} parent=5 // pred_fallthru
        _
      %p4868 = scmp.le.s32.totalorder 2, %s30
      // Predicated region
      $region89: #{tpu_custom_call.1} parent=5 // pred_check
        %p4869 = pneg %p4868
      $region90: #{tpu_custom_call.1} parent=5 // pred_check_branch
        %4871 = sbr.rel (%p4869) target = $region92
      $region91: #{tpu_custom_call.1} parent=5 // pred_region
        %s4872 = ssub.s32 %s30, 2
        // Predicated region
        $region93: #{tpu_custom_call.1} parent=91 // pred_check
          %p4873 = pneg %p300
        $region94: #{tpu_custom_call.1} parent=91 // pred_check_branch
          %4875 = sbr.rel (%p4873) target = $region96
        $region95: #{tpu_custom_call.1} parent=91 // pred_region
          %s4876 = sand.u32 %s285, 1
          %s4877 = scalar_lea.sflag [#allocation5], %s4876
          %s4878 = sand.u32 %s285, 1
          %s4879 = smul.addr %s4878, 128
          %s4880 = scalar_lea.vmem [#allocation14], %s4879
          %4881 = dma.done %s4877, 2048
        $region96: #{tpu_custom_call.1} parent=91 // pred_fallthru
          _
      $region92: #{tpu_custom_call.1} parent=5 // pred_fallthru
        _
    $region6: #{tpu_custom_call.1} parent=1 // loop_footer
      %s34 = sadd.s32 1, %s30
    $region7: #{tpu_custom_call.1} parent=1 // loop_footer_branch
      %29 = sbr.rel target = $region3
    $region8: #{tpu_custom_call.1} parent=1 // loop_exit
      _
    %4882 = vsyncpa [#allocation4], 1
    %s4883 = scalar_lea.sflag [#allocation4], 1
    %4884 = vsyncpa %s4883, 1
    %4885 = vsyncpa [#allocation7], 1
    %s4886 = scalar_lea.sflag [#allocation7], 1
    %4887 = vsyncpa %s4886, 1
    %4888 = vsyncpa [#allocation10], 1
    %s4889 = scalar_lea.sflag [#allocation10], 1
    %4890 = vsyncpa %s4889, 1
    %4891 = vsyncpa [#allocation13], 1
    %s4892 = scalar_lea.sflag [#allocation13], 1
    %4893 = vsyncpa %s4892, 1
    %4894 = vsyncpa [#allocation5], 1
    %s4895 = scalar_lea.sflag [#allocation5], 1
    %4896 = vsyncpa %s4895, 1

</llo_original>
